<compile_context>
chip_gen: v6e
topology: v6e:2x2x1
jax: 0.10.0
libtpu: 0.0.40
codegen_flags: <defaults>
</compile_context>

<pallas_src>
import jax
import jax.numpy as jnp
from jax.experimental import pallas as pl
from jax.experimental.pallas import tpu as pltpu

# ----------------------------- synthetic "ViT" config -----------------------------
BATCH = 2
CHANNELS = 3          # RGB (forced by the CLIP Normalize constants)
IMG = 16              # synthetic input_resolution (n_px)
PATCH = 8
GRID_HW = IMG // PATCH
N_PATCH = GRID_HW * GRID_HW
TOKENS = N_PATCH + 1  # + class token
WIDTH = 32            # transformer width
HEADS = 4
HEAD_DIM = WIDTH // HEADS
MLP_HIDDEN = 4 * WIDTH
LAYERS = 2
EMBED_DIM = 16        # self.dim == text_projection.shape[1] (synthetic)
LN_EPS = 1e-5
PPC = PATCH * PATCH * CHANNELS   # flattened patch length
BT = BATCH * TOKENS              # all tokens of the whole batch


# --------------------- packed-weight layout (shared host/kernel) ---------------------
def _build_w32_layout():
    """Row layout of the WIDTH-wide weight blob (last dim = WIDTH = 32)."""
    layout = {}
    off = 0

    def add(name, rows):
        nonlocal off
        layout[name] = (off, rows)
        off += rows

    add("w_patch", PPC)            # (PPC, W) patch-embed matmul weight (preproc folded)
    add("b_patch", 1)              # (1, W)   folded preprocess bias
    add("cls_pos0", 1)             # (1, W)   class token + pos[0] (pre-added)
    add("pos_patch", N_PATCH)      # (N_PATCH, W)
    add("ln_pre", 2)               # rows: gamma, beta
    for l in range(LAYERS):
        add(f"ln1_{l}", 2)
        add(f"wqkvT_{l}", 3 * WIDTH)   # (3W, W): row = which*W + head*Dh + d (= w_qkv.T)
        add(f"bqkv_{l}", 3 * HEADS)    # (3*HEADS, W): bias in lanes [0:Dh]
        add(f"w_attn_o_{l}", WIDTH)    # (W, W)
        add(f"b_attn_o_{l}", 1)
        add(f"ln2_{l}", 2)
        add(f"w_mlp_proj_{l}", MLP_HIDDEN)   # (4W, W)
        add(f"b_mlp_proj_{l}", 1)
    add("ln_post", 2)
    add("w_outT", EMBED_DIM)       # (EMBED_DIM, W) = visual projection, transposed
    return layout, off


_W32_LAYOUT, _W32_ROWS = _build_w32_layout()


# ----------------------------- fused encoder kernel -----------------------------
def _clip_encoder_kernel(patches_ref, w32_ref, w128_ref, o_ref):
    def seg(name):
        o, r = _W32_LAYOUT[name]
        return w32_ref[o:o + r, :]            # static row slice of the packed blob

    def layer_norm(x, gb):                    # gb: (2, W) rows = gamma, beta
        mu = jnp.mean(x, axis=-1, keepdims=True)
        xc = x - mu
        var = jnp.mean(xc * xc, axis=-1, keepdims=True)
        return xc * jax.lax.rsqrt(var + LN_EPS) * gb[0:1, :] + gb[1:2, :]

    def dot_nt(a, b):                         # a @ b.T on the MXU
        return jax.lax.dot_general(a, b, (((1,), (1,)), ((), ())),
                                   preferred_element_type=jnp.float32)

    # --- patch embedding (double-Normalize affine already folded into w/b) ---
    tok = jnp.dot(patches_ref[...], seg("w_patch"),
                  preferred_element_type=jnp.float32) + seg("b_patch")   # (B*N_PATCH, W)

    # --- assemble [CLS]+patch tokens with positional embedding, in registers ---
    cls_row = seg("cls_pos0")                 # (1, W)  cls + pos[0] pre-folded
    pos_pat = seg("pos_patch")                # (N_PATCH, W)
    rows = []
    for b in range(BATCH):
        rows.append(cls_row)
        rows.append(tok[b * N_PATCH:(b + 1) * N_PATCH, :] + pos_pat)
    x = jnp.concatenate(rows, axis=0)         # (BT, W), no scratch round-trip

    # --- ln_pre ---
    x = layer_norm(x, seg("ln_pre"))

    # --- block-diagonal additive mask: both batch elements share one (BT, BT)
    #     attention matmul per head.  Hoisted out of the layer loop. ---
    ri = jax.lax.broadcasted_iota(jnp.int32, (BT, BT), 0)
    ci = jax.lax.broadcasted_iota(jnp.int32, (BT, BT), 1)
    same = None
    for b in range(BATCH):
        rb = (ri >= b * TOKENS) & (ri < (b + 1) * TOKENS)
        cb = (ci >= b * TOKENS) & (ci < (b + 1) * TOKENS)
        blk = rb & cb
        same = blk if same is None else (same | blk)
    neg_mask = jnp.where(same, 0.0, -1e30).astype(jnp.float32)

    scale = 1.0 / float(HEAD_DIM) ** 0.5
    for l in range(LAYERS):
        # ---------------- multi-head self-attention ----------------
        h = layer_norm(x, seg(f"ln1_{l}"))
        wqkv_t = seg(f"wqkvT_{l}")            # (3W, W) pre-split per head on rows
        bqkv = seg(f"bqkv_{l}")               # (3*HEADS, W), bias in lanes [0:Dh]
        head_outs = []
        for hd in range(HEADS):
            def w_slice(which, hd=hd):        # sublane-tile-aligned row slices only
                r0 = which * WIDTH + hd * HEAD_DIM
                return wqkv_t[r0:r0 + HEAD_DIM, :]

            def b_slice(which, hd=hd):
                r = which * HEADS + hd
                return bqkv[r:r + 1, 0:HEAD_DIM]

            qh = dot_nt(h, w_slice(0)) + b_slice(0)     # (BT, Dh)
            kh = dot_nt(h, w_slice(1)) + b_slice(1)     # (BT, Dh)
            vh = dot_nt(h, w_slice(2)) + b_slice(2)     # (BT, Dh)
            s = dot_nt(qh, kh) * scale + neg_mask       # (BT, BT), both batches at once
            s = s - jnp.max(s, axis=-1, keepdims=True)
            p = jnp.exp(s)
            p = p * pl.reciprocal(jnp.sum(p, axis=-1, keepdims=True), approx=True)
            head_outs.append(jnp.dot(p, vh, preferred_element_type=jnp.float32))
        attn = jnp.concatenate(head_outs, axis=-1)      # (BT, W) lane concat (XLU)
        x = x + jnp.dot(attn, seg(f"w_attn_o_{l}"),
                        preferred_element_type=jnp.float32) + seg(f"b_attn_o_{l}")

        # ---------------- MLP (QuickGELU, as in CLIP) ----------------
        h2 = layer_norm(x, seg(f"ln2_{l}"))
        w_fc = w128_ref[l * WIDTH:(l + 1) * WIDTH, :]            # (W, 4W) lane-dense
        b_fc = w128_ref[2 * WIDTH + l:2 * WIDTH + l + 1, :]      # (1, 4W)
        m = jnp.dot(h2, w_fc, preferred_element_type=jnp.float32) + b_fc
        m = m * jax.nn.sigmoid(1.702 * m)
        x = x + jnp.dot(m, seg(f"w_mlp_proj_{l}"),
                        preferred_element_type=jnp.float32) + seg(f"b_mlp_proj_{l}")

    # --- ln_post on class tokens + visual projection (no bias) ---
    cls_tok = jnp.concatenate(
        [x[b * TOKENS:b * TOKENS + 1, :] for b in range(BATCH)], axis=0)   # (B, W)
    cls_ln = layer_norm(cls_tok, seg("ln_post"))
    o_ref[...] = dot_nt(cls_ln, seg("w_outT")).astype(o_ref.dtype)         # (B, EMBED)


# ----------------------------- parameters -----------------------------
def _folded_preprocess_constants():
    cifar_mean = jnp.array([0.4914, 0.4822, 0.4465], jnp.float32)
    cifar_std = jnp.array([0.2023, 0.1994, 0.201], jnp.float32)
    clip_mean = jnp.array([0.48145466, 0.4578275, 0.40821073], jnp.float32)
    clip_std = jnp.array([0.26862954, 0.26130258, 0.27577711], jnp.float32)
    # Normalize(-m/s, 1/s) then Normalize(clip_m, clip_s)  ==  x * scale + bias
    scale = cifar_std / clip_std
    bias = (cifar_mean - clip_mean) / clip_std
    return scale, bias


def init_params(key):
    """Logical (un-packed) synthetic CLIP-ViT parameters."""
    kit = iter(jax.random.split(key, 16))

    def w(shape):
        return 0.02 * jax.random.normal(next(kit), shape, jnp.float32)

    return {
        "w_patch_raw": w((PPC, WIDTH)),                 # conv(k=P, s=P), no bias
        "cls": w((1, WIDTH)),
        "pos": w((TOKENS, WIDTH)),
        "ln_pre_g": jnp.ones((1, WIDTH), jnp.float32),
        "ln_pre_b": jnp.zeros((1, WIDTH), jnp.float32),
        "ln1_g": jnp.ones((LAYERS, 1, WIDTH), jnp.float32),
        "ln1_b": jnp.zeros((LAYERS, 1, WIDTH), jnp.float32),
        "w_qkv": w((LAYERS, WIDTH, 3 * WIDTH)),
        "b_qkv": jnp.zeros((LAYERS, 1, 3 * WIDTH), jnp.float32),
        "w_o": w((LAYERS, WIDTH, WIDTH)),
        "b_o": jnp.zeros((LAYERS, 1, WIDTH), jnp.float32),
        "ln2_g": jnp.ones((LAYERS, 1, WIDTH), jnp.float32),
        "ln2_b": jnp.zeros((LAYERS, 1, WIDTH), jnp.float32),
        "w_fc": w((LAYERS, WIDTH, MLP_HIDDEN)),
        "b_fc": jnp.zeros((LAYERS, 1, MLP_HIDDEN), jnp.float32),
        "w_proj": w((LAYERS, MLP_HIDDEN, WIDTH)),
        "b_proj": jnp.zeros((LAYERS, 1, WIDTH), jnp.float32),
        "ln_post_g": jnp.ones((1, WIDTH), jnp.float32),
        "ln_post_b": jnp.zeros((1, WIDTH), jnp.float32),
        "w_proj_out": w((WIDTH, EMBED_DIM)),            # visual projection, no bias
    }


def pack_params(params):
    """Fold preprocessing + cls/pos, pre-split QKV per head, and pack every weight
    into two blobs so the kernel sees only 2 weight DMAs (plus the patch input)."""
    scale_c, bias_c = _folded_preprocess_constants()
    scale_row = jnp.tile(scale_c, PATCH * PATCH)        # patch rows laid out (p,p,c)
    bias_row = jnp.tile(bias_c, PATCH * PATCH)
    w_patch = params["w_patch_raw"] * scale_row[:, None]
    b_patch = (bias_row @ params["w_patch_raw"]).reshape(1, WIDTH)

    segs = {
        "w_patch": w_patch,
        "b_patch": b_patch,
        "cls_pos0": params["cls"] + params["pos"][0:1, :],
        "pos_patch": params["pos"][1:TOKENS, :],
        "ln_pre": jnp.concatenate([params["ln_pre_g"], params["ln_pre_b"]], axis=0),
        "ln_post": jnp.concatenate([params["ln_post_g"], params["ln_post_b"]], axis=0),
        "w_outT": params["w_proj_out"].T,
    }
    for l in range(LAYERS):
        segs[f"ln1_{l}"] = jnp.concatenate([params["ln1_g"][l], params["ln1_b"][l]], axis=0)
        segs[f"ln2_{l}"] = jnp.concatenate([params["ln2_g"][l], params["ln2_b"][l]], axis=0)
        # (W, 3W) -> (3W, W): row = which*W + head*Dh + d  (per-head row blocks)
        segs[f"wqkvT_{l}"] = params["w_qkv"][l].T
        bq = params["b_qkv"][l].reshape(3 * HEADS, HEAD_DIM)
        segs[f"bqkv_{l}"] = jnp.pad(bq, ((0, 0), (0, WIDTH - HEAD_DIM)))
        segs[f"w_attn_o_{l}"] = params["w_o"][l]
        segs[f"b_attn_o_{l}"] = params["b_o"][l]
        segs[f"w_mlp_proj_{l}"] = params["w_proj"][l]
        segs[f"b_mlp_proj_{l}"] = params["b_proj"][l]

    chunks = []
    off = 0
    for name, (o, r) in _W32_LAYOUT.items():
        arr = segs[name].astype(jnp.float32)
        assert o == off and arr.shape == (r, WIDTH), (name, arr.shape, (o, off, r))
        chunks.append(arr)
        off += r
    w32 = jnp.concatenate(chunks, axis=0)
    assert w32.shape == (_W32_ROWS, WIDTH)

    # Lane-dense (last dim 128) blob: w_fc rows [l*W:(l+1)*W], b_fc rows [2W + l].
    w128 = jnp.concatenate(
        [params["w_fc"][l] for l in range(LAYERS)]
        + [params["b_fc"][l] for l in range(LAYERS)], axis=0).astype(jnp.float32)
    return {"w32": w32, "w128": w128}


# ----------------------------- forward pass -----------------------------
@jax.jit
def clip_img_wrap_forward(image_nchw, packed):
    """image_nchw: (B, 3, IMG, IMG) float32, CIFAR-normalized (as the torch module expects)."""
    B, C, H, W = image_nchw.shape
    assert (B, C, H, W) == (BATCH, CHANNELS, IMG, IMG)
    gh, gw = H // PATCH, W // PATCH

    # conv(k=P, s=P, bias=False) as patch extraction (layout-only XLA op) + in-kernel GEMM.
    # TODO(synk): could be folded into the kernel with strided VMEM reads; at this size
    # it is a single fused copy before the pallas_call.
    patches = image_nchw.reshape(B, C, gh, PATCH, gw, PATCH)
    patches = patches.transpose(0, 2, 4, 3, 5, 1).reshape(B * gh * gw, PPC)

    vmem = pl.BlockSpec(memory_space=pltpu.MemorySpace.VMEM)
    feats = pl.pallas_call(
        _clip_encoder_kernel,
        out_shape=jax.ShapeDtypeStruct((BATCH, EMBED_DIM), jnp.float32),
        in_specs=[vmem, vmem, vmem],      # patches + 2 packed weight blobs = 3 DMAs
        out_specs=vmem,
    )(patches, packed["w32"], packed["w128"])
    return feats.astype(jnp.float32)      # .float() in torch


# ----------------------------- demo -----------------------------
if __name__ == "__main__":
    key = jax.random.PRNGKey(0)
    k_img, k_par = jax.random.split(key)
    image = jax.random.normal(k_img, (BATCH, CHANNELS, IMG, IMG), jnp.float32)
    params = init_params(k_par)
    packed = pack_params(params)          # one-time weight fold + pack (outside jit)

    feats = clip_img_wrap_forward(image, packed)
    feats = jax.block_until_ready(feats)

    assert feats.shape == (BATCH, EMBED_DIM)
    assert feats.dtype == jnp.float32
    assert bool(jnp.all(jnp.isfinite(feats)))
    print("KERNEL_OK")
</pallas_src>

<mosaic_0001>
module attributes {stable_mosaic.version = 11 : i64} {
  func.func @_clip_encoder_kernel(%arg0: memref<8x192xf32, #tpu.memory_space<vmem>>, %arg1: memref<766x32xf32, #tpu.memory_space<vmem>>, %arg2: memref<66x128xf32, #tpu.memory_space<vmem>>, %arg3: memref<2x16xf32, #tpu.memory_space<vmem>>) attributes {dimension_semantics = [], scalar_prefetch = 0 : i64, scratch_operands = 0 : i64, tpu.core_type = #tpu.core_type<tc>} {
    %c0 = arith.constant 0 : index
    %c0_0 = arith.constant 0 : index
    %0 = vector.load %arg0[%c0, %c0_0] : memref<8x192xf32, #tpu.memory_space<vmem>>, vector<8x192xf32>
    %c0_1 = arith.constant 0 : index
    %c0_2 = arith.constant 0 : index
    %1 = vector.load %arg1[%c0_1, %c0_2] : memref<766x32xf32, #tpu.memory_space<vmem>>, vector<192x32xf32>
    %cst = arith.constant dense<0.000000e+00> : vector<8x32xf32>
    %2 = tpu.matmul %0, %1, %cst {dimension_numbers = #tpu.dot_dimension_numbers<[1], [0], [0], [1], [0, 0, 1, 1], [], []>} : vector<8x192xf32>, vector<192x32xf32>, vector<8x32xf32> -> vector<8x32xf32>
    %c192 = arith.constant 192 : index
    %c0_3 = arith.constant 0 : index
    %3 = vector.load %arg1[%c192, %c0_3] : memref<766x32xf32, #tpu.memory_space<vmem>>, vector<1x32xf32>
    %4 = vector.broadcast %3 : vector<1x32xf32> to vector<8x32xf32>
    %5 = arith.addf %2, %4 : vector<8x32xf32>
    %c193 = arith.constant 193 : index
    %c0_4 = arith.constant 0 : index
    %6 = vector.load %arg1[%c193, %c0_4] : memref<766x32xf32, #tpu.memory_space<vmem>>, vector<1x32xf32>
    %c194 = arith.constant 194 : index
    %c0_5 = arith.constant 0 : index
    %7 = vector.load %arg1[%c194, %c0_5] : memref<766x32xf32, #tpu.memory_space<vmem>>, vector<4x32xf32>
    %8 = vector.extract_strided_slice %5 {offsets = [0, 0], sizes = [4, 32], strides = [1, 1]} : vector<8x32xf32> to vector<4x32xf32>
    %9 = arith.addf %8, %7 : vector<4x32xf32>
    %10 = vector.extract_strided_slice %5 {offsets = [4, 0], sizes = [4, 32], strides = [1, 1]} : vector<8x32xf32> to vector<4x32xf32>
    %11 = arith.addf %10, %7 : vector<4x32xf32>
    %12 = tpu.concatenate %6, %9, %6, %11 in 0 : vector<1x32xf32>, vector<4x32xf32>, vector<1x32xf32>, vector<4x32xf32> -> vector<10x32xf32>
    %c198 = arith.constant 198 : index
    %c0_6 = arith.constant 0 : index
    %13 = vector.load %arg1[%c198, %c0_6] : memref<766x32xf32, #tpu.memory_space<vmem>>, vector<2x32xf32>
    %cst_7 = arith.constant dense<0.000000e+00> : vector<10xf32>
    %14 = vector.multi_reduction <add>, %12, %cst_7 [1] : vector<10x32xf32> to vector<10xf32>
    %15 = vector.shape_cast %14 : vector<10xf32> to vector<10x1xf32>
    %cst_8 = arith.constant 3.200000e+01 : f32
    %16 = vector.broadcast %cst_8 : f32 to vector<10x1xf32>
    %17 = arith.divf %15, %16 : vector<10x1xf32>
    %18 = vector.broadcast %17 : vector<10x1xf32> to vector<10x32xf32>
    %19 = arith.subf %12, %18 : vector<10x32xf32>
    %20 = arith.mulf %19, %19 : vector<10x32xf32>
    %cst_9 = arith.constant dense<0.000000e+00> : vector<10xf32>
    %21 = vector.multi_reduction <add>, %20, %cst_9 [1] : vector<10x32xf32> to vector<10xf32>
    %22 = vector.shape_cast %21 : vector<10xf32> to vector<10x1xf32>
    %cst_10 = arith.constant 3.200000e+01 : f32
    %23 = vector.broadcast %cst_10 : f32 to vector<10x1xf32>
    %24 = arith.divf %22, %23 : vector<10x1xf32>
    %cst_11 = arith.constant 9.99999974E-6 : f32
    %25 = vector.broadcast %cst_11 : f32 to vector<10x1xf32>
    %26 = arith.addf %24, %25 : vector<10x1xf32>
    %27 = math.rsqrt %26 : vector<10x1xf32>
    %28 = vector.broadcast %27 : vector<10x1xf32> to vector<10x32xf32>
    %29 = arith.mulf %19, %28 : vector<10x32xf32>
    %30 = vector.extract_strided_slice %13 {offsets = [0, 0], sizes = [1, 32], strides = [1, 1]} : vector<2x32xf32> to vector<1x32xf32>
    %31 = vector.broadcast %30 : vector<1x32xf32> to vector<10x32xf32>
    %32 = arith.mulf %29, %31 : vector<10x32xf32>
    %33 = vector.extract_strided_slice %13 {offsets = [1, 0], sizes = [1, 32], strides = [1, 1]} : vector<2x32xf32> to vector<1x32xf32>
    %34 = vector.broadcast %33 : vector<1x32xf32> to vector<10x32xf32>
    %35 = arith.addf %32, %34 : vector<10x32xf32>
    %36 = tpu.iota {dimensions = array<i32: 0>} : vector<10x10xi32>
    %37 = tpu.iota {dimensions = array<i32: 1>} : vector<10x10xi32>
    %c0_i32 = arith.constant 0 : i32
    %38 = vector.broadcast %c0_i32 : i32 to vector<10x10xi32>
    %39 = arith.cmpi sge, %36, %38 : vector<10x10xi32>
    %c5_i32 = arith.constant 5 : i32
    %40 = vector.broadcast %c5_i32 : i32 to vector<10x10xi32>
    %41 = arith.cmpi slt, %36, %40 : vector<10x10xi32>
    %42 = arith.andi %39, %41 : vector<10x10xi1>
    %c0_i32_12 = arith.constant 0 : i32
    %43 = vector.broadcast %c0_i32_12 : i32 to vector<10x10xi32>
    %44 = arith.cmpi sge, %37, %43 : vector<10x10xi32>
    %c5_i32_13 = arith.constant 5 : i32
    %45 = vector.broadcast %c5_i32_13 : i32 to vector<10x10xi32>
    %46 = arith.cmpi slt, %37, %45 : vector<10x10xi32>
    %47 = arith.andi %44, %46 : vector<10x10xi1>
    %48 = arith.andi %42, %47 : vector<10x10xi1>
    %c5_i32_14 = arith.constant 5 : i32
    %49 = vector.broadcast %c5_i32_14 : i32 to vector<10x10xi32>
    %50 = arith.cmpi sge, %36, %49 : vector<10x10xi32>
    %c10_i32 = arith.constant 10 : i32
    %51 = vector.broadcast %c10_i32 : i32 to vector<10x10xi32>
    %52 = arith.cmpi slt, %36, %51 : vector<10x10xi32>
    %53 = arith.andi %50, %52 : vector<10x10xi1>
    %c5_i32_15 = arith.constant 5 : i32
    %54 = vector.broadcast %c5_i32_15 : i32 to vector<10x10xi32>
    %55 = arith.cmpi sge, %37, %54 : vector<10x10xi32>
    %c10_i32_16 = arith.constant 10 : i32
    %56 = vector.broadcast %c10_i32_16 : i32 to vector<10x10xi32>
    %57 = arith.cmpi slt, %37, %56 : vector<10x10xi32>
    %58 = arith.andi %55, %57 : vector<10x10xi1>
    %59 = arith.andi %53, %58 : vector<10x10xi1>
    %60 = arith.ori %48, %59 : vector<10x10xi1>
    %cst_17 = arith.constant 0.000000e+00 : f32
    %cst_18 = arith.constant -1.000000e+30 : f32
    %61 = vector.broadcast %cst_17 : f32 to vector<10x10xf32>
    %62 = vector.broadcast %cst_18 : f32 to vector<10x10xf32>
    %63 = arith.select %60, %61, %62 : vector<10x10xi1>, vector<10x10xf32>
    %c200 = arith.constant 200 : index
    %c0_19 = arith.constant 0 : index
    %64 = vector.load %arg1[%c200, %c0_19] : memref<766x32xf32, #tpu.memory_space<vmem>>, vector<2x32xf32>
    %cst_20 = arith.constant dense<0.000000e+00> : vector<10xf32>
    %65 = vector.multi_reduction <add>, %35, %cst_20 [1] : vector<10x32xf32> to vector<10xf32>
    %66 = vector.shape_cast %65 : vector<10xf32> to vector<10x1xf32>
    %cst_21 = arith.constant 3.200000e+01 : f32
    %67 = vector.broadcast %cst_21 : f32 to vector<10x1xf32>
    %68 = arith.divf %66, %67 : vector<10x1xf32>
    %69 = vector.broadcast %68 : vector<10x1xf32> to vector<10x32xf32>
    %70 = arith.subf %35, %69 : vector<10x32xf32>
    %71 = arith.mulf %70, %70 : vector<10x32xf32>
    %cst_22 = arith.constant dense<0.000000e+00> : vector<10xf32>
    %72 = vector.multi_reduction <add>, %71, %cst_22 [1] : vector<10x32xf32> to vector<10xf32>
    %73 = vector.shape_cast %72 : vector<10xf32> to vector<10x1xf32>
    %cst_23 = arith.constant 3.200000e+01 : f32
    %74 = vector.broadcast %cst_23 : f32 to vector<10x1xf32>
    %75 = arith.divf %73, %74 : vector<10x1xf32>
    %cst_24 = arith.constant 9.99999974E-6 : f32
    %76 = vector.broadcast %cst_24 : f32 to vector<10x1xf32>
    %77 = arith.addf %75, %76 : vector<10x1xf32>
    %78 = math.rsqrt %77 : vector<10x1xf32>
    %79 = vector.broadcast %78 : vector<10x1xf32> to vector<10x32xf32>
    %80 = arith.mulf %70, %79 : vector<10x32xf32>
    %81 = vector.extract_strided_slice %64 {offsets = [0, 0], sizes = [1, 32], strides = [1, 1]} : vector<2x32xf32> to vector<1x32xf32>
    %82 = vector.broadcast %81 : vector<1x32xf32> to vector<10x32xf32>
    %83 = arith.mulf %80, %82 : vector<10x32xf32>
    %84 = vector.extract_strided_slice %64 {offsets = [1, 0], sizes = [1, 32], strides = [1, 1]} : vector<2x32xf32> to vector<1x32xf32>
    %85 = vector.broadcast %84 : vector<1x32xf32> to vector<10x32xf32>
    %86 = arith.addf %83, %85 : vector<10x32xf32>
    %c202 = arith.constant 202 : index
    %c0_25 = arith.constant 0 : index
    %87 = vector.load %arg1[%c202, %c0_25] : memref<766x32xf32, #tpu.memory_space<vmem>>, vector<96x32xf32>
    %c298 = arith.constant 298 : index
    %c0_26 = arith.constant 0 : index
    %88 = vector.load %arg1[%c298, %c0_26] : memref<766x32xf32, #tpu.memory_space<vmem>>, vector<12x32xf32>
    %89 = vector.extract_strided_slice %87 {offsets = [0, 0], sizes = [8, 32], strides = [1, 1]} : vector<96x32xf32> to vector<8x32xf32>
    %cst_27 = arith.constant dense<0.000000e+00> : vector<10x8xf32>
    %90 = tpu.matmul %86, %89, %cst_27 {dimension_numbers = #tpu.dot_dimension_numbers<[1], [1], [0], [0], [0, 0, 1, 0], [], []>} : vector<10x32xf32>, vector<8x32xf32>, vector<10x8xf32> -> vector<10x8xf32>
    %91 = vector.extract_strided_slice %88 {offsets = [0, 0], sizes = [1, 8], strides = [1, 1]} : vector<12x32xf32> to vector<1x8xf32>
    %92 = vector.broadcast %91 : vector<1x8xf32> to vector<10x8xf32>
    %93 = arith.addf %90, %92 : vector<10x8xf32>
    %94 = vector.extract_strided_slice %87 {offsets = [32, 0], sizes = [8, 32], strides = [1, 1]} : vector<96x32xf32> to vector<8x32xf32>
    %cst_28 = arith.constant dense<0.000000e+00> : vector<10x8xf32>
    %95 = tpu.matmul %86, %94, %cst_28 {dimension_numbers = #tpu.dot_dimension_numbers<[1], [1], [0], [0], [0, 0, 1, 0], [], []>} : vector<10x32xf32>, vector<8x32xf32>, vector<10x8xf32> -> vector<10x8xf32>
    %96 = vector.extract_strided_slice %88 {offsets = [4, 0], sizes = [1, 8], strides = [1, 1]} : vector<12x32xf32> to vector<1x8xf32>
    %97 = vector.broadcast %96 : vector<1x8xf32> to vector<10x8xf32>
    %98 = arith.addf %95, %97 : vector<10x8xf32>
    %99 = vector.extract_strided_slice %87 {offsets = [64, 0], sizes = [8, 32], strides = [1, 1]} : vector<96x32xf32> to vector<8x32xf32>
    %cst_29 = arith.constant dense<0.000000e+00> : vector<10x8xf32>
    %100 = tpu.matmul %86, %99, %cst_29 {dimension_numbers = #tpu.dot_dimension_numbers<[1], [1], [0], [0], [0, 0, 1, 0], [], []>} : vector<10x32xf32>, vector<8x32xf32>, vector<10x8xf32> -> vector<10x8xf32>
    %101 = vector.extract_strided_slice %88 {offsets = [8, 0], sizes = [1, 8], strides = [1, 1]} : vector<12x32xf32> to vector<1x8xf32>
    %102 = vector.broadcast %101 : vector<1x8xf32> to vector<10x8xf32>
    %103 = arith.addf %100, %102 : vector<10x8xf32>
    %cst_30 = arith.constant dense<0.000000e+00> : vector<10x10xf32>
    %104 = tpu.matmul %93, %98, %cst_30 {dimension_numbers = #tpu.dot_dimension_numbers<[1], [1], [0], [0], [0, 0, 1, 0], [], []>} : vector<10x8xf32>, vector<10x8xf32>, vector<10x10xf32> -> vector<10x10xf32>
    %cst_31 = arith.constant 0.353553385 : f32
    %105 = vector.broadcast %cst_31 : f32 to vector<10x10xf32>
    %106 = arith.mulf %104, %105 : vector<10x10xf32>
    %107 = arith.addf %106, %63 : vector<10x10xf32>
    %cst_32 = arith.constant dense<0xFF800000> : vector<10xf32>
    %108 = vector.multi_reduction <maximumf>, %107, %cst_32 [1] : vector<10x10xf32> to vector<10xf32>
    %109 = vector.shape_cast %108 : vector<10xf32> to vector<10x1xf32>
    %110 = vector.broadcast %109 : vector<10x1xf32> to vector<10x10xf32>
    %111 = arith.subf %107, %110 : vector<10x10xf32>
    %112 = math.exp %111 : vector<10x10xf32>
    %cst_33 = arith.constant dense<0.000000e+00> : vector<10xf32>
    %113 = vector.multi_reduction <add>, %112, %cst_33 [1] : vector<10x10xf32> to vector<10xf32>
    %114 = vector.shape_cast %113 : vector<10xf32> to vector<10x1xf32>
    %115 = tpu.reciprocal %114 {approx = true} : vector<10x1xf32> -> vector<10x1xf32>
    %116 = vector.broadcast %115 : vector<10x1xf32> to vector<10x10xf32>
    %117 = arith.mulf %112, %116 : vector<10x10xf32>
    %cst_34 = arith.constant dense<0.000000e+00> : vector<10x8xf32>
    %118 = tpu.matmul %117, %103, %cst_34 {dimension_numbers = #tpu.dot_dimension_numbers<[1], [0], [0], [1], [0, 0, 1, 1], [], []>} : vector<10x10xf32>, vector<10x8xf32>, vector<10x8xf32> -> vector<10x8xf32>
    %119 = vector.extract_strided_slice %87 {offsets = [8, 0], sizes = [8, 32], strides = [1, 1]} : vector<96x32xf32> to vector<8x32xf32>
    %cst_35 = arith.constant dense<0.000000e+00> : vector<10x8xf32>
    %120 = tpu.matmul %86, %119, %cst_35 {dimension_numbers = #tpu.dot_dimension_numbers<[1], [1], [0], [0], [0, 0, 1, 0], [], []>} : vector<10x32xf32>, vector<8x32xf32>, vector<10x8xf32> -> vector<10x8xf32>
    %121 = vector.extract_strided_slice %88 {offsets = [1, 0], sizes = [1, 8], strides = [1, 1]} : vector<12x32xf32> to vector<1x8xf32>
    %122 = vector.broadcast %121 : vector<1x8xf32> to vector<10x8xf32>
    %123 = arith.addf %120, %122 : vector<10x8xf32>
    %124 = vector.extract_strided_slice %87 {offsets = [40, 0], sizes = [8, 32], strides = [1, 1]} : vector<96x32xf32> to vector<8x32xf32>
    %cst_36 = arith.constant dense<0.000000e+00> : vector<10x8xf32>
    %125 = tpu.matmul %86, %124, %cst_36 {dimension_numbers = #tpu.dot_dimension_numbers<[1], [1], [0], [0], [0, 0, 1, 0], [], []>} : vector<10x32xf32>, vector<8x32xf32>, vector<10x8xf32> -> vector<10x8xf32>
    %126 = vector.extract_strided_slice %88 {offsets = [5, 0], sizes = [1, 8], strides = [1, 1]} : vector<12x32xf32> to vector<1x8xf32>
    %127 = vector.broadcast %126 : vector<1x8xf32> to vector<10x8xf32>
    %128 = arith.addf %125, %127 : vector<10x8xf32>
    %129 = vector.extract_strided_slice %87 {offsets = [72, 0], sizes = [8, 32], strides = [1, 1]} : vector<96x32xf32> to vector<8x32xf32>
    %cst_37 = arith.constant dense<0.000000e+00> : vector<10x8xf32>
    %130 = tpu.matmul %86, %129, %cst_37 {dimension_numbers = #tpu.dot_dimension_numbers<[1], [1], [0], [0], [0, 0, 1, 0], [], []>} : vector<10x32xf32>, vector<8x32xf32>, vector<10x8xf32> -> vector<10x8xf32>
    %131 = vector.extract_strided_slice %88 {offsets = [9, 0], sizes = [1, 8], strides = [1, 1]} : vector<12x32xf32> to vector<1x8xf32>
    %132 = vector.broadcast %131 : vector<1x8xf32> to vector<10x8xf32>
    %133 = arith.addf %130, %132 : vector<10x8xf32>
    %cst_38 = arith.constant dense<0.000000e+00> : vector<10x10xf32>
    %134 = tpu.matmul %123, %128, %cst_38 {dimension_numbers = #tpu.dot_dimension_numbers<[1], [1], [0], [0], [0, 0, 1, 0], [], []>} : vector<10x8xf32>, vector<10x8xf32>, vector<10x10xf32> -> vector<10x10xf32>
    %cst_39 = arith.constant 0.353553385 : f32
    %135 = vector.broadcast %cst_39 : f32 to vector<10x10xf32>
    %136 = arith.mulf %134, %135 : vector<10x10xf32>
    %137 = arith.addf %136, %63 : vector<10x10xf32>
    %cst_40 = arith.constant dense<0xFF800000> : vector<10xf32>
    %138 = vector.multi_reduction <maximumf>, %137, %cst_40 [1] : vector<10x10xf32> to vector<10xf32>
    %139 = vector.shape_cast %138 : vector<10xf32> to vector<10x1xf32>
    %140 = vector.broadcast %139 : vector<10x1xf32> to vector<10x10xf32>
    %141 = arith.subf %137, %140 : vector<10x10xf32>
    %142 = math.exp %141 : vector<10x10xf32>
    %cst_41 = arith.constant dense<0.000000e+00> : vector<10xf32>
    %143 = vector.multi_reduction <add>, %142, %cst_41 [1] : vector<10x10xf32> to vector<10xf32>
    %144 = vector.shape_cast %143 : vector<10xf32> to vector<10x1xf32>
    %145 = tpu.reciprocal %144 {approx = true} : vector<10x1xf32> -> vector<10x1xf32>
    %146 = vector.broadcast %145 : vector<10x1xf32> to vector<10x10xf32>
    %147 = arith.mulf %142, %146 : vector<10x10xf32>
    %cst_42 = arith.constant dense<0.000000e+00> : vector<10x8xf32>
    %148 = tpu.matmul %147, %133, %cst_42 {dimension_numbers = #tpu.dot_dimension_numbers<[1], [0], [0], [1], [0, 0, 1, 1], [], []>} : vector<10x10xf32>, vector<10x8xf32>, vector<10x8xf32> -> vector<10x8xf32>
    %149 = vector.extract_strided_slice %87 {offsets = [16, 0], sizes = [8, 32], strides = [1, 1]} : vector<96x32xf32> to vector<8x32xf32>
    %cst_43 = arith.constant dense<0.000000e+00> : vector<10x8xf32>
    %150 = tpu.matmul %86, %149, %cst_43 {dimension_numbers = #tpu.dot_dimension_numbers<[1], [1], [0], [0], [0, 0, 1, 0], [], []>} : vector<10x32xf32>, vector<8x32xf32>, vector<10x8xf32> -> vector<10x8xf32>
    %151 = vector.extract_strided_slice %88 {offsets = [2, 0], sizes = [1, 8], strides = [1, 1]} : vector<12x32xf32> to vector<1x8xf32>
    %152 = vector.broadcast %151 : vector<1x8xf32> to vector<10x8xf32>
    %153 = arith.addf %150, %152 : vector<10x8xf32>
    %154 = vector.extract_strided_slice %87 {offsets = [48, 0], sizes = [8, 32], strides = [1, 1]} : vector<96x32xf32> to vector<8x32xf32>
    %cst_44 = arith.constant dense<0.000000e+00> : vector<10x8xf32>
    %155 = tpu.matmul %86, %154, %cst_44 {dimension_numbers = #tpu.dot_dimension_numbers<[1], [1], [0], [0], [0, 0, 1, 0], [], []>} : vector<10x32xf32>, vector<8x32xf32>, vector<10x8xf32> -> vector<10x8xf32>
    %156 = vector.extract_strided_slice %88 {offsets = [6, 0], sizes = [1, 8], strides = [1, 1]} : vector<12x32xf32> to vector<1x8xf32>
    %157 = vector.broadcast %156 : vector<1x8xf32> to vector<10x8xf32>
    %158 = arith.addf %155, %157 : vector<10x8xf32>
    %159 = vector.extract_strided_slice %87 {offsets = [80, 0], sizes = [8, 32], strides = [1, 1]} : vector<96x32xf32> to vector<8x32xf32>
    %cst_45 = arith.constant dense<0.000000e+00> : vector<10x8xf32>
    %160 = tpu.matmul %86, %159, %cst_45 {dimension_numbers = #tpu.dot_dimension_numbers<[1], [1], [0], [0], [0, 0, 1, 0], [], []>} : vector<10x32xf32>, vector<8x32xf32>, vector<10x8xf32> -> vector<10x8xf32>
    %161 = vector.extract_strided_slice %88 {offsets = [10, 0], sizes = [1, 8], strides = [1, 1]} : vector<12x32xf32> to vector<1x8xf32>
    %162 = vector.broadcast %161 : vector<1x8xf32> to vector<10x8xf32>
    %163 = arith.addf %160, %162 : vector<10x8xf32>
    %cst_46 = arith.constant dense<0.000000e+00> : vector<10x10xf32>
    %164 = tpu.matmul %153, %158, %cst_46 {dimension_numbers = #tpu.dot_dimension_numbers<[1], [1], [0], [0], [0, 0, 1, 0], [], []>} : vector<10x8xf32>, vector<10x8xf32>, vector<10x10xf32> -> vector<10x10xf32>
    %cst_47 = arith.constant 0.353553385 : f32
    %165 = vector.broadcast %cst_47 : f32 to vector<10x10xf32>
    %166 = arith.mulf %164, %165 : vector<10x10xf32>
    %167 = arith.addf %166, %63 : vector<10x10xf32>
    %cst_48 = arith.constant dense<0xFF800000> : vector<10xf32>
    %168 = vector.multi_reduction <maximumf>, %167, %cst_48 [1] : vector<10x10xf32> to vector<10xf32>
    %169 = vector.shape_cast %168 : vector<10xf32> to vector<10x1xf32>
    %170 = vector.broadcast %169 : vector<10x1xf32> to vector<10x10xf32>
    %171 = arith.subf %167, %170 : vector<10x10xf32>
    %172 = math.exp %171 : vector<10x10xf32>
    %cst_49 = arith.constant dense<0.000000e+00> : vector<10xf32>
    %173 = vector.multi_reduction <add>, %172, %cst_49 [1] : vector<10x10xf32> to vector<10xf32>
    %174 = vector.shape_cast %173 : vector<10xf32> to vector<10x1xf32>
    %175 = tpu.reciprocal %174 {approx = true} : vector<10x1xf32> -> vector<10x1xf32>
    %176 = vector.broadcast %175 : vector<10x1xf32> to vector<10x10xf32>
    %177 = arith.mulf %172, %176 : vector<10x10xf32>
    %cst_50 = arith.constant dense<0.000000e+00> : vector<10x8xf32>
    %178 = tpu.matmul %177, %163, %cst_50 {dimension_numbers = #tpu.dot_dimension_numbers<[1], [0], [0], [1], [0, 0, 1, 1], [], []>} : vector<10x10xf32>, vector<10x8xf32>, vector<10x8xf32> -> vector<10x8xf32>
    %179 = vector.extract_strided_slice %87 {offsets = [24, 0], sizes = [8, 32], strides = [1, 1]} : vector<96x32xf32> to vector<8x32xf32>
    %cst_51 = arith.constant dense<0.000000e+00> : vector<10x8xf32>
    %180 = tpu.matmul %86, %179, %cst_51 {dimension_numbers = #tpu.dot_dimension_numbers<[1], [1], [0], [0], [0, 0, 1, 0], [], []>} : vector<10x32xf32>, vector<8x32xf32>, vector<10x8xf32> -> vector<10x8xf32>
    %181 = vector.extract_strided_slice %88 {offsets = [3, 0], sizes = [1, 8], strides = [1, 1]} : vector<12x32xf32> to vector<1x8xf32>
    %182 = vector.broadcast %181 : vector<1x8xf32> to vector<10x8xf32>
    %183 = arith.addf %180, %182 : vector<10x8xf32>
    %184 = vector.extract_strided_slice %87 {offsets = [56, 0], sizes = [8, 32], strides = [1, 1]} : vector<96x32xf32> to vector<8x32xf32>
    %cst_52 = arith.constant dense<0.000000e+00> : vector<10x8xf32>
    %185 = tpu.matmul %86, %184, %cst_52 {dimension_numbers = #tpu.dot_dimension_numbers<[1], [1], [0], [0], [0, 0, 1, 0], [], []>} : vector<10x32xf32>, vector<8x32xf32>, vector<10x8xf32> -> vector<10x8xf32>
    %186 = vector.extract_strided_slice %88 {offsets = [7, 0], sizes = [1, 8], strides = [1, 1]} : vector<12x32xf32> to vector<1x8xf32>
    %187 = vector.broadcast %186 : vector<1x8xf32> to vector<10x8xf32>
    %188 = arith.addf %185, %187 : vector<10x8xf32>
    %189 = vector.extract_strided_slice %87 {offsets = [88, 0], sizes = [8, 32], strides = [1, 1]} : vector<96x32xf32> to vector<8x32xf32>
    %cst_53 = arith.constant dense<0.000000e+00> : vector<10x8xf32>
    %190 = tpu.matmul %86, %189, %cst_53 {dimension_numbers = #tpu.dot_dimension_numbers<[1], [1], [0], [0], [0, 0, 1, 0], [], []>} : vector<10x32xf32>, vector<8x32xf32>, vector<10x8xf32> -> vector<10x8xf32>
    %191 = vector.extract_strided_slice %88 {offsets = [11, 0], sizes = [1, 8], strides = [1, 1]} : vector<12x32xf32> to vector<1x8xf32>
    %192 = vector.broadcast %191 : vector<1x8xf32> to vector<10x8xf32>
    %193 = arith.addf %190, %192 : vector<10x8xf32>
    %cst_54 = arith.constant dense<0.000000e+00> : vector<10x10xf32>
    %194 = tpu.matmul %183, %188, %cst_54 {dimension_numbers = #tpu.dot_dimension_numbers<[1], [1], [0], [0], [0, 0, 1, 0], [], []>} : vector<10x8xf32>, vector<10x8xf32>, vector<10x10xf32> -> vector<10x10xf32>
    %cst_55 = arith.constant 0.353553385 : f32
    %195 = vector.broadcast %cst_55 : f32 to vector<10x10xf32>
    %196 = arith.mulf %194, %195 : vector<10x10xf32>
    %197 = arith.addf %196, %63 : vector<10x10xf32>
    %cst_56 = arith.constant dense<0xFF800000> : vector<10xf32>
    %198 = vector.multi_reduction <maximumf>, %197, %cst_56 [1] : vector<10x10xf32> to vector<10xf32>
    %199 = vector.shape_cast %198 : vector<10xf32> to vector<10x1xf32>
    %200 = vector.broadcast %199 : vector<10x1xf32> to vector<10x10xf32>
    %201 = arith.subf %197, %200 : vector<10x10xf32>
    %202 = math.exp %201 : vector<10x10xf32>
    %cst_57 = arith.constant dense<0.000000e+00> : vector<10xf32>
    %203 = vector.multi_reduction <add>, %202, %cst_57 [1] : vector<10x10xf32> to vector<10xf32>
    %204 = vector.shape_cast %203 : vector<10xf32> to vector<10x1xf32>
    %205 = tpu.reciprocal %204 {approx = true} : vector<10x1xf32> -> vector<10x1xf32>
    %206 = vector.broadcast %205 : vector<10x1xf32> to vector<10x10xf32>
    %207 = arith.mulf %202, %206 : vector<10x10xf32>
    %cst_58 = arith.constant dense<0.000000e+00> : vector<10x8xf32>
    %208 = tpu.matmul %207, %193, %cst_58 {dimension_numbers = #tpu.dot_dimension_numbers<[1], [0], [0], [1], [0, 0, 1, 1], [], []>} : vector<10x10xf32>, vector<10x8xf32>, vector<10x8xf32> -> vector<10x8xf32>
    %209 = tpu.concatenate %118, %148, %178, %208 in 1 : vector<10x8xf32>, vector<10x8xf32>, vector<10x8xf32>, vector<10x8xf32> -> vector<10x32xf32>
    %c310 = arith.constant 310 : index
    %c0_59 = arith.constant 0 : index
    %210 = vector.load %arg1[%c310, %c0_59] : memref<766x32xf32, #tpu.memory_space<vmem>>, vector<32x32xf32>
    %cst_60 = arith.constant dense<0.000000e+00> : vector<10x32xf32>
    %211 = tpu.matmul %209, %210, %cst_60 {dimension_numbers = #tpu.dot_dimension_numbers<[1], [0], [0], [1], [0, 0, 1, 1], [], []>} : vector<10x32xf32>, vector<32x32xf32>, vector<10x32xf32> -> vector<10x32xf32>
    %212 = arith.addf %35, %211 : vector<10x32xf32>
    %c342 = arith.constant 342 : index
    %c0_61 = arith.constant 0 : index
    %213 = vector.load %arg1[%c342, %c0_61] : memref<766x32xf32, #tpu.memory_space<vmem>>, vector<1x32xf32>
    %214 = vector.broadcast %213 : vector<1x32xf32> to vector<10x32xf32>
    %215 = arith.addf %212, %214 : vector<10x32xf32>
    %c343 = arith.constant 343 : index
    %c0_62 = arith.constant 0 : index
    %216 = vector.load %arg1[%c343, %c0_62] : memref<766x32xf32, #tpu.memory_space<vmem>>, vector<2x32xf32>
    %cst_63 = arith.constant dense<0.000000e+00> : vector<10xf32>
    %217 = vector.multi_reduction <add>, %215, %cst_63 [1] : vector<10x32xf32> to vector<10xf32>
    %218 = vector.shape_cast %217 : vector<10xf32> to vector<10x1xf32>
    %cst_64 = arith.constant 3.200000e+01 : f32
    %219 = vector.broadcast %cst_64 : f32 to vector<10x1xf32>
    %220 = arith.divf %218, %219 : vector<10x1xf32>
    %221 = vector.broadcast %220 : vector<10x1xf32> to vector<10x32xf32>
    %222 = arith.subf %215, %221 : vector<10x32xf32>
    %223 = arith.mulf %222, %222 : vector<10x32xf32>
    %cst_65 = arith.constant dense<0.000000e+00> : vector<10xf32>
    %224 = vector.multi_reduction <add>, %223, %cst_65 [1] : vector<10x32xf32> to vector<10xf32>
    %225 = vector.shape_cast %224 : vector<10xf32> to vector<10x1xf32>
    %cst_66 = arith.constant 3.200000e+01 : f32
    %226 = vector.broadcast %cst_66 : f32 to vector<10x1xf32>
    %227 = arith.divf %225, %226 : vector<10x1xf32>
    %cst_67 = arith.constant 9.99999974E-6 : f32
    %228 = vector.broadcast %cst_67 : f32 to vector<10x1xf32>
    %229 = arith.addf %227, %228 : vector<10x1xf32>
    %230 = math.rsqrt %229 : vector<10x1xf32>
    %231 = vector.broadcast %230 : vector<10x1xf32> to vector<10x32xf32>
    %232 = arith.mulf %222, %231 : vector<10x32xf32>
    %233 = vector.extract_strided_slice %216 {offsets = [0, 0], sizes = [1, 32], strides = [1, 1]} : vector<2x32xf32> to vector<1x32xf32>
    %234 = vector.broadcast %233 : vector<1x32xf32> to vector<10x32xf32>
    %235 = arith.mulf %232, %234 : vector<10x32xf32>
    %236 = vector.extract_strided_slice %216 {offsets = [1, 0], sizes = [1, 32], strides = [1, 1]} : vector<2x32xf32> to vector<1x32xf32>
    %237 = vector.broadcast %236 : vector<1x32xf32> to vector<10x32xf32>
    %238 = arith.addf %235, %237 : vector<10x32xf32>
    %c0_68 = arith.constant 0 : index
    %c0_69 = arith.constant 0 : index
    %239 = vector.load %arg2[%c0_68, %c0_69] : memref<66x128xf32, #tpu.memory_space<vmem>>, vector<32x128xf32>
    %c64 = arith.constant 64 : index
    %c0_70 = arith.constant 0 : index
    %240 = vector.load %arg2[%c64, %c0_70] : memref<66x128xf32, #tpu.memory_space<vmem>>, vector<1x128xf32>
    %cst_71 = arith.constant dense<0.000000e+00> : vector<10x128xf32>
    %241 = tpu.matmul %238, %239, %cst_71 {dimension_numbers = #tpu.dot_dimension_numbers<[1], [0], [0], [1], [0, 0, 1, 1], [], []>} : vector<10x32xf32>, vector<32x128xf32>, vector<10x128xf32> -> vector<10x128xf32>
    %242 = vector.broadcast %240 : vector<1x128xf32> to vector<10x128xf32>
    %243 = arith.addf %241, %242 : vector<10x128xf32>
    %cst_72 = arith.constant 1.702000e+00 : f32
    %244 = vector.broadcast %cst_72 : f32 to vector<10x128xf32>
    %245 = arith.mulf %244, %243 : vector<10x128xf32>
    %246 = arith.negf %245 : vector<10x128xf32>
    %247 = math.exp %246 : vector<10x128xf32>
    %cst_73 = arith.constant 1.000000e+00 : f32
    %248 = vector.broadcast %cst_73 : f32 to vector<10x128xf32>
    %249 = arith.addf %248, %247 : vector<10x128xf32>
    %250 = arith.divf %248, %249 : vector<10x128xf32>
    %251 = arith.mulf %243, %250 : vector<10x128xf32>
    %c345 = arith.constant 345 : index
    %c0_74 = arith.constant 0 : index
    %252 = vector.load %arg1[%c345, %c0_74] : memref<766x32xf32, #tpu.memory_space<vmem>>, vector<128x32xf32>
    %cst_75 = arith.constant dense<0.000000e+00> : vector<10x32xf32>
    %253 = tpu.matmul %251, %252, %cst_75 {dimension_numbers = #tpu.dot_dimension_numbers<[1], [0], [0], [1], [0, 0, 1, 1], [], []>} : vector<10x128xf32>, vector<128x32xf32>, vector<10x32xf32> -> vector<10x32xf32>
    %254 = arith.addf %215, %253 : vector<10x32xf32>
    %c473 = arith.constant 473 : index
    %c0_76 = arith.constant 0 : index
    %255 = vector.load %arg1[%c473, %c0_76] : memref<766x32xf32, #tpu.memory_space<vmem>>, vector<1x32xf32>
    %256 = vector.broadcast %255 : vector<1x32xf32> to vector<10x32xf32>
    %257 = arith.addf %254, %256 : vector<10x32xf32>
    %c474 = arith.constant 474 : index
    %c0_77 = arith.constant 0 : index
    %258 = vector.load %arg1[%c474, %c0_77] : memref<766x32xf32, #tpu.memory_space<vmem>>, vector<2x32xf32>
    %cst_78 = arith.constant dense<0.000000e+00> : vector<10xf32>
    %259 = vector.multi_reduction <add>, %257, %cst_78 [1] : vector<10x32xf32> to vector<10xf32>
    %260 = vector.shape_cast %259 : vector<10xf32> to vector<10x1xf32>
    %cst_79 = arith.constant 3.200000e+01 : f32
    %261 = vector.broadcast %cst_79 : f32 to vector<10x1xf32>
    %262 = arith.divf %260, %261 : vector<10x1xf32>
    %263 = vector.broadcast %262 : vector<10x1xf32> to vector<10x32xf32>
    %264 = arith.subf %257, %263 : vector<10x32xf32>
    %265 = arith.mulf %264, %264 : vector<10x32xf32>
    %cst_80 = arith.constant dense<0.000000e+00> : vector<10xf32>
    %266 = vector.multi_reduction <add>, %265, %cst_80 [1] : vector<10x32xf32> to vector<10xf32>
    %267 = vector.shape_cast %266 : vector<10xf32> to vector<10x1xf32>
    %cst_81 = arith.constant 3.200000e+01 : f32
    %268 = vector.broadcast %cst_81 : f32 to vector<10x1xf32>
    %269 = arith.divf %267, %268 : vector<10x1xf32>
    %cst_82 = arith.constant 9.99999974E-6 : f32
    %270 = vector.broadcast %cst_82 : f32 to vector<10x1xf32>
    %271 = arith.addf %269, %270 : vector<10x1xf32>
    %272 = math.rsqrt %271 : vector<10x1xf32>
    %273 = vector.broadcast %272 : vector<10x1xf32> to vector<10x32xf32>
    %274 = arith.mulf %264, %273 : vector<10x32xf32>
    %275 = vector.extract_strided_slice %258 {offsets = [0, 0], sizes = [1, 32], strides = [1, 1]} : vector<2x32xf32> to vector<1x32xf32>
    %276 = vector.broadcast %275 : vector<1x32xf32> to vector<10x32xf32>
    %277 = arith.mulf %274, %276 : vector<10x32xf32>
    %278 = vector.extract_strided_slice %258 {offsets = [1, 0], sizes = [1, 32], strides = [1, 1]} : vector<2x32xf32> to vector<1x32xf32>
    %279 = vector.broadcast %278 : vector<1x32xf32> to vector<10x32xf32>
    %280 = arith.addf %277, %279 : vector<10x32xf32>
    %c476 = arith.constant 476 : index
    %c0_83 = arith.constant 0 : index
    %281 = vector.load %arg1[%c476, %c0_83] : memref<766x32xf32, #tpu.memory_space<vmem>>, vector<96x32xf32>
    %c572 = arith.constant 572 : index
    %c0_84 = arith.constant 0 : index
    %282 = vector.load %arg1[%c572, %c0_84] : memref<766x32xf32, #tpu.memory_space<vmem>>, vector<12x32xf32>
    %283 = vector.extract_strided_slice %281 {offsets = [0, 0], sizes = [8, 32], strides = [1, 1]} : vector<96x32xf32> to vector<8x32xf32>
    %cst_85 = arith.constant dense<0.000000e+00> : vector<10x8xf32>
    %284 = tpu.matmul %280, %283, %cst_85 {dimension_numbers = #tpu.dot_dimension_numbers<[1], [1], [0], [0], [0, 0, 1, 0], [], []>} : vector<10x32xf32>, vector<8x32xf32>, vector<10x8xf32> -> vector<10x8xf32>
    %285 = vector.extract_strided_slice %282 {offsets = [0, 0], sizes = [1, 8], strides = [1, 1]} : vector<12x32xf32> to vector<1x8xf32>
    %286 = vector.broadcast %285 : vector<1x8xf32> to vector<10x8xf32>
    %287 = arith.addf %284, %286 : vector<10x8xf32>
    %288 = vector.extract_strided_slice %281 {offsets = [32, 0], sizes = [8, 32], strides = [1, 1]} : vector<96x32xf32> to vector<8x32xf32>
    %cst_86 = arith.constant dense<0.000000e+00> : vector<10x8xf32>
    %289 = tpu.matmul %280, %288, %cst_86 {dimension_numbers = #tpu.dot_dimension_numbers<[1], [1], [0], [0], [0, 0, 1, 0], [], []>} : vector<10x32xf32>, vector<8x32xf32>, vector<10x8xf32> -> vector<10x8xf32>
    %290 = vector.extract_strided_slice %282 {offsets = [4, 0], sizes = [1, 8], strides = [1, 1]} : vector<12x32xf32> to vector<1x8xf32>
    %291 = vector.broadcast %290 : vector<1x8xf32> to vector<10x8xf32>
    %292 = arith.addf %289, %291 : vector<10x8xf32>
    %293 = vector.extract_strided_slice %281 {offsets = [64, 0], sizes = [8, 32], strides = [1, 1]} : vector<96x32xf32> to vector<8x32xf32>
    %cst_87 = arith.constant dense<0.000000e+00> : vector<10x8xf32>
    %294 = tpu.matmul %280, %293, %cst_87 {dimension_numbers = #tpu.dot_dimension_numbers<[1], [1], [0], [0], [0, 0, 1, 0], [], []>} : vector<10x32xf32>, vector<8x32xf32>, vector<10x8xf32> -> vector<10x8xf32>
    %295 = vector.extract_strided_slice %282 {offsets = [8, 0], sizes = [1, 8], strides = [1, 1]} : vector<12x32xf32> to vector<1x8xf32>
    %296 = vector.broadcast %295 : vector<1x8xf32> to vector<10x8xf32>
    %297 = arith.addf %294, %296 : vector<10x8xf32>
    %cst_88 = arith.constant dense<0.000000e+00> : vector<10x10xf32>
    %298 = tpu.matmul %287, %292, %cst_88 {dimension_numbers = #tpu.dot_dimension_numbers<[1], [1], [0], [0], [0, 0, 1, 0], [], []>} : vector<10x8xf32>, vector<10x8xf32>, vector<10x10xf32> -> vector<10x10xf32>
    %cst_89 = arith.constant 0.353553385 : f32
    %299 = vector.broadcast %cst_89 : f32 to vector<10x10xf32>
    %300 = arith.mulf %298, %299 : vector<10x10xf32>
    %301 = arith.addf %300, %63 : vector<10x10xf32>
    %cst_90 = arith.constant dense<0xFF800000> : vector<10xf32>
    %302 = vector.multi_reduction <maximumf>, %301, %cst_90 [1] : vector<10x10xf32> to vector<10xf32>
    %303 = vector.shape_cast %302 : vector<10xf32> to vector<10x1xf32>
    %304 = vector.broadcast %303 : vector<10x1xf32> to vector<10x10xf32>
    %305 = arith.subf %301, %304 : vector<10x10xf32>
    %306 = math.exp %305 : vector<10x10xf32>
    %cst_91 = arith.constant dense<0.000000e+00> : vector<10xf32>
    %307 = vector.multi_reduction <add>, %306, %cst_91 [1] : vector<10x10xf32> to vector<10xf32>
    %308 = vector.shape_cast %307 : vector<10xf32> to vector<10x1xf32>
    %309 = tpu.reciprocal %308 {approx = true} : vector<10x1xf32> -> vector<10x1xf32>
    %310 = vector.broadcast %309 : vector<10x1xf32> to vector<10x10xf32>
    %311 = arith.mulf %306, %310 : vector<10x10xf32>
    %cst_92 = arith.constant dense<0.000000e+00> : vector<10x8xf32>
    %312 = tpu.matmul %311, %297, %cst_92 {dimension_numbers = #tpu.dot_dimension_numbers<[1], [0], [0], [1], [0, 0, 1, 1], [], []>} : vector<10x10xf32>, vector<10x8xf32>, vector<10x8xf32> -> vector<10x8xf32>
    %313 = vector.extract_strided_slice %281 {offsets = [8, 0], sizes = [8, 32], strides = [1, 1]} : vector<96x32xf32> to vector<8x32xf32>
    %cst_93 = arith.constant dense<0.000000e+00> : vector<10x8xf32>
    %314 = tpu.matmul %280, %313, %cst_93 {dimension_numbers = #tpu.dot_dimension_numbers<[1], [1], [0], [0], [0, 0, 1, 0], [], []>} : vector<10x32xf32>, vector<8x32xf32>, vector<10x8xf32> -> vector<10x8xf32>
    %315 = vector.extract_strided_slice %282 {offsets = [1, 0], sizes = [1, 8], strides = [1, 1]} : vector<12x32xf32> to vector<1x8xf32>
    %316 = vector.broadcast %315 : vector<1x8xf32> to vector<10x8xf32>
    %317 = arith.addf %314, %316 : vector<10x8xf32>
    %318 = vector.extract_strided_slice %281 {offsets = [40, 0], sizes = [8, 32], strides = [1, 1]} : vector<96x32xf32> to vector<8x32xf32>
    %cst_94 = arith.constant dense<0.000000e+00> : vector<10x8xf32>
    %319 = tpu.matmul %280, %318, %cst_94 {dimension_numbers = #tpu.dot_dimension_numbers<[1], [1], [0], [0], [0, 0, 1, 0], [], []>} : vector<10x32xf32>, vector<8x32xf32>, vector<10x8xf32> -> vector<10x8xf32>
    %320 = vector.extract_strided_slice %282 {offsets = [5, 0], sizes = [1, 8], strides = [1, 1]} : vector<12x32xf32> to vector<1x8xf32>
    %321 = vector.broadcast %320 : vector<1x8xf32> to vector<10x8xf32>
    %322 = arith.addf %319, %321 : vector<10x8xf32>
    %323 = vector.extract_strided_slice %281 {offsets = [72, 0], sizes = [8, 32], strides = [1, 1]} : vector<96x32xf32> to vector<8x32xf32>
    %cst_95 = arith.constant dense<0.000000e+00> : vector<10x8xf32>
    %324 = tpu.matmul %280, %323, %cst_95 {dimension_numbers = #tpu.dot_dimension_numbers<[1], [1], [0], [0], [0, 0, 1, 0], [], []>} : vector<10x32xf32>, vector<8x32xf32>, vector<10x8xf32> -> vector<10x8xf32>
    %325 = vector.extract_strided_slice %282 {offsets = [9, 0], sizes = [1, 8], strides = [1, 1]} : vector<12x32xf32> to vector<1x8xf32>
    %326 = vector.broadcast %325 : vector<1x8xf32> to vector<10x8xf32>
    %327 = arith.addf %324, %326 : vector<10x8xf32>
    %cst_96 = arith.constant dense<0.000000e+00> : vector<10x10xf32>
    %328 = tpu.matmul %317, %322, %cst_96 {dimension_numbers = #tpu.dot_dimension_numbers<[1], [1], [0], [0], [0, 0, 1, 0], [], []>} : vector<10x8xf32>, vector<10x8xf32>, vector<10x10xf32> -> vector<10x10xf32>
    %cst_97 = arith.constant 0.353553385 : f32
    %329 = vector.broadcast %cst_97 : f32 to vector<10x10xf32>
    %330 = arith.mulf %328, %329 : vector<10x10xf32>
    %331 = arith.addf %330, %63 : vector<10x10xf32>
    %cst_98 = arith.constant dense<0xFF800000> : vector<10xf32>
    %332 = vector.multi_reduction <maximumf>, %331, %cst_98 [1] : vector<10x10xf32> to vector<10xf32>
    %333 = vector.shape_cast %332 : vector<10xf32> to vector<10x1xf32>
    %334 = vector.broadcast %333 : vector<10x1xf32> to vector<10x10xf32>
    %335 = arith.subf %331, %334 : vector<10x10xf32>
    %336 = math.exp %335 : vector<10x10xf32>
    %cst_99 = arith.constant dense<0.000000e+00> : vector<10xf32>
    %337 = vector.multi_reduction <add>, %336, %cst_99 [1] : vector<10x10xf32> to vector<10xf32>
    %338 = vector.shape_cast %337 : vector<10xf32> to vector<10x1xf32>
    %339 = tpu.reciprocal %338 {approx = true} : vector<10x1xf32> -> vector<10x1xf32>
    %340 = vector.broadcast %339 : vector<10x1xf32> to vector<10x10xf32>
    %341 = arith.mulf %336, %340 : vector<10x10xf32>
    %cst_100 = arith.constant dense<0.000000e+00> : vector<10x8xf32>
    %342 = tpu.matmul %341, %327, %cst_100 {dimension_numbers = #tpu.dot_dimension_numbers<[1], [0], [0], [1], [0, 0, 1, 1], [], []>} : vector<10x10xf32>, vector<10x8xf32>, vector<10x8xf32> -> vector<10x8xf32>
    %343 = vector.extract_strided_slice %281 {offsets = [16, 0], sizes = [8, 32], strides = [1, 1]} : vector<96x32xf32> to vector<8x32xf32>
    %cst_101 = arith.constant dense<0.000000e+00> : vector<10x8xf32>
    %344 = tpu.matmul %280, %343, %cst_101 {dimension_numbers = #tpu.dot_dimension_numbers<[1], [1], [0], [0], [0, 0, 1, 0], [], []>} : vector<10x32xf32>, vector<8x32xf32>, vector<10x8xf32> -> vector<10x8xf32>
    %345 = vector.extract_strided_slice %282 {offsets = [2, 0], sizes = [1, 8], strides = [1, 1]} : vector<12x32xf32> to vector<1x8xf32>
    %346 = vector.broadcast %345 : vector<1x8xf32> to vector<10x8xf32>
    %347 = arith.addf %344, %346 : vector<10x8xf32>
    %348 = vector.extract_strided_slice %281 {offsets = [48, 0], sizes = [8, 32], strides = [1, 1]} : vector<96x32xf32> to vector<8x32xf32>
    %cst_102 = arith.constant dense<0.000000e+00> : vector<10x8xf32>
    %349 = tpu.matmul %280, %348, %cst_102 {dimension_numbers = #tpu.dot_dimension_numbers<[1], [1], [0], [0], [0, 0, 1, 0], [], []>} : vector<10x32xf32>, vector<8x32xf32>, vector<10x8xf32> -> vector<10x8xf32>
    %350 = vector.extract_strided_slice %282 {offsets = [6, 0], sizes = [1, 8], strides = [1, 1]} : vector<12x32xf32> to vector<1x8xf32>
    %351 = vector.broadcast %350 : vector<1x8xf32> to vector<10x8xf32>
    %352 = arith.addf %349, %351 : vector<10x8xf32>
    %353 = vector.extract_strided_slice %281 {offsets = [80, 0], sizes = [8, 32], strides = [1, 1]} : vector<96x32xf32> to vector<8x32xf32>
    %cst_103 = arith.constant dense<0.000000e+00> : vector<10x8xf32>
    %354 = tpu.matmul %280, %353, %cst_103 {dimension_numbers = #tpu.dot_dimension_numbers<[1], [1], [0], [0], [0, 0, 1, 0], [], []>} : vector<10x32xf32>, vector<8x32xf32>, vector<10x8xf32> -> vector<10x8xf32>
    %355 = vector.extract_strided_slice %282 {offsets = [10, 0], sizes = [1, 8], strides = [1, 1]} : vector<12x32xf32> to vector<1x8xf32>
    %356 = vector.broadcast %355 : vector<1x8xf32> to vector<10x8xf32>
    %357 = arith.addf %354, %356 : vector<10x8xf32>
    %cst_104 = arith.constant dense<0.000000e+00> : vector<10x10xf32>
    %358 = tpu.matmul %347, %352, %cst_104 {dimension_numbers = #tpu.dot_dimension_numbers<[1], [1], [0], [0], [0, 0, 1, 0], [], []>} : vector<10x8xf32>, vector<10x8xf32>, vector<10x10xf32> -> vector<10x10xf32>
    %cst_105 = arith.constant 0.353553385 : f32
    %359 = vector.broadcast %cst_105 : f32 to vector<10x10xf32>
    %360 = arith.mulf %358, %359 : vector<10x10xf32>
    %361 = arith.addf %360, %63 : vector<10x10xf32>
    %cst_106 = arith.constant dense<0xFF800000> : vector<10xf32>
    %362 = vector.multi_reduction <maximumf>, %361, %cst_106 [1] : vector<10x10xf32> to vector<10xf32>
    %363 = vector.shape_cast %362 : vector<10xf32> to vector<10x1xf32>
    %364 = vector.broadcast %363 : vector<10x1xf32> to vector<10x10xf32>
    %365 = arith.subf %361, %364 : vector<10x10xf32>
    %366 = math.exp %365 : vector<10x10xf32>
    %cst_107 = arith.constant dense<0.000000e+00> : vector<10xf32>
    %367 = vector.multi_reduction <add>, %366, %cst_107 [1] : vector<10x10xf32> to vector<10xf32>
    %368 = vector.shape_cast %367 : vector<10xf32> to vector<10x1xf32>
    %369 = tpu.reciprocal %368 {approx = true} : vector<10x1xf32> -> vector<10x1xf32>
    %370 = vector.broadcast %369 : vector<10x1xf32> to vector<10x10xf32>
    %371 = arith.mulf %366, %370 : vector<10x10xf32>
    %cst_108 = arith.constant dense<0.000000e+00> : vector<10x8xf32>
    %372 = tpu.matmul %371, %357, %cst_108 {dimension_numbers = #tpu.dot_dimension_numbers<[1], [0], [0], [1], [0, 0, 1, 1], [], []>} : vector<10x10xf32>, vector<10x8xf32>, vector<10x8xf32> -> vector<10x8xf32>
    %373 = vector.extract_strided_slice %281 {offsets = [24, 0], sizes = [8, 32], strides = [1, 1]} : vector<96x32xf32> to vector<8x32xf32>
    %cst_109 = arith.constant dense<0.000000e+00> : vector<10x8xf32>
    %374 = tpu.matmul %280, %373, %cst_109 {dimension_numbers = #tpu.dot_dimension_numbers<[1], [1], [0], [0], [0, 0, 1, 0], [], []>} : vector<10x32xf32>, vector<8x32xf32>, vector<10x8xf32> -> vector<10x8xf32>
    %375 = vector.extract_strided_slice %282 {offsets = [3, 0], sizes = [1, 8], strides = [1, 1]} : vector<12x32xf32> to vector<1x8xf32>
    %376 = vector.broadcast %375 : vector<1x8xf32> to vector<10x8xf32>
    %377 = arith.addf %374, %376 : vector<10x8xf32>
    %378 = vector.extract_strided_slice %281 {offsets = [56, 0], sizes = [8, 32], strides = [1, 1]} : vector<96x32xf32> to vector<8x32xf32>
    %cst_110 = arith.constant dense<0.000000e+00> : vector<10x8xf32>
    %379 = tpu.matmul %280, %378, %cst_110 {dimension_numbers = #tpu.dot_dimension_numbers<[1], [1], [0], [0], [0, 0, 1, 0], [], []>} : vector<10x32xf32>, vector<8x32xf32>, vector<10x8xf32> -> vector<10x8xf32>
    %380 = vector.extract_strided_slice %282 {offsets = [7, 0], sizes = [1, 8], strides = [1, 1]} : vector<12x32xf32> to vector<1x8xf32>
    %381 = vector.broadcast %380 : vector<1x8xf32> to vector<10x8xf32>
    %382 = arith.addf %379, %381 : vector<10x8xf32>
    %383 = vector.extract_strided_slice %281 {offsets = [88, 0], sizes = [8, 32], strides = [1, 1]} : vector<96x32xf32> to vector<8x32xf32>
    %cst_111 = arith.constant dense<0.000000e+00> : vector<10x8xf32>
    %384 = tpu.matmul %280, %383, %cst_111 {dimension_numbers = #tpu.dot_dimension_numbers<[1], [1], [0], [0], [0, 0, 1, 0], [], []>} : vector<10x32xf32>, vector<8x32xf32>, vector<10x8xf32> -> vector<10x8xf32>
    %385 = vector.extract_strided_slice %282 {offsets = [11, 0], sizes = [1, 8], strides = [1, 1]} : vector<12x32xf32> to vector<1x8xf32>
    %386 = vector.broadcast %385 : vector<1x8xf32> to vector<10x8xf32>
    %387 = arith.addf %384, %386 : vector<10x8xf32>
    %cst_112 = arith.constant dense<0.000000e+00> : vector<10x10xf32>
    %388 = tpu.matmul %377, %382, %cst_112 {dimension_numbers = #tpu.dot_dimension_numbers<[1], [1], [0], [0], [0, 0, 1, 0], [], []>} : vector<10x8xf32>, vector<10x8xf32>, vector<10x10xf32> -> vector<10x10xf32>
    %cst_113 = arith.constant 0.353553385 : f32
    %389 = vector.broadcast %cst_113 : f32 to vector<10x10xf32>
    %390 = arith.mulf %388, %389 : vector<10x10xf32>
    %391 = arith.addf %390, %63 : vector<10x10xf32>
    %cst_114 = arith.constant dense<0xFF800000> : vector<10xf32>
    %392 = vector.multi_reduction <maximumf>, %391, %cst_114 [1] : vector<10x10xf32> to vector<10xf32>
    %393 = vector.shape_cast %392 : vector<10xf32> to vector<10x1xf32>
    %394 = vector.broadcast %393 : vector<10x1xf32> to vector<10x10xf32>
    %395 = arith.subf %391, %394 : vector<10x10xf32>
    %396 = math.exp %395 : vector<10x10xf32>
    %cst_115 = arith.constant dense<0.000000e+00> : vector<10xf32>
    %397 = vector.multi_reduction <add>, %396, %cst_115 [1] : vector<10x10xf32> to vector<10xf32>
    %398 = vector.shape_cast %397 : vector<10xf32> to vector<10x1xf32>
    %399 = tpu.reciprocal %398 {approx = true} : vector<10x1xf32> -> vector<10x1xf32>
    %400 = vector.broadcast %399 : vector<10x1xf32> to vector<10x10xf32>
    %401 = arith.mulf %396, %400 : vector<10x10xf32>
    %cst_116 = arith.constant dense<0.000000e+00> : vector<10x8xf32>
    %402 = tpu.matmul %401, %387, %cst_116 {dimension_numbers = #tpu.dot_dimension_numbers<[1], [0], [0], [1], [0, 0, 1, 1], [], []>} : vector<10x10xf32>, vector<10x8xf32>, vector<10x8xf32> -> vector<10x8xf32>
    %403 = tpu.concatenate %312, %342, %372, %402 in 1 : vector<10x8xf32>, vector<10x8xf32>, vector<10x8xf32>, vector<10x8xf32> -> vector<10x32xf32>
    %c584 = arith.constant 584 : index
    %c0_117 = arith.constant 0 : index
    %404 = vector.load %arg1[%c584, %c0_117] : memref<766x32xf32, #tpu.memory_space<vmem>>, vector<32x32xf32>
    %cst_118 = arith.constant dense<0.000000e+00> : vector<10x32xf32>
    %405 = tpu.matmul %403, %404, %cst_118 {dimension_numbers = #tpu.dot_dimension_numbers<[1], [0], [0], [1], [0, 0, 1, 1], [], []>} : vector<10x32xf32>, vector<32x32xf32>, vector<10x32xf32> -> vector<10x32xf32>
    %406 = arith.addf %257, %405 : vector<10x32xf32>
    %c616 = arith.constant 616 : index
    %c0_119 = arith.constant 0 : index
    %407 = vector.load %arg1[%c616, %c0_119] : memref<766x32xf32, #tpu.memory_space<vmem>>, vector<1x32xf32>
    %408 = vector.broadcast %407 : vector<1x32xf32> to vector<10x32xf32>
    %409 = arith.addf %406, %408 : vector<10x32xf32>
    %c617 = arith.constant 617 : index
    %c0_120 = arith.constant 0 : index
    %410 = vector.load %arg1[%c617, %c0_120] : memref<766x32xf32, #tpu.memory_space<vmem>>, vector<2x32xf32>
    %cst_121 = arith.constant dense<0.000000e+00> : vector<10xf32>
    %411 = vector.multi_reduction <add>, %409, %cst_121 [1] : vector<10x32xf32> to vector<10xf32>
    %412 = vector.shape_cast %411 : vector<10xf32> to vector<10x1xf32>
    %cst_122 = arith.constant 3.200000e+01 : f32
    %413 = vector.broadcast %cst_122 : f32 to vector<10x1xf32>
    %414 = arith.divf %412, %413 : vector<10x1xf32>
    %415 = vector.broadcast %414 : vector<10x1xf32> to vector<10x32xf32>
    %416 = arith.subf %409, %415 : vector<10x32xf32>
    %417 = arith.mulf %416, %416 : vector<10x32xf32>
    %cst_123 = arith.constant dense<0.000000e+00> : vector<10xf32>
    %418 = vector.multi_reduction <add>, %417, %cst_123 [1] : vector<10x32xf32> to vector<10xf32>
    %419 = vector.shape_cast %418 : vector<10xf32> to vector<10x1xf32>
    %cst_124 = arith.constant 3.200000e+01 : f32
    %420 = vector.broadcast %cst_124 : f32 to vector<10x1xf32>
    %421 = arith.divf %419, %420 : vector<10x1xf32>
    %cst_125 = arith.constant 9.99999974E-6 : f32
    %422 = vector.broadcast %cst_125 : f32 to vector<10x1xf32>
    %423 = arith.addf %421, %422 : vector<10x1xf32>
    %424 = math.rsqrt %423 : vector<10x1xf32>
    %425 = vector.broadcast %424 : vector<10x1xf32> to vector<10x32xf32>
    %426 = arith.mulf %416, %425 : vector<10x32xf32>
    %427 = vector.extract_strided_slice %410 {offsets = [0, 0], sizes = [1, 32], strides = [1, 1]} : vector<2x32xf32> to vector<1x32xf32>
    %428 = vector.broadcast %427 : vector<1x32xf32> to vector<10x32xf32>
    %429 = arith.mulf %426, %428 : vector<10x32xf32>
    %430 = vector.extract_strided_slice %410 {offsets = [1, 0], sizes = [1, 32], strides = [1, 1]} : vector<2x32xf32> to vector<1x32xf32>
    %431 = vector.broadcast %430 : vector<1x32xf32> to vector<10x32xf32>
    %432 = arith.addf %429, %431 : vector<10x32xf32>
    %c32 = arith.constant 32 : index
    %c0_126 = arith.constant 0 : index
    %433 = vector.load %arg2[%c32, %c0_126] : memref<66x128xf32, #tpu.memory_space<vmem>>, vector<32x128xf32>
    %c65 = arith.constant 65 : index
    %c0_127 = arith.constant 0 : index
    %434 = vector.load %arg2[%c65, %c0_127] : memref<66x128xf32, #tpu.memory_space<vmem>>, vector<1x128xf32>
    %cst_128 = arith.constant dense<0.000000e+00> : vector<10x128xf32>
    %435 = tpu.matmul %432, %433, %cst_128 {dimension_numbers = #tpu.dot_dimension_numbers<[1], [0], [0], [1], [0, 0, 1, 1], [], []>} : vector<10x32xf32>, vector<32x128xf32>, vector<10x128xf32> -> vector<10x128xf32>
    %436 = vector.broadcast %434 : vector<1x128xf32> to vector<10x128xf32>
    %437 = arith.addf %435, %436 : vector<10x128xf32>
    %cst_129 = arith.constant 1.702000e+00 : f32
    %438 = vector.broadcast %cst_129 : f32 to vector<10x128xf32>
    %439 = arith.mulf %438, %437 : vector<10x128xf32>
    %440 = arith.negf %439 : vector<10x128xf32>
    %441 = math.exp %440 : vector<10x128xf32>
    %cst_130 = arith.constant 1.000000e+00 : f32
    %442 = vector.broadcast %cst_130 : f32 to vector<10x128xf32>
    %443 = arith.addf %442, %441 : vector<10x128xf32>
    %444 = arith.divf %442, %443 : vector<10x128xf32>
    %445 = arith.mulf %437, %444 : vector<10x128xf32>
    %c619 = arith.constant 619 : index
    %c0_131 = arith.constant 0 : index
    %446 = vector.load %arg1[%c619, %c0_131] : memref<766x32xf32, #tpu.memory_space<vmem>>, vector<128x32xf32>
    %cst_132 = arith.constant dense<0.000000e+00> : vector<10x32xf32>
    %447 = tpu.matmul %445, %446, %cst_132 {dimension_numbers = #tpu.dot_dimension_numbers<[1], [0], [0], [1], [0, 0, 1, 1], [], []>} : vector<10x128xf32>, vector<128x32xf32>, vector<10x32xf32> -> vector<10x32xf32>
    %448 = arith.addf %409, %447 : vector<10x32xf32>
    %c747 = arith.constant 747 : index
    %c0_133 = arith.constant 0 : index
    %449 = vector.load %arg1[%c747, %c0_133] : memref<766x32xf32, #tpu.memory_space<vmem>>, vector<1x32xf32>
    %450 = vector.broadcast %449 : vector<1x32xf32> to vector<10x32xf32>
    %451 = arith.addf %448, %450 : vector<10x32xf32>
    %452 = vector.extract_strided_slice %451 {offsets = [0, 0], sizes = [1, 32], strides = [1, 1]} : vector<10x32xf32> to vector<1x32xf32>
    %453 = vector.extract_strided_slice %451 {offsets = [5, 0], sizes = [1, 32], strides = [1, 1]} : vector<10x32xf32> to vector<1x32xf32>
    %454 = tpu.concatenate %452, %453 in 0 : vector<1x32xf32>, vector<1x32xf32> -> vector<2x32xf32>
    %c748 = arith.constant 748 : index
    %c0_134 = arith.constant 0 : index
    %455 = vector.load %arg1[%c748, %c0_134] : memref<766x32xf32, #tpu.memory_space<vmem>>, vector<2x32xf32>
    %cst_135 = arith.constant dense<0.000000e+00> : vector<2xf32>
    %456 = vector.multi_reduction <add>, %454, %cst_135 [1] : vector<2x32xf32> to vector<2xf32>
    %457 = vector.shape_cast %456 : vector<2xf32> to vector<2x1xf32>
    %cst_136 = arith.constant 3.200000e+01 : f32
    %458 = vector.broadcast %cst_136 : f32 to vector<2x1xf32>
    %459 = arith.divf %457, %458 : vector<2x1xf32>
    %460 = vector.broadcast %459 : vector<2x1xf32> to vector<2x32xf32>
    %461 = arith.subf %454, %460 : vector<2x32xf32>
    %462 = arith.mulf %461, %461 : vector<2x32xf32>
    %cst_137 = arith.constant dense<0.000000e+00> : vector<2xf32>
    %463 = vector.multi_reduction <add>, %462, %cst_137 [1] : vector<2x32xf32> to vector<2xf32>
    %464 = vector.shape_cast %463 : vector<2xf32> to vector<2x1xf32>
    %cst_138 = arith.constant 3.200000e+01 : f32
    %465 = vector.broadcast %cst_138 : f32 to vector<2x1xf32>
    %466 = arith.divf %464, %465 : vector<2x1xf32>
    %cst_139 = arith.constant 9.99999974E-6 : f32
    %467 = vector.broadcast %cst_139 : f32 to vector<2x1xf32>
    %468 = arith.addf %466, %467 : vector<2x1xf32>
    %469 = math.rsqrt %468 : vector<2x1xf32>
    %470 = vector.broadcast %469 : vector<2x1xf32> to vector<2x32xf32>
    %471 = arith.mulf %461, %470 : vector<2x32xf32>
    %472 = vector.extract_strided_slice %455 {offsets = [0, 0], sizes = [1, 32], strides = [1, 1]} : vector<2x32xf32> to vector<1x32xf32>
    %473 = vector.broadcast %472 : vector<1x32xf32> to vector<2x32xf32>
    %474 = arith.mulf %471, %473 : vector<2x32xf32>
    %475 = vector.extract_strided_slice %455 {offsets = [1, 0], sizes = [1, 32], strides = [1, 1]} : vector<2x32xf32> to vector<1x32xf32>
    %476 = vector.broadcast %475 : vector<1x32xf32> to vector<2x32xf32>
    %477 = arith.addf %474, %476 : vector<2x32xf32>
    %c750 = arith.constant 750 : index
    %c0_140 = arith.constant 0 : index
    %478 = vector.load %arg1[%c750, %c0_140] : memref<766x32xf32, #tpu.memory_space<vmem>>, vector<16x32xf32>
    %cst_141 = arith.constant dense<0.000000e+00> : vector<2x16xf32>
    %479 = tpu.matmul %477, %478, %cst_141 {dimension_numbers = #tpu.dot_dimension_numbers<[1], [1], [0], [0], [0, 0, 1, 0], [], []>} : vector<2x32xf32>, vector<16x32xf32>, vector<2x16xf32> -> vector<2x16xf32>
    %c0_142 = arith.constant 0 : index
    %c0_143 = arith.constant 0 : index
    %480 = vector.load %arg3[%c0_142, %c0_143] : memref<2x16xf32, #tpu.memory_space<vmem>>, vector<2x16xf32>
    tpu.vector_store %arg3[%c0_142, %c0_143], %479 {strides = array<i32>} : memref<2x16xf32, #tpu.memory_space<vmem>>, vector<2x16xf32>,
    return
  }
}

</mosaic_0001>

<llo_original>
// kernel: clip_img_wrap_forward.1
$region0: #{clip_img_wrap_forward.1}
  #allocation0 [shape = 'u32[]', space=smem, size = 0x4, offset = 0x4, fixed_abs, tag = 'smem constant byte address 0x4 - core index']
  #allocation1 [shape = 'u32[144,128]{1,0:T(1,128)}', space=vmem, size = 0x12000, scoped, tag = 'internal scratch']
  %s0 = inlined_call_operand.vmem [shape: f32[8,192], index: 0, kind: input, shape index: {}]
  %s1 = inlined_call_operand.vmem [shape: f32[766,32], index: 1, kind: input, shape index: {}]
  %s2 = inlined_call_operand.vmem [shape: f32[66,128], index: 2, kind: input, shape index: {}]
  %s3 = inlined_call_operand.hbm [shape: f32[2,16], index: 3, kind: output, shape index: {}]
  %s4 = sld [smem:[#allocation0]]
  $region22: #{clip_img_wrap_forward.1} parent=0
    _
  %s6 = ssub.s32 1, %s4
  %s7 = scalar_select 0, %s6, %s4
  $region1: #{clip_img_wrap_forward.1} parent=0
    #allocation2 [shape = 'u8[1024]{0}', space=vmem, size = 0x400, scoped, tag = 'output window, operand 0, single buffered']
    #allocation3 [shape = 's32[1]{0}', space=sflag, size = 0x4, scoped, tag = 'scoped memory for clip_img_wrap_forward.1']
    %8 = vsyncpa [#allocation3], 0
    // Predicated region
    $region2: #{clip_img_wrap_forward.1} parent=1 // pred_check
      _
    $region3: #{clip_img_wrap_forward.1} parent=1 // pred_check_branch
      %10 = sbr.rel (0) target = $region5
    $region4: #{clip_img_wrap_forward.1} parent=1 // pred_region
      _
    $region5: #{clip_img_wrap_forward.1} parent=1 // pred_fallthru
      _
    // Predicated region
    $region6: #{clip_img_wrap_forward.1} parent=1 // pred_check
      _
    $region7: #{clip_img_wrap_forward.1} parent=1 // pred_check_branch
      %12 = sbr.rel (0) target = $region9
    $region8: #{clip_img_wrap_forward.1} parent=1 // pred_region
      _
    $region9: #{clip_img_wrap_forward.1} parent=1 // pred_fallthru
      _
    // Predicated region
    $region10: #{clip_img_wrap_forward.1} parent=1 // pred_check
      _
    $region11: #{clip_img_wrap_forward.1} parent=1 // pred_check_branch
      %14 = sbr.rel (0) target = $region13
    $region12: #{clip_img_wrap_forward.1} parent=1 // pred_region
      _
    $region13: #{clip_img_wrap_forward.1} parent=1 // pred_fallthru
      _
    %v15 = vld [vmem:[%s0] sm:$0xff]
    %v16 = vld [vmem:[%s0 + $0x8] sm:$0xff]
    %v17 = vld [vmem:[%s1] sm:$0xff]
    %v18 = vld [vmem:[%s1 + $0x8] sm:$0xff]
    %v19 = vld [vmem:[%s1 + $0x10] sm:$0xff]
    %v20 = vld [vmem:[%s1 + $0x18] sm:$0xff]
    %v21 = vld [vmem:[%s1 + $0x20] sm:$0xff]
    %v22 = vld [vmem:[%s1 + $0x28] sm:$0xff]
    %v23 = vld [vmem:[%s1 + $0x30] sm:$0xff]
    %v24 = vld [vmem:[%s1 + $0x38] sm:$0xff]
    %v25 = vld [vmem:[%s1 + $0x40] sm:$0xff]
    %v26 = vld [vmem:[%s1 + $0x48] sm:$0xff]
    %v27 = vld [vmem:[%s1 + $0x50] sm:$0xff]
    %v28 = vld [vmem:[%s1 + $0x58] sm:$0xff]
    %v29 = vld [vmem:[%s1 + $0x60] sm:$0xff]
    %v30 = vld [vmem:[%s1 + $0x68] sm:$0xff]
    %v31 = vld [vmem:[%s1 + $0x70] sm:$0xff]
    %v32 = vld [vmem:[%s1 + $0x78] sm:$0xff]
    %v33 = vld [vmem:[%s1 + $0x80] sm:$0xff]
    %v34 = vld [vmem:[%s1 + $0x88] sm:$0xff]
    %v35 = vld [vmem:[%s1 + $0x90] sm:$0xff]
    %v36 = vld [vmem:[%s1 + $0x98] sm:$0xff]
    %v37 = vld [vmem:[%s1 + $0xa0] sm:$0xff]
    %v38 = vld [vmem:[%s1 + $0xa8] sm:$0xff]
    %v39 = vld [vmem:[%s1 + $0xb0] sm:$0xff]
    %v40 = vld [vmem:[%s1 + $0xb8] sm:$0xff]
    %v41 = vld [vmem:[%s1 + $0xc0] sm:$0x1]
    %v42 = vlaneseq
    %v43 = vshrl.u32 %v42, 7
    %v44 = vsub.s32 0, %v43
    %v45 = vrot.slane %v41, %v44
    %vm46 = vcmask 523264
    %v48 = vsel %vm46, %v16, 0
    %50 = vmatprep.subr.mxu0 0.0
    %51 = vmatpush1.msra.mxu0 %v32
    %52 = vmatprep.subr.mxu0 0.0
    %53 = vmatpush1.msra.mxu0 %v31
    %54 = vmatprep.subr.mxu0 0.0
    %55 = vmatpush1.msra.mxu0 %v30
    %56 = vmatprep.subr.mxu0 0.0
    %57 = vmatpush1.msra.mxu0 %v29
    %58 = vmatprep.subr.mxu0 0.0
    %59 = vmatpush1.msra.mxu0 %v28
    %60 = vmatprep.subr.mxu0 0.0
    %61 = vmatpush1.msra.mxu0 %v27
    %62 = vmatprep.subr.mxu0 0.0
    %63 = vmatpush1.msra.mxu0 %v26
    %64 = vmatprep.subr.mxu0 0.0
    %65 = vmatpush1.msra.mxu0 %v25
    %66 = vmatprep.subr.mxu0 0.0
    %67 = vmatpush1.msra.mxu0 %v24
    %68 = vmatprep.subr.mxu0 0.0
    %69 = vmatpush1.msra.mxu0 %v23
    %70 = vmatprep.subr.mxu0 0.0
    %71 = vmatpush1.msra.mxu0 %v22
    %72 = vmatprep.subr.mxu0 0.0
    %73 = vmatpush1.msra.mxu0 %v21
    %74 = vmatprep.subr.mxu0 0.0
    %75 = vmatpush1.msra.mxu0 %v20
    %76 = vmatprep.subr.mxu0 0.0
    %77 = vmatpush1.msra.mxu0 %v19
    %78 = vmatprep.subr.mxu0 0.0
    %79 = vmatpush1.msra.mxu0 %v18
    %80 = vmatprep.subr.mxu0 0.0
    %81 = vmatpush1.msra.mxu0 %v17
    %82 = vmatprep.subr.mxu0 0.0
    %83 = vmatpush2.msra.mxu0 0.0
    %84 = vmatprep.subr.mxu0 0.0
    %85 = vmatpush2.msra.mxu0 0.0
    %86 = vmatprep.subr.mxu0 0.0
    %87 = vmatpush2.msra.mxu0 0.0
    %88 = vmatprep.subr.mxu0 0.0
    %89 = vmatpush2.msra.mxu0 0.0
    %90 = vmatprep.subr.mxu0 0.0
    %91 = vmatpush2.msra.mxu0 0.0
    %92 = vmatprep.subr.mxu0 0.0
    %93 = vmatpush2.msra.mxu0 0.0
    %94 = vmatprep.subr.mxu0 0.0
    %95 = vmatpush2.msra.mxu0 0.0
    %96 = vmatprep.subr.mxu0 0.0
    %97 = vmatpush2.msra.mxu0 0.0
    %98 = vmatprep.subr.mxu0 0.0
    %99 = vmatpush2.msra.mxu0 %v40
    %100 = vmatprep.subr.mxu0 0.0
    %101 = vmatpush2.msra.mxu0 %v39
    %102 = vmatprep.subr.mxu0 0.0
    %103 = vmatpush2.msra.mxu0 %v38
    %104 = vmatprep.subr.mxu0 0.0
    %105 = vmatpush2.msra.mxu0 %v37
    %106 = vmatprep.subr.mxu0 0.0
    %107 = vmatpush2.msra.mxu0 %v36
    %108 = vmatprep.subr.mxu0 0.0
    %109 = vmatpush2.msra.mxu0 %v35
    %110 = vmatprep.subr.mxu0 0.0
    %111 = vmatpush2.msra.mxu0 %v34
    %112 = vmatprep.subr.mxu0 0.0
    %113 = vmatpush2.msra.mxu0 %v33
    %114 = vmatprep.mubr.f32.mxu0 %v48
    %115 = vmatmul.mubr.f32.gmra.mxu0 %v15
    %v116 = vpop.f32.mrf.mxu0
    %v117 = vadd.f32 %v45, %v116
    %v118 = vpop.f32.mrf.mxu0
    %119 = vdwg.mxu0
    %v120 = vld [vmem:[%s1 + $0xc1] sm:$0x1]
    %v121 = vld [vmem:[%s1 + $0xc2] sm:$0xf]
    %v122 = vadd.f32 %v117, %v121
    %v124 = vrot.slane %v121, 4
    %v126 = vadd.f32 %v117, %v124
    %v128 = vrot.slane %v122, 7
    %v131 = vrot.slane %v120, 3
    %v134 = vrot.slane %v126, 6
    %vm136 = vcmask 1040384
    %v137 = vsel %vm136, %v120, %v128
    %vm138 = vcmask 1044480
    %v139 = vsel %vm138, %v137, %v131
    %vm140 = vcmask 1045504
    %v141 = vsel %vm140, %v139, %v134
    %v142 = vld [vmem:[%s1 + $0xc6] sm:$0x3]
    %vm143 = vcmask 261120
    %v144 = vsel %vm143, %v141, 0.0
    %145 = vadd.xlane.f32.xlu0 %v144
    %v146 = vpop.xlane.xlu0 %145
    %vm147 = vcmask 254976
    %v148 = vsel %vm147, %v134, 0.0
    %149 = vadd.xlane.f32.xlu0 %v148
    %v150 = vpop.xlane.xlu0 %149
    %v151 = vrcp.pop 32.0
    %v152 = vmul.f32 %v146, %v151
    %v153 = vmul.f32 %v150, %v151
    %v154 = vsub.f32 %v141, %v152
    %v155 = vsub.f32 %v134, %v153
    %v156 = vmul.f32 %v154, %v154
    %v157 = vmul.f32 %v155, %v155
    %v158 = vsel %vm143, %v156, 0.0
    %159 = vadd.xlane.f32.xlu0 %v158
    %v160 = vpop.xlane.xlu0 %159
    %v161 = vsel %vm147, %v157, 0.0
    %162 = vadd.xlane.f32.xlu0 %v161
    %v163 = vpop.xlane.xlu0 %162
    %v164 = vmul.f32 %v160, %v151
    %v165 = vmul.f32 %v163, %v151
    %v166 = vadd.f32 %v164, 1e-05
    %v167 = vadd.f32 %v165, 1e-05
    %v168 = vrsqrt.pop %v166
    %v169 = vrsqrt.pop %v167
    %v170 = vmul.f32 %v154, %v168
    %v171 = vmul.f32 %v155, %v169
    %v172 = vlaneseq
    %v173 = vshrl.u32 %v172, 7
    %v174 = vsub.s32 0, %v173
    %v175 = vrot.slane %v142, %v174
    %v176 = vmul.f32 %v170, %v175
    %v177 = vmul.f32 %v171, %v175
    %v178 = vlaneseq
    %v179 = vshrl.u32 %v178, 7
    %v180 = vsub.s32 1, %v179
    %v181 = vrot.slane %v142, %v180
    %v182 = vadd.f32 %v176, %v181
    %v183 = vadd.f32 %v177, %v181
    %v184 = vlaneseq
    %v185 = vshrl.u32 %v184, 7
    %v186 = vadd.s32 %v185, 8
    %v187 = vlaneseq
    %v188 = vand.u32 %v187, 127
    %vm189 = vcmp.ge.s32.totalorder %v185, 0
    %vm190 = vcmp.ge.s32.totalorder %v186, 0
    %vm191 = vcmp.lt.s32.totalorder %v185, 5
    %vm192 = vcmp.lt.s32.totalorder %v186, 5
    %vm193 = vmand %vm189, %vm191
    %vm194 = vmand %vm190, %vm192
    %vm195 = vcmp.ge.s32.totalorder %v188, 0
    %vm196 = vcmp.lt.s32.totalorder %v188, 5
    %vm197 = vmand %vm195, %vm196
    %vm198 = vmand %vm193, %vm197
    %vm199 = vmand %vm194, %vm197
    %vm200 = vcmp.ge.s32.totalorder %v185, 5
    %vm201 = vcmp.ge.s32.totalorder %v186, 5
    %vm202 = vcmp.lt.s32.totalorder %v185, 10
    %vm203 = vcmp.lt.s32.totalorder %v186, 10
    %vm204 = vmand %vm200, %vm202
    %vm205 = vmand %vm201, %vm203
    %vm206 = vcmp.ge.s32.totalorder %v188, 5
    %vm207 = vcmp.lt.s32.totalorder %v188, 10
    %vm208 = vmand %vm206, %vm207
    %vm209 = vmand %vm204, %vm208
    %vm210 = vmand %vm205, %vm208
    %vm211 = vmor %vm198, %vm209
    %vm212 = vmor %vm199, %vm210
    %v213 = vsel %vm211, 0.0, -1e+30
    %v214 = vsel %vm212, 0.0, -1e+30
    %v215 = vld [vmem:[%s1 + $0xc8] sm:$0x3]
    %v216 = vsel %vm143, %v182, 0.0
    %217 = vadd.xlane.f32.xlu0 %v216
    %v218 = vpop.xlane.xlu0 %217
    %v219 = vsel %vm147, %v183, 0.0
    %220 = vadd.xlane.f32.xlu0 %v219
    %v221 = vpop.xlane.xlu0 %220
    %v222 = vmul.f32 %v218, %v151
    %v223 = vmul.f32 %v221, %v151
    %v224 = vsub.f32 %v182, %v222
    %v225 = vsub.f32 %v183, %v223
    %v226 = vmul.f32 %v224, %v224
    %v227 = vmul.f32 %v225, %v225
    %v228 = vsel %vm143, %v226, 0.0
    %229 = vadd.xlane.f32.xlu0 %v228
    %v230 = vpop.xlane.xlu0 %229
    %v231 = vsel %vm147, %v227, 0.0
    %232 = vadd.xlane.f32.xlu0 %v231
    %v233 = vpop.xlane.xlu0 %232
    %v234 = vmul.f32 %v230, %v151
    %v235 = vmul.f32 %v233, %v151
    %v236 = vadd.f32 %v234, 1e-05
    %v237 = vadd.f32 %v235, 1e-05
    %v238 = vrsqrt.pop %v236
    %v239 = vrsqrt.pop %v237
    %v240 = vmul.f32 %v224, %v238
    %v241 = vmul.f32 %v225, %v239
    %v242 = vlaneseq
    %v243 = vshrl.u32 %v242, 7
    %v244 = vsub.s32 0, %v243
    %v245 = vrot.slane %v215, %v244
    %v246 = vmul.f32 %v240, %v245
    %v247 = vmul.f32 %v241, %v245
    %v248 = vlaneseq
    %v249 = vshrl.u32 %v248, 7
    %v250 = vsub.s32 1, %v249
    %v251 = vrot.slane %v215, %v250
    %v252 = vadd.f32 %v246, %v251
    %v253 = vadd.f32 %v247, %v251
    %v254 = vld [vmem:[%s1 + $0xca] sm:$0xff]
    %v255 = vld [vmem:[%s1 + $0xd2] sm:$0xff]
    %v256 = vld [vmem:[%s1 + $0xda] sm:$0xff]
    %v257 = vld [vmem:[%s1 + $0xe2] sm:$0xff]
    %v258 = vld [vmem:[%s1 + $0xea] sm:$0xff]
    %v259 = vld [vmem:[%s1 + $0xf2] sm:$0xff]
    %v260 = vld [vmem:[%s1 + $0xfa] sm:$0xff]
    %v261 = vld [vmem:[%s1 + $0x102] sm:$0xff]
    %v262 = vld [vmem:[%s1 + $0x10a] sm:$0xff]
    %v263 = vld [vmem:[%s1 + $0x112] sm:$0xff]
    %v264 = vld [vmem:[%s1 + $0x11a] sm:$0xff]
    %v265 = vld [vmem:[%s1 + $0x122] sm:$0xff]
    %v266 = vld [vmem:[%s1 + $0x12a] sm:$0xff]
    %v267 = vld [vmem:[%s1 + $0x132] sm:$0xf]
    %v268 = vlaneseq
    %v269 = vshrl.u32 %v268, 7
    %v270 = vsub.s32 0, %v269
    %v271 = vrot.slane %v266, %v270
    %v273 = vsel %vm143, %v252, 0
    %v276 = vsel %vm143, %v253, 0
    %v279 = vsel %vm143, %v254, 0
    %281 = vmatprep.subr.mxu0 0.0
    %282 = vmatpush1.xpose.msra.mxu0 0.0
    %283 = vmatprep.subr.mxu0 0.0
    %284 = vmatpush1.xpose.msra.mxu0 0.0
    %285 = vmatprep.subr.mxu0 0.0
    %286 = vmatpush1.xpose.msra.mxu0 0.0
    %287 = vmatprep.subr.mxu0 0.0
    %288 = vmatpush1.xpose.msra.mxu0 0.0
    %289 = vmatprep.subr.mxu0 0.0
    %290 = vmatpush1.xpose.msra.mxu0 0.0
    %291 = vmatprep.subr.mxu0 0.0
    %292 = vmatpush1.xpose.msra.mxu0 0.0
    %293 = vmatprep.subr.mxu0 0.0
    %294 = vmatpush1.xpose.msra.mxu0 0.0
    %295 = vmatprep.subr.mxu0 0.0
    %296 = vmatpush1.xpose.msra.mxu0 0.0
    %297 = vmatprep.subr.mxu0 0.0
    %298 = vmatpush1.xpose.msra.mxu0 0.0
    %299 = vmatprep.subr.mxu0 0.0
    %300 = vmatpush1.xpose.msra.mxu0 0.0
    %301 = vmatprep.subr.mxu0 0.0
    %302 = vmatpush1.xpose.msra.mxu0 0.0
    %303 = vmatprep.subr.mxu0 0.0
    %304 = vmatpush1.xpose.msra.mxu0 0.0
    %305 = vmatprep.subr.mxu0 0.0
    %306 = vmatpush1.xpose.msra.mxu0 0.0
    %307 = vmatprep.subr.mxu0 0.0
    %308 = vmatpush1.xpose.msra.mxu0 0.0
    %309 = vmatprep.subr.mxu0 0.0
    %310 = vmatpush1.xpose.msra.mxu0 0.0
    %311 = vmatprep.subr.mxu0 0.0
    %312 = vmatpush1.xpose.msra.mxu0 %v279
    %313 = vmatprep.subr.mxu0 0.0
    %314 = vmatpush2.xpose.msra.mxu0 0.0
    %315 = vmatprep.subr.mxu0 0.0
    %316 = vmatpush2.xpose.msra.mxu0 0.0
    %317 = vmatprep.subr.mxu0 0.0
    %318 = vmatpush2.xpose.msra.mxu0 0.0
    %319 = vmatprep.subr.mxu0 0.0
    %320 = vmatpush2.xpose.msra.mxu0 0.0
    %321 = vmatprep.subr.mxu0 0.0
    %322 = vmatpush2.xpose.msra.mxu0 0.0
    %323 = vmatprep.subr.mxu0 0.0
    %324 = vmatpush2.xpose.msra.mxu0 0.0
    %325 = vmatprep.subr.mxu0 0.0
    %326 = vmatpush2.xpose.msra.mxu0 0.0
    %327 = vmatprep.subr.mxu0 0.0
    %328 = vmatpush2.xpose.msra.mxu0 0.0
    %329 = vmatprep.subr.mxu0 0.0
    %330 = vmatpush2.xpose.msra.mxu0 0.0
    %331 = vmatprep.subr.mxu0 0.0
    %332 = vmatpush2.xpose.msra.mxu0 0.0
    %333 = vmatprep.subr.mxu0 0.0
    %334 = vmatpush2.xpose.msra.mxu0 0.0
    %335 = vmatprep.subr.mxu0 0.0
    %336 = vmatpush2.xpose.msra.mxu0 0.0
    %337 = vmatprep.subr.mxu0 0.0
    %338 = vmatpush2.xpose.msra.mxu0 0.0
    %339 = vmatprep.subr.mxu0 0.0
    %340 = vmatpush2.xpose.msra.mxu0 0.0
    %341 = vmatprep.subr.mxu0 0.0
    %342 = vmatpush2.xpose.msra.mxu0 0.0
    %343 = vmatprep.subr.mxu0 0.0
    %344 = vmatpush2.xpose.msra.mxu0 0.0
    %345 = vmatprep.mubr.f32.mxu0 0.0
    %346 = vmatmul.mubr.f32.gmra.mxu0 %v273
    %v347 = vpop.f32.mrf.mxu0
    %v348 = vadd.f32 %v271, %v347
    %v349 = vpop.f32.mrf.mxu0
    %350 = vmatprep.mubr.f32.mxu0 0.0
    %351 = vmatmul.mubr.f32.gmra.mxu0 %v276
    %v352 = vpop.f32.mrf.mxu0
    %v353 = vadd.f32 %v271, %v352
    %v354 = vpop.f32.mrf.mxu0
    %355 = vdwg.mxu0
    %v356 = vlaneseq
    %v357 = vshrl.u32 %v356, 7
    %v358 = vsub.s32 4, %v357
    %v359 = vrot.slane %v266, %v358
    %v361 = vsel %vm143, %v258, 0
    %363 = vmatprep.subr.mxu0 0.0
    %364 = vmatpush1.xpose.msra.mxu0 0.0
    %365 = vmatprep.subr.mxu0 0.0
    %366 = vmatpush1.xpose.msra.mxu0 0.0
    %367 = vmatprep.subr.mxu0 0.0
    %368 = vmatpush1.xpose.msra.mxu0 0.0
    %369 = vmatprep.subr.mxu0 0.0
    %370 = vmatpush1.xpose.msra.mxu0 0.0
    %371 = vmatprep.subr.mxu0 0.0
    %372 = vmatpush1.xpose.msra.mxu0 0.0
    %373 = vmatprep.subr.mxu0 0.0
    %374 = vmatpush1.xpose.msra.mxu0 0.0
    %375 = vmatprep.subr.mxu0 0.0
    %376 = vmatpush1.xpose.msra.mxu0 0.0
    %377 = vmatprep.subr.mxu0 0.0
    %378 = vmatpush1.xpose.msra.mxu0 0.0
    %379 = vmatprep.subr.mxu0 0.0
    %380 = vmatpush1.xpose.msra.mxu0 0.0
    %381 = vmatprep.subr.mxu0 0.0
    %382 = vmatpush1.xpose.msra.mxu0 0.0
    %383 = vmatprep.subr.mxu0 0.0
    %384 = vmatpush1.xpose.msra.mxu0 0.0
    %385 = vmatprep.subr.mxu0 0.0
    %386 = vmatpush1.xpose.msra.mxu0 0.0
    %387 = vmatprep.subr.mxu0 0.0
    %388 = vmatpush1.xpose.msra.mxu0 0.0
    %389 = vmatprep.subr.mxu0 0.0
    %390 = vmatpush1.xpose.msra.mxu0 0.0
    %391 = vmatprep.subr.mxu0 0.0
    %392 = vmatpush1.xpose.msra.mxu0 0.0
    %393 = vmatprep.subr.mxu0 0.0
    %394 = vmatpush1.xpose.msra.mxu0 %v361
    %395 = vmatprep.subr.mxu0 0.0
    %396 = vmatpush2.xpose.msra.mxu0 0.0
    %397 = vmatprep.subr.mxu0 0.0
    %398 = vmatpush2.xpose.msra.mxu0 0.0
    %399 = vmatprep.subr.mxu0 0.0
    %400 = vmatpush2.xpose.msra.mxu0 0.0
    %401 = vmatprep.subr.mxu0 0.0
    %402 = vmatpush2.xpose.msra.mxu0 0.0
    %403 = vmatprep.subr.mxu0 0.0
    %404 = vmatpush2.xpose.msra.mxu0 0.0
    %405 = vmatprep.subr.mxu0 0.0
    %406 = vmatpush2.xpose.msra.mxu0 0.0
    %407 = vmatprep.subr.mxu0 0.0
    %408 = vmatpush2.xpose.msra.mxu0 0.0
    %409 = vmatprep.subr.mxu0 0.0
    %410 = vmatpush2.xpose.msra.mxu0 0.0
    %411 = vmatprep.subr.mxu0 0.0
    %412 = vmatpush2.xpose.msra.mxu0 0.0
    %413 = vmatprep.subr.mxu0 0.0
    %414 = vmatpush2.xpose.msra.mxu0 0.0
    %415 = vmatprep.subr.mxu0 0.0
    %416 = vmatpush2.xpose.msra.mxu0 0.0
    %417 = vmatprep.subr.mxu0 0.0
    %418 = vmatpush2.xpose.msra.mxu0 0.0
    %419 = vmatprep.subr.mxu0 0.0
    %420 = vmatpush2.xpose.msra.mxu0 0.0
    %421 = vmatprep.subr.mxu0 0.0
    %422 = vmatpush2.xpose.msra.mxu0 0.0
    %423 = vmatprep.subr.mxu0 0.0
    %424 = vmatpush2.xpose.msra.mxu0 0.0
    %425 = vmatprep.subr.mxu0 0.0
    %426 = vmatpush2.xpose.msra.mxu0 0.0
    %427 = vmatprep.mubr.f32.mxu0 0.0
    %428 = vmatmul.mubr.f32.gmra.mxu0 %v273
    %v429 = vpop.f32.mrf.mxu0
    %v430 = vadd.f32 %v359, %v429
    %v431 = vpop.f32.mrf.mxu0
    %432 = vmatprep.mubr.f32.mxu0 0.0
    %433 = vmatmul.mubr.f32.gmra.mxu0 %v276
    %v434 = vpop.f32.mrf.mxu0
    %v435 = vadd.f32 %v359, %v434
    %v436 = vpop.f32.mrf.mxu0
    %437 = vdwg.mxu0
    %v438 = vlaneseq
    %v439 = vshrl.u32 %v438, 7
    %v440 = vsub.s32 0, %v439
    %v441 = vrot.slane %v267, %v440
    %v443 = vsel %vm143, %v262, 0
    %445 = vmatprep.subr.mxu0 0.0
    %446 = vmatpush1.xpose.msra.mxu0 0.0
    %447 = vmatprep.subr.mxu0 0.0
    %448 = vmatpush1.xpose.msra.mxu0 0.0
    %449 = vmatprep.subr.mxu0 0.0
    %450 = vmatpush1.xpose.msra.mxu0 0.0
    %451 = vmatprep.subr.mxu0 0.0
    %452 = vmatpush1.xpose.msra.mxu0 0.0
    %453 = vmatprep.subr.mxu0 0.0
    %454 = vmatpush1.xpose.msra.mxu0 0.0
    %455 = vmatprep.subr.mxu0 0.0
    %456 = vmatpush1.xpose.msra.mxu0 0.0
    %457 = vmatprep.subr.mxu0 0.0
    %458 = vmatpush1.xpose.msra.mxu0 0.0
    %459 = vmatprep.subr.mxu0 0.0
    %460 = vmatpush1.xpose.msra.mxu0 0.0
    %461 = vmatprep.subr.mxu0 0.0
    %462 = vmatpush1.xpose.msra.mxu0 0.0
    %463 = vmatprep.subr.mxu0 0.0
    %464 = vmatpush1.xpose.msra.mxu0 0.0
    %465 = vmatprep.subr.mxu0 0.0
    %466 = vmatpush1.xpose.msra.mxu0 0.0
    %467 = vmatprep.subr.mxu0 0.0
    %468 = vmatpush1.xpose.msra.mxu0 0.0
    %469 = vmatprep.subr.mxu0 0.0
    %470 = vmatpush1.xpose.msra.mxu0 0.0
    %471 = vmatprep.subr.mxu0 0.0
    %472 = vmatpush1.xpose.msra.mxu0 0.0
    %473 = vmatprep.subr.mxu0 0.0
    %474 = vmatpush1.xpose.msra.mxu0 0.0
    %475 = vmatprep.subr.mxu0 0.0
    %476 = vmatpush1.xpose.msra.mxu0 %v443
    %477 = vmatprep.subr.mxu0 0.0
    %478 = vmatpush2.xpose.msra.mxu0 0.0
    %479 = vmatprep.subr.mxu0 0.0
    %480 = vmatpush2.xpose.msra.mxu0 0.0
    %481 = vmatprep.subr.mxu0 0.0
    %482 = vmatpush2.xpose.msra.mxu0 0.0
    %483 = vmatprep.subr.mxu0 0.0
    %484 = vmatpush2.xpose.msra.mxu0 0.0
    %485 = vmatprep.subr.mxu0 0.0
    %486 = vmatpush2.xpose.msra.mxu0 0.0
    %487 = vmatprep.subr.mxu0 0.0
    %488 = vmatpush2.xpose.msra.mxu0 0.0
    %489 = vmatprep.subr.mxu0 0.0
    %490 = vmatpush2.xpose.msra.mxu0 0.0
    %491 = vmatprep.subr.mxu0 0.0
    %492 = vmatpush2.xpose.msra.mxu0 0.0
    %493 = vmatprep.subr.mxu0 0.0
    %494 = vmatpush2.xpose.msra.mxu0 0.0
    %495 = vmatprep.subr.mxu0 0.0
    %496 = vmatpush2.xpose.msra.mxu0 0.0
    %497 = vmatprep.subr.mxu0 0.0
    %498 = vmatpush2.xpose.msra.mxu0 0.0
    %499 = vmatprep.subr.mxu0 0.0
    %500 = vmatpush2.xpose.msra.mxu0 0.0
    %501 = vmatprep.subr.mxu0 0.0
    %502 = vmatpush2.xpose.msra.mxu0 0.0
    %503 = vmatprep.subr.mxu0 0.0
    %504 = vmatpush2.xpose.msra.mxu0 0.0
    %505 = vmatprep.subr.mxu0 0.0
    %506 = vmatpush2.xpose.msra.mxu0 0.0
    %507 = vmatprep.subr.mxu0 0.0
    %508 = vmatpush2.xpose.msra.mxu0 0.0
    %509 = vmatprep.mubr.f32.mxu0 0.0
    %510 = vmatmul.mubr.f32.gmra.mxu0 %v273
    %v511 = vpop.f32.mrf.mxu0
    %v512 = vadd.f32 %v441, %v511
    %v513 = vpop.f32.mrf.mxu0
    %514 = vmatprep.mubr.f32.mxu0 0.0
    %515 = vmatmul.mubr.f32.gmra.mxu0 %v276
    %v516 = vpop.f32.mrf.mxu0
    %v517 = vadd.f32 %v441, %v516
    %v518 = vpop.f32.mrf.mxu0
    %519 = vdwg.mxu0
    %vm520 = vcmask 64512
    %v522 = vsel %vm520, %v348, 0
    %v525 = vsel %vm520, %v353, 0
    %v528 = vsel %vm520, %v430, 0
    %v531 = vsel %vm520, %v435, 0
    %533 = vmatprep.subr.mxu0 0.0
    %534 = vmatpush1.xpose.msra.mxu0 0.0
    %535 = vmatprep.subr.mxu0 0.0
    %536 = vmatpush1.xpose.msra.mxu0 0.0
    %537 = vmatprep.subr.mxu0 0.0
    %538 = vmatpush1.xpose.msra.mxu0 0.0
    %539 = vmatprep.subr.mxu0 0.0
    %540 = vmatpush1.xpose.msra.mxu0 0.0
    %541 = vmatprep.subr.mxu0 0.0
    %542 = vmatpush1.xpose.msra.mxu0 0.0
    %543 = vmatprep.subr.mxu0 0.0
    %544 = vmatpush1.xpose.msra.mxu0 0.0
    %545 = vmatprep.subr.mxu0 0.0
    %546 = vmatpush1.xpose.msra.mxu0 0.0
    %547 = vmatprep.subr.mxu0 0.0
    %548 = vmatpush1.xpose.msra.mxu0 0.0
    %549 = vmatprep.subr.mxu0 0.0
    %550 = vmatpush1.xpose.msra.mxu0 0.0
    %551 = vmatprep.subr.mxu0 0.0
    %552 = vmatpush1.xpose.msra.mxu0 0.0
    %553 = vmatprep.subr.mxu0 0.0
    %554 = vmatpush1.xpose.msra.mxu0 0.0
    %555 = vmatprep.subr.mxu0 0.0
    %556 = vmatpush1.xpose.msra.mxu0 0.0
    %557 = vmatprep.subr.mxu0 0.0
    %558 = vmatpush1.xpose.msra.mxu0 0.0
    %559 = vmatprep.subr.mxu0 0.0
    %560 = vmatpush1.xpose.msra.mxu0 0.0
    %561 = vmatprep.subr.mxu0 0.0
    %562 = vmatpush1.xpose.msra.mxu0 %v531
    %563 = vmatprep.subr.mxu0 0.0
    %564 = vmatpush1.xpose.msra.mxu0 %v528
    %565 = vmatprep.subr.mxu0 0.0
    %566 = vmatpush2.xpose.msra.mxu0 0.0
    %567 = vmatprep.subr.mxu0 0.0
    %568 = vmatpush2.xpose.msra.mxu0 0.0
    %569 = vmatprep.subr.mxu0 0.0
    %570 = vmatpush2.xpose.msra.mxu0 0.0
    %571 = vmatprep.subr.mxu0 0.0
    %572 = vmatpush2.xpose.msra.mxu0 0.0
    %573 = vmatprep.subr.mxu0 0.0
    %574 = vmatpush2.xpose.msra.mxu0 0.0
    %575 = vmatprep.subr.mxu0 0.0
    %576 = vmatpush2.xpose.msra.mxu0 0.0
    %577 = vmatprep.subr.mxu0 0.0
    %578 = vmatpush2.xpose.msra.mxu0 0.0
    %579 = vmatprep.subr.mxu0 0.0
    %580 = vmatpush2.xpose.msra.mxu0 0.0
    %581 = vmatprep.subr.mxu0 0.0
    %582 = vmatpush2.xpose.msra.mxu0 0.0
    %583 = vmatprep.subr.mxu0 0.0
    %584 = vmatpush2.xpose.msra.mxu0 0.0
    %585 = vmatprep.subr.mxu0 0.0
    %586 = vmatpush2.xpose.msra.mxu0 0.0
    %587 = vmatprep.subr.mxu0 0.0
    %588 = vmatpush2.xpose.msra.mxu0 0.0
    %589 = vmatprep.subr.mxu0 0.0
    %590 = vmatpush2.xpose.msra.mxu0 0.0
    %591 = vmatprep.subr.mxu0 0.0
    %592 = vmatpush2.xpose.msra.mxu0 0.0
    %593 = vmatprep.subr.mxu0 0.0
    %594 = vmatpush2.xpose.msra.mxu0 0.0
    %595 = vmatprep.subr.mxu0 0.0
    %596 = vmatpush2.xpose.msra.mxu0 0.0
    %597 = vmatprep.mubr.f32.mxu0 0.0
    %598 = vmatmul.mubr.f32.gmra.mxu0 %v522
    %v599 = vpop.f32.mrf.mxu0
    %v600 = vadd.f32 0.0, %v599
    %v601 = vpop.f32.mrf.mxu0
    %602 = vmatprep.mubr.f32.mxu0 0.0
    %603 = vmatmul.mubr.f32.gmra.mxu0 %v525
    %v604 = vpop.f32.mrf.mxu0
    %v605 = vadd.f32 0.0, %v604
    %v606 = vpop.f32.mrf.mxu0
    %607 = vdwg.mxu0
    %v608 = vmul.f32 %v600, 0.35355338
    %v609 = vmul.f32 %v605, 0.35355338
    %v610 = vadd.f32 %v608, %v213
    %v611 = vadd.f32 %v609, %v214
    %vm612 = vcmask 80896
    %v613 = vsel %vm612, %v610, -inf
    %614 = vmax.xlane.f32.xlu0 %v613
    %v615 = vpop.xlane.xlu0 %614
    %vm616 = vcmask 74752
    %v617 = vsel %vm616, %v611, -inf
    %618 = vmax.xlane.f32.xlu0 %v617
    %v619 = vpop.xlane.xlu0 %618
    %v620 = vsub.f32 %v610, %v615
    %v621 = vsub.f32 %v611, %v619
    %v622 = vmul.f32 %v620, 1.442695
    %v623 = vpow.pop %v622
    %v624 = vmul.f32 %v621, 1.442695
    %v625 = vpow.pop %v624
    %v626 = vsel %vm612, %v623, 0.0
    %627 = vadd.xlane.f32.xlu0 %v626
    %v628 = vpop.xlane.xlu0 %627
    %v629 = vsel %vm616, %v625, 0.0
    %630 = vadd.xlane.f32.xlu0 %v629
    %v631 = vpop.xlane.xlu0 %630
    %v632 = vrcp.pop %v628
    %v633 = vrcp.pop %v631
    %v634 = vmul.f32 %v623, %v632
    %v635 = vmul.f32 %v625, %v633
    %v637 = vsel %vm612, %v634, 0
    %v640 = vsel %vm612, %v635, 0
    %vm642 = vcmask 1041408
    %v644 = vsel %vm642, %v517, 0
    %646 = vmatprep.subr.mxu0 0.0
    %647 = vmatpush1.msra.mxu0 0.0
    %648 = vmatprep.subr.mxu0 0.0
    %649 = vmatpush1.msra.mxu0 0.0
    %650 = vmatprep.subr.mxu0 0.0
    %651 = vmatpush1.msra.mxu0 0.0
    %652 = vmatprep.subr.mxu0 0.0
    %653 = vmatpush1.msra.mxu0 0.0
    %654 = vmatprep.subr.mxu0 0.0
    %655 = vmatpush1.msra.mxu0 0.0
    %656 = vmatprep.subr.mxu0 0.0
    %657 = vmatpush1.msra.mxu0 0.0
    %658 = vmatprep.subr.mxu0 0.0
    %659 = vmatpush1.msra.mxu0 0.0
    %660 = vmatprep.subr.mxu0 0.0
    %661 = vmatpush1.msra.mxu0 0.0
    %662 = vmatprep.subr.mxu0 0.0
    %663 = vmatpush1.msra.mxu0 0.0
    %664 = vmatprep.subr.mxu0 0.0
    %665 = vmatpush1.msra.mxu0 0.0
    %666 = vmatprep.subr.mxu0 0.0
    %667 = vmatpush1.msra.mxu0 0.0
    %668 = vmatprep.subr.mxu0 0.0
    %669 = vmatpush1.msra.mxu0 0.0
    %670 = vmatprep.subr.mxu0 0.0
    %671 = vmatpush1.msra.mxu0 0.0
    %672 = vmatprep.subr.mxu0 0.0
    %673 = vmatpush1.msra.mxu0 0.0
    %674 = vmatprep.subr.mxu0 0.0
    %675 = vmatpush1.msra.mxu0 %v644
    %676 = vmatprep.subr.mxu0 0.0
    %677 = vmatpush1.msra.mxu0 %v512
    %678 = vmatprep.subr.mxu0 0.0
    %679 = vmatpush2.msra.mxu0 0.0
    %680 = vmatprep.subr.mxu0 0.0
    %681 = vmatpush2.msra.mxu0 0.0
    %682 = vmatprep.subr.mxu0 0.0
    %683 = vmatpush2.msra.mxu0 0.0
    %684 = vmatprep.subr.mxu0 0.0
    %685 = vmatpush2.msra.mxu0 0.0
    %686 = vmatprep.subr.mxu0 0.0
    %687 = vmatpush2.msra.mxu0 0.0
    %688 = vmatprep.subr.mxu0 0.0
    %689 = vmatpush2.msra.mxu0 0.0
    %690 = vmatprep.subr.mxu0 0.0
    %691 = vmatpush2.msra.mxu0 0.0
    %692 = vmatprep.subr.mxu0 0.0
    %693 = vmatpush2.msra.mxu0 0.0
    %694 = vmatprep.subr.mxu0 0.0
    %695 = vmatpush2.msra.mxu0 0.0
    %696 = vmatprep.subr.mxu0 0.0
    %697 = vmatpush2.msra.mxu0 0.0
    %698 = vmatprep.subr.mxu0 0.0
    %699 = vmatpush2.msra.mxu0 0.0
    %700 = vmatprep.subr.mxu0 0.0
    %701 = vmatpush2.msra.mxu0 0.0
    %702 = vmatprep.subr.mxu0 0.0
    %703 = vmatpush2.msra.mxu0 0.0
    %704 = vmatprep.subr.mxu0 0.0
    %705 = vmatpush2.msra.mxu0 0.0
    %706 = vmatprep.subr.mxu0 0.0
    %707 = vmatpush2.msra.mxu0 0.0
    %708 = vmatprep.subr.mxu0 0.0
    %709 = vmatpush2.msra.mxu0 0.0
    %710 = vmatprep.mubr.f32.mxu0 0.0
    %711 = vmatmul.mubr.f32.gmra.mxu0 %v637
    %v712 = vpop.f32.mrf.mxu0
    %v713 = vadd.f32 0.0, %v712
    %v714 = vpop.f32.mrf.mxu0
    %715 = vmatprep.mubr.f32.mxu0 0.0
    %716 = vmatmul.mubr.f32.gmra.mxu0 %v640
    %v717 = vpop.f32.mrf.mxu0
    %v718 = vadd.f32 0.0, %v717
    %v719 = vpop.f32.mrf.mxu0
    %720 = vdwg.mxu0
    %v721 = vlaneseq
    %v722 = vshrl.u32 %v721, 7
    %v723 = vsub.s32 1, %v722
    %v724 = vrot.slane %v266, %v723
    %v726 = vsel %vm143, %v255, 0
    %728 = vmatprep.subr.mxu0 0.0
    %729 = vmatpush1.xpose.msra.mxu0 0.0
    %730 = vmatprep.subr.mxu0 0.0
    %731 = vmatpush1.xpose.msra.mxu0 0.0
    %732 = vmatprep.subr.mxu0 0.0
    %733 = vmatpush1.xpose.msra.mxu0 0.0
    %734 = vmatprep.subr.mxu0 0.0
    %735 = vmatpush1.xpose.msra.mxu0 0.0
    %736 = vmatprep.subr.mxu0 0.0
    %737 = vmatpush1.xpose.msra.mxu0 0.0
    %738 = vmatprep.subr.mxu0 0.0
    %739 = vmatpush1.xpose.msra.mxu0 0.0
    %740 = vmatprep.subr.mxu0 0.0
    %741 = vmatpush1.xpose.msra.mxu0 0.0
    %742 = vmatprep.subr.mxu0 0.0
    %743 = vmatpush1.xpose.msra.mxu0 0.0
    %744 = vmatprep.subr.mxu0 0.0
    %745 = vmatpush1.xpose.msra.mxu0 0.0
    %746 = vmatprep.subr.mxu0 0.0
    %747 = vmatpush1.xpose.msra.mxu0 0.0
    %748 = vmatprep.subr.mxu0 0.0
    %749 = vmatpush1.xpose.msra.mxu0 0.0
    %750 = vmatprep.subr.mxu0 0.0
    %751 = vmatpush1.xpose.msra.mxu0 0.0
    %752 = vmatprep.subr.mxu0 0.0
    %753 = vmatpush1.xpose.msra.mxu0 0.0
    %754 = vmatprep.subr.mxu0 0.0
    %755 = vmatpush1.xpose.msra.mxu0 0.0
    %756 = vmatprep.subr.mxu0 0.0
    %757 = vmatpush1.xpose.msra.mxu0 0.0
    %758 = vmatprep.subr.mxu0 0.0
    %759 = vmatpush1.xpose.msra.mxu0 %v726
    %760 = vmatprep.subr.mxu0 0.0
    %761 = vmatpush2.xpose.msra.mxu0 0.0
    %762 = vmatprep.subr.mxu0 0.0
    %763 = vmatpush2.xpose.msra.mxu0 0.0
    %764 = vmatprep.subr.mxu0 0.0
    %765 = vmatpush2.xpose.msra.mxu0 0.0
    %766 = vmatprep.subr.mxu0 0.0
    %767 = vmatpush2.xpose.msra.mxu0 0.0
    %768 = vmatprep.subr.mxu0 0.0
    %769 = vmatpush2.xpose.msra.mxu0 0.0
    %770 = vmatprep.subr.mxu0 0.0
    %771 = vmatpush2.xpose.msra.mxu0 0.0
    %772 = vmatprep.subr.mxu0 0.0
    %773 = vmatpush2.xpose.msra.mxu0 0.0
    %774 = vmatprep.subr.mxu0 0.0
    %775 = vmatpush2.xpose.msra.mxu0 0.0
    %776 = vmatprep.subr.mxu0 0.0
    %777 = vmatpush2.xpose.msra.mxu0 0.0
    %778 = vmatprep.subr.mxu0 0.0
    %779 = vmatpush2.xpose.msra.mxu0 0.0
    %780 = vmatprep.subr.mxu0 0.0
    %781 = vmatpush2.xpose.msra.mxu0 0.0
    %782 = vmatprep.subr.mxu0 0.0
    %783 = vmatpush2.xpose.msra.mxu0 0.0
    %784 = vmatprep.subr.mxu0 0.0
    %785 = vmatpush2.xpose.msra.mxu0 0.0
    %786 = vmatprep.subr.mxu0 0.0
    %787 = vmatpush2.xpose.msra.mxu0 0.0
    %788 = vmatprep.subr.mxu0 0.0
    %789 = vmatpush2.xpose.msra.mxu0 0.0
    %790 = vmatprep.subr.mxu0 0.0
    %791 = vmatpush2.xpose.msra.mxu0 0.0
    %792 = vmatprep.mubr.f32.mxu0 0.0
    %793 = vmatmul.mubr.f32.gmra.mxu0 %v273
    %v794 = vpop.f32.mrf.mxu0
    %v795 = vadd.f32 %v724, %v794
    %v796 = vpop.f32.mrf.mxu0
    %797 = vmatprep.mubr.f32.mxu0 0.0
    %798 = vmatmul.mubr.f32.gmra.mxu0 %v276
    %v799 = vpop.f32.mrf.mxu0
    %v800 = vadd.f32 %v724, %v799
    %v801 = vpop.f32.mrf.mxu0
    %802 = vdwg.mxu0
    %v803 = vlaneseq
    %v804 = vshrl.u32 %v803, 7
    %v805 = vsub.s32 5, %v804
    %v806 = vrot.slane %v266, %v805
    %v808 = vsel %vm143, %v259, 0
    %810 = vmatprep.subr.mxu0 0.0
    %811 = vmatpush1.xpose.msra.mxu0 0.0
    %812 = vmatprep.subr.mxu0 0.0
    %813 = vmatpush1.xpose.msra.mxu0 0.0
    %814 = vmatprep.subr.mxu0 0.0
    %815 = vmatpush1.xpose.msra.mxu0 0.0
    %816 = vmatprep.subr.mxu0 0.0
    %817 = vmatpush1.xpose.msra.mxu0 0.0
    %818 = vmatprep.subr.mxu0 0.0
    %819 = vmatpush1.xpose.msra.mxu0 0.0
    %820 = vmatprep.subr.mxu0 0.0
    %821 = vmatpush1.xpose.msra.mxu0 0.0
    %822 = vmatprep.subr.mxu0 0.0
    %823 = vmatpush1.xpose.msra.mxu0 0.0
    %824 = vmatprep.subr.mxu0 0.0
    %825 = vmatpush1.xpose.msra.mxu0 0.0
    %826 = vmatprep.subr.mxu0 0.0
    %827 = vmatpush1.xpose.msra.mxu0 0.0
    %828 = vmatprep.subr.mxu0 0.0
    %829 = vmatpush1.xpose.msra.mxu0 0.0
    %830 = vmatprep.subr.mxu0 0.0
    %831 = vmatpush1.xpose.msra.mxu0 0.0
    %832 = vmatprep.subr.mxu0 0.0
    %833 = vmatpush1.xpose.msra.mxu0 0.0
    %834 = vmatprep.subr.mxu0 0.0
    %835 = vmatpush1.xpose.msra.mxu0 0.0
    %836 = vmatprep.subr.mxu0 0.0
    %837 = vmatpush1.xpose.msra.mxu0 0.0
    %838 = vmatprep.subr.mxu0 0.0
    %839 = vmatpush1.xpose.msra.mxu0 0.0
    %840 = vmatprep.subr.mxu0 0.0
    %841 = vmatpush1.xpose.msra.mxu0 %v808
    %842 = vmatprep.subr.mxu0 0.0
    %843 = vmatpush2.xpose.msra.mxu0 0.0
    %844 = vmatprep.subr.mxu0 0.0
    %845 = vmatpush2.xpose.msra.mxu0 0.0
    %846 = vmatprep.subr.mxu0 0.0
    %847 = vmatpush2.xpose.msra.mxu0 0.0
    %848 = vmatprep.subr.mxu0 0.0
    %849 = vmatpush2.xpose.msra.mxu0 0.0
    %850 = vmatprep.subr.mxu0 0.0
    %851 = vmatpush2.xpose.msra.mxu0 0.0
    %852 = vmatprep.subr.mxu0 0.0
    %853 = vmatpush2.xpose.msra.mxu0 0.0
    %854 = vmatprep.subr.mxu0 0.0
    %855 = vmatpush2.xpose.msra.mxu0 0.0
    %856 = vmatprep.subr.mxu0 0.0
    %857 = vmatpush2.xpose.msra.mxu0 0.0
    %858 = vmatprep.subr.mxu0 0.0
    %859 = vmatpush2.xpose.msra.mxu0 0.0
    %860 = vmatprep.subr.mxu0 0.0
    %861 = vmatpush2.xpose.msra.mxu0 0.0
    %862 = vmatprep.subr.mxu0 0.0
    %863 = vmatpush2.xpose.msra.mxu0 0.0
    %864 = vmatprep.subr.mxu0 0.0
    %865 = vmatpush2.xpose.msra.mxu0 0.0
    %866 = vmatprep.subr.mxu0 0.0
    %867 = vmatpush2.xpose.msra.mxu0 0.0
    %868 = vmatprep.subr.mxu0 0.0
    %869 = vmatpush2.xpose.msra.mxu0 0.0
    %870 = vmatprep.subr.mxu0 0.0
    %871 = vmatpush2.xpose.msra.mxu0 0.0
    %872 = vmatprep.subr.mxu0 0.0
    %873 = vmatpush2.xpose.msra.mxu0 0.0
    %874 = vmatprep.mubr.f32.mxu0 0.0
    %875 = vmatmul.mubr.f32.gmra.mxu0 %v273
    %v876 = vpop.f32.mrf.mxu0
    %v877 = vadd.f32 %v806, %v876
    %v878 = vpop.f32.mrf.mxu0
    %879 = vmatprep.mubr.f32.mxu0 0.0
    %880 = vmatmul.mubr.f32.gmra.mxu0 %v276
    %v881 = vpop.f32.mrf.mxu0
    %v882 = vadd.f32 %v806, %v881
    %v883 = vpop.f32.mrf.mxu0
    %884 = vdwg.mxu0
    %v885 = vlaneseq
    %v886 = vshrl.u32 %v885, 7
    %v887 = vsub.s32 1, %v886
    %v888 = vrot.slane %v267, %v887
    %v890 = vsel %vm143, %v263, 0
    %892 = vmatprep.subr.mxu0 0.0
    %893 = vmatpush1.xpose.msra.mxu0 0.0
    %894 = vmatprep.subr.mxu0 0.0
    %895 = vmatpush1.xpose.msra.mxu0 0.0
    %896 = vmatprep.subr.mxu0 0.0
    %897 = vmatpush1.xpose.msra.mxu0 0.0
    %898 = vmatprep.subr.mxu0 0.0
    %899 = vmatpush1.xpose.msra.mxu0 0.0
    %900 = vmatprep.subr.mxu0 0.0
    %901 = vmatpush1.xpose.msra.mxu0 0.0
    %902 = vmatprep.subr.mxu0 0.0
    %903 = vmatpush1.xpose.msra.mxu0 0.0
    %904 = vmatprep.subr.mxu0 0.0
    %905 = vmatpush1.xpose.msra.mxu0 0.0
    %906 = vmatprep.subr.mxu0 0.0
    %907 = vmatpush1.xpose.msra.mxu0 0.0
    %908 = vmatprep.subr.mxu0 0.0
    %909 = vmatpush1.xpose.msra.mxu0 0.0
    %910 = vmatprep.subr.mxu0 0.0
    %911 = vmatpush1.xpose.msra.mxu0 0.0
    %912 = vmatprep.subr.mxu0 0.0
    %913 = vmatpush1.xpose.msra.mxu0 0.0
    %914 = vmatprep.subr.mxu0 0.0
    %915 = vmatpush1.xpose.msra.mxu0 0.0
    %916 = vmatprep.subr.mxu0 0.0
    %917 = vmatpush1.xpose.msra.mxu0 0.0
    %918 = vmatprep.subr.mxu0 0.0
    %919 = vmatpush1.xpose.msra.mxu0 0.0
    %920 = vmatprep.subr.mxu0 0.0
    %921 = vmatpush1.xpose.msra.mxu0 0.0
    %922 = vmatprep.subr.mxu0 0.0
    %923 = vmatpush1.xpose.msra.mxu0 %v890
    %924 = vmatprep.subr.mxu0 0.0
    %925 = vmatpush2.xpose.msra.mxu0 0.0
    %926 = vmatprep.subr.mxu0 0.0
    %927 = vmatpush2.xpose.msra.mxu0 0.0
    %928 = vmatprep.subr.mxu0 0.0
    %929 = vmatpush2.xpose.msra.mxu0 0.0
    %930 = vmatprep.subr.mxu0 0.0
    %931 = vmatpush2.xpose.msra.mxu0 0.0
    %932 = vmatprep.subr.mxu0 0.0
    %933 = vmatpush2.xpose.msra.mxu0 0.0
    %934 = vmatprep.subr.mxu0 0.0
    %935 = vmatpush2.xpose.msra.mxu0 0.0
    %936 = vmatprep.subr.mxu0 0.0
    %937 = vmatpush2.xpose.msra.mxu0 0.0
    %938 = vmatprep.subr.mxu0 0.0
    %939 = vmatpush2.xpose.msra.mxu0 0.0
    %940 = vmatprep.subr.mxu0 0.0
    %941 = vmatpush2.xpose.msra.mxu0 0.0
    %942 = vmatprep.subr.mxu0 0.0
    %943 = vmatpush2.xpose.msra.mxu0 0.0
    %944 = vmatprep.subr.mxu0 0.0
    %945 = vmatpush2.xpose.msra.mxu0 0.0
    %946 = vmatprep.subr.mxu0 0.0
    %947 = vmatpush2.xpose.msra.mxu0 0.0
    %948 = vmatprep.subr.mxu0 0.0
    %949 = vmatpush2.xpose.msra.mxu0 0.0
    %950 = vmatprep.subr.mxu0 0.0
    %951 = vmatpush2.xpose.msra.mxu0 0.0
    %952 = vmatprep.subr.mxu0 0.0
    %953 = vmatpush2.xpose.msra.mxu0 0.0
    %954 = vmatprep.subr.mxu0 0.0
    %955 = vmatpush2.xpose.msra.mxu0 0.0
    %956 = vmatprep.mubr.f32.mxu0 0.0
    %957 = vmatmul.mubr.f32.gmra.mxu0 %v273
    %v958 = vpop.f32.mrf.mxu0
    %v959 = vadd.f32 %v888, %v958
    %v960 = vpop.f32.mrf.mxu0
    %961 = vmatprep.mubr.f32.mxu0 0.0
    %962 = vmatmul.mubr.f32.gmra.mxu0 %v276
    %v963 = vpop.f32.mrf.mxu0
    %v964 = vadd.f32 %v888, %v963
    %v965 = vpop.f32.mrf.mxu0
    %966 = vdwg.mxu0
    %v968 = vsel %vm520, %v795, 0
    %v971 = vsel %vm520, %v800, 0
    %v974 = vsel %vm520, %v877, 0
    %v977 = vsel %vm520, %v882, 0
    %979 = vmatprep.subr.mxu0 0.0
    %980 = vmatpush1.xpose.msra.mxu0 0.0
    %981 = vmatprep.subr.mxu0 0.0
    %982 = vmatpush1.xpose.msra.mxu0 0.0
    %983 = vmatprep.subr.mxu0 0.0
    %984 = vmatpush1.xpose.msra.mxu0 0.0
    %985 = vmatprep.subr.mxu0 0.0
    %986 = vmatpush1.xpose.msra.mxu0 0.0
    %987 = vmatprep.subr.mxu0 0.0
    %988 = vmatpush1.xpose.msra.mxu0 0.0
    %989 = vmatprep.subr.mxu0 0.0
    %990 = vmatpush1.xpose.msra.mxu0 0.0
    %991 = vmatprep.subr.mxu0 0.0
    %992 = vmatpush1.xpose.msra.mxu0 0.0
    %993 = vmatprep.subr.mxu0 0.0
    %994 = vmatpush1.xpose.msra.mxu0 0.0
    %995 = vmatprep.subr.mxu0 0.0
    %996 = vmatpush1.xpose.msra.mxu0 0.0
    %997 = vmatprep.subr.mxu0 0.0
    %998 = vmatpush1.xpose.msra.mxu0 0.0
    %999 = vmatprep.subr.mxu0 0.0
    %1000 = vmatpush1.xpose.msra.mxu0 0.0
    %1001 = vmatprep.subr.mxu0 0.0
    %1002 = vmatpush1.xpose.msra.mxu0 0.0
    %1003 = vmatprep.subr.mxu0 0.0
    %1004 = vmatpush1.xpose.msra.mxu0 0.0
    %1005 = vmatprep.subr.mxu0 0.0
    %1006 = vmatpush1.xpose.msra.mxu0 0.0
    %1007 = vmatprep.subr.mxu0 0.0
    %1008 = vmatpush1.xpose.msra.mxu0 %v977
    %1009 = vmatprep.subr.mxu0 0.0
    %1010 = vmatpush1.xpose.msra.mxu0 %v974
    %1011 = vmatprep.subr.mxu0 0.0
    %1012 = vmatpush2.xpose.msra.mxu0 0.0
    %1013 = vmatprep.subr.mxu0 0.0
    %1014 = vmatpush2.xpose.msra.mxu0 0.0
    %1015 = vmatprep.subr.mxu0 0.0
    %1016 = vmatpush2.xpose.msra.mxu0 0.0
    %1017 = vmatprep.subr.mxu0 0.0
    %1018 = vmatpush2.xpose.msra.mxu0 0.0
    %1019 = vmatprep.subr.mxu0 0.0
    %1020 = vmatpush2.xpose.msra.mxu0 0.0
    %1021 = vmatprep.subr.mxu0 0.0
    %1022 = vmatpush2.xpose.msra.mxu0 0.0
    %1023 = vmatprep.subr.mxu0 0.0
    %1024 = vmatpush2.xpose.msra.mxu0 0.0
    %1025 = vmatprep.subr.mxu0 0.0
    %1026 = vmatpush2.xpose.msra.mxu0 0.0
    %1027 = vmatprep.subr.mxu0 0.0
    %1028 = vmatpush2.xpose.msra.mxu0 0.0
    %1029 = vmatprep.subr.mxu0 0.0
    %1030 = vmatpush2.xpose.msra.mxu0 0.0
    %1031 = vmatprep.subr.mxu0 0.0
    %1032 = vmatpush2.xpose.msra.mxu0 0.0
    %1033 = vmatprep.subr.mxu0 0.0
    %1034 = vmatpush2.xpose.msra.mxu0 0.0
    %1035 = vmatprep.subr.mxu0 0.0
    %1036 = vmatpush2.xpose.msra.mxu0 0.0
    %1037 = vmatprep.subr.mxu0 0.0
    %1038 = vmatpush2.xpose.msra.mxu0 0.0
    %1039 = vmatprep.subr.mxu0 0.0
    %1040 = vmatpush2.xpose.msra.mxu0 0.0
    %1041 = vmatprep.subr.mxu0 0.0
    %1042 = vmatpush2.xpose.msra.mxu0 0.0
    %1043 = vmatprep.mubr.f32.mxu0 0.0
    %1044 = vmatmul.mubr.f32.gmra.mxu0 %v968
    %v1045 = vpop.f32.mrf.mxu0
    %v1046 = vadd.f32 0.0, %v1045
    %v1047 = vpop.f32.mrf.mxu0
    %1048 = vmatprep.mubr.f32.mxu0 0.0
    %1049 = vmatmul.mubr.f32.gmra.mxu0 %v971
    %v1050 = vpop.f32.mrf.mxu0
    %v1051 = vadd.f32 0.0, %v1050
    %v1052 = vpop.f32.mrf.mxu0
    %1053 = vdwg.mxu0
    %v1054 = vmul.f32 %v1046, 0.35355338
    %v1055 = vmul.f32 %v1051, 0.35355338
    %v1056 = vadd.f32 %v1054, %v213
    %v1057 = vadd.f32 %v1055, %v214
    %v1058 = vsel %vm612, %v1056, -inf
    %1059 = vmax.xlane.f32.xlu0 %v1058
    %v1060 = vpop.xlane.xlu0 %1059
    %v1061 = vsel %vm616, %v1057, -inf
    %1062 = vmax.xlane.f32.xlu0 %v1061
    %v1063 = vpop.xlane.xlu0 %1062
    %v1064 = vsub.f32 %v1056, %v1060
    %v1065 = vsub.f32 %v1057, %v1063
    %v1066 = vmul.f32 %v1064, 1.442695
    %v1067 = vpow.pop %v1066
    %v1068 = vmul.f32 %v1065, 1.442695
    %v1069 = vpow.pop %v1068
    %v1070 = vsel %vm612, %v1067, 0.0
    %1071 = vadd.xlane.f32.xlu0 %v1070
    %v1072 = vpop.xlane.xlu0 %1071
    %v1073 = vsel %vm616, %v1069, 0.0
    %1074 = vadd.xlane.f32.xlu0 %v1073
    %v1075 = vpop.xlane.xlu0 %1074
    %v1076 = vrcp.pop %v1072
    %v1077 = vrcp.pop %v1075
    %v1078 = vmul.f32 %v1067, %v1076
    %v1079 = vmul.f32 %v1069, %v1077
    %v1081 = vsel %vm612, %v1078, 0
    %v1084 = vsel %vm612, %v1079, 0
    %v1087 = vsel %vm642, %v964, 0
    %1089 = vmatprep.subr.mxu0 0.0
    %1090 = vmatpush1.msra.mxu0 0.0
    %1091 = vmatprep.subr.mxu0 0.0
    %1092 = vmatpush1.msra.mxu0 0.0
    %1093 = vmatprep.subr.mxu0 0.0
    %1094 = vmatpush1.msra.mxu0 0.0
    %1095 = vmatprep.subr.mxu0 0.0
    %1096 = vmatpush1.msra.mxu0 0.0
    %1097 = vmatprep.subr.mxu0 0.0
    %1098 = vmatpush1.msra.mxu0 0.0
    %1099 = vmatprep.subr.mxu0 0.0
    %1100 = vmatpush1.msra.mxu0 0.0
    %1101 = vmatprep.subr.mxu0 0.0
    %1102 = vmatpush1.msra.mxu0 0.0
    %1103 = vmatprep.subr.mxu0 0.0
    %1104 = vmatpush1.msra.mxu0 0.0
    %1105 = vmatprep.subr.mxu0 0.0
    %1106 = vmatpush1.msra.mxu0 0.0
    %1107 = vmatprep.subr.mxu0 0.0
    %1108 = vmatpush1.msra.mxu0 0.0
    %1109 = vmatprep.subr.mxu0 0.0
    %1110 = vmatpush1.msra.mxu0 0.0
    %1111 = vmatprep.subr.mxu0 0.0
    %1112 = vmatpush1.msra.mxu0 0.0
    %1113 = vmatprep.subr.mxu0 0.0
    %1114 = vmatpush1.msra.mxu0 0.0
    %1115 = vmatprep.subr.mxu0 0.0
    %1116 = vmatpush1.msra.mxu0 0.0
    %1117 = vmatprep.subr.mxu0 0.0
    %1118 = vmatpush1.msra.mxu0 %v1087
    %1119 = vmatprep.subr.mxu0 0.0
    %1120 = vmatpush1.msra.mxu0 %v959
    %1121 = vmatprep.subr.mxu0 0.0
    %1122 = vmatpush2.msra.mxu0 0.0
    %1123 = vmatprep.subr.mxu0 0.0
    %1124 = vmatpush2.msra.mxu0 0.0
    %1125 = vmatprep.subr.mxu0 0.0
    %1126 = vmatpush2.msra.mxu0 0.0
    %1127 = vmatprep.subr.mxu0 0.0
    %1128 = vmatpush2.msra.mxu0 0.0
    %1129 = vmatprep.subr.mxu0 0.0
    %1130 = vmatpush2.msra.mxu0 0.0
    %1131 = vmatprep.subr.mxu0 0.0
    %1132 = vmatpush2.msra.mxu0 0.0
    %1133 = vmatprep.subr.mxu0 0.0
    %1134 = vmatpush2.msra.mxu0 0.0
    %1135 = vmatprep.subr.mxu0 0.0
    %1136 = vmatpush2.msra.mxu0 0.0
    %1137 = vmatprep.subr.mxu0 0.0
    %1138 = vmatpush2.msra.mxu0 0.0
    %1139 = vmatprep.subr.mxu0 0.0
    %1140 = vmatpush2.msra.mxu0 0.0
    %1141 = vmatprep.subr.mxu0 0.0
    %1142 = vmatpush2.msra.mxu0 0.0
    %1143 = vmatprep.subr.mxu0 0.0
    %1144 = vmatpush2.msra.mxu0 0.0
    %1145 = vmatprep.subr.mxu0 0.0
    %1146 = vmatpush2.msra.mxu0 0.0
    %1147 = vmatprep.subr.mxu0 0.0
    %1148 = vmatpush2.msra.mxu0 0.0
    %1149 = vmatprep.subr.mxu0 0.0
    %1150 = vmatpush2.msra.mxu0 0.0
    %1151 = vmatprep.subr.mxu0 0.0
    %1152 = vmatpush2.msra.mxu0 0.0
    %1153 = vmatprep.mubr.f32.mxu0 0.0
    %1154 = vmatmul.mubr.f32.gmra.mxu0 %v1081
    %v1155 = vpop.f32.mrf.mxu0
    %v1156 = vadd.f32 0.0, %v1155
    %v1157 = vpop.f32.mrf.mxu0
    %1158 = vmatprep.mubr.f32.mxu0 0.0
    %1159 = vmatmul.mubr.f32.gmra.mxu0 %v1084
    %v1160 = vpop.f32.mrf.mxu0
    %v1161 = vadd.f32 0.0, %v1160
    %v1162 = vpop.f32.mrf.mxu0
    %1163 = vdwg.mxu0
    %v1164 = vlaneseq
    %v1165 = vshrl.u32 %v1164, 7
    %v1166 = vsub.s32 2, %v1165
    %v1167 = vrot.slane %v266, %v1166
    %v1169 = vsel %vm143, %v256, 0
    %1171 = vmatprep.subr.mxu0 0.0
    %1172 = vmatpush1.xpose.msra.mxu0 0.0
    %1173 = vmatprep.subr.mxu0 0.0
    %1174 = vmatpush1.xpose.msra.mxu0 0.0
    %1175 = vmatprep.subr.mxu0 0.0
    %1176 = vmatpush1.xpose.msra.mxu0 0.0
    %1177 = vmatprep.subr.mxu0 0.0
    %1178 = vmatpush1.xpose.msra.mxu0 0.0
    %1179 = vmatprep.subr.mxu0 0.0
    %1180 = vmatpush1.xpose.msra.mxu0 0.0
    %1181 = vmatprep.subr.mxu0 0.0
    %1182 = vmatpush1.xpose.msra.mxu0 0.0
    %1183 = vmatprep.subr.mxu0 0.0
    %1184 = vmatpush1.xpose.msra.mxu0 0.0
    %1185 = vmatprep.subr.mxu0 0.0
    %1186 = vmatpush1.xpose.msra.mxu0 0.0
    %1187 = vmatprep.subr.mxu0 0.0
    %1188 = vmatpush1.xpose.msra.mxu0 0.0
    %1189 = vmatprep.subr.mxu0 0.0
    %1190 = vmatpush1.xpose.msra.mxu0 0.0
    %1191 = vmatprep.subr.mxu0 0.0
    %1192 = vmatpush1.xpose.msra.mxu0 0.0
    %1193 = vmatprep.subr.mxu0 0.0
    %1194 = vmatpush1.xpose.msra.mxu0 0.0
    %1195 = vmatprep.subr.mxu0 0.0
    %1196 = vmatpush1.xpose.msra.mxu0 0.0
    %1197 = vmatprep.subr.mxu0 0.0
    %1198 = vmatpush1.xpose.msra.mxu0 0.0
    %1199 = vmatprep.subr.mxu0 0.0
    %1200 = vmatpush1.xpose.msra.mxu0 0.0
    %1201 = vmatprep.subr.mxu0 0.0
    %1202 = vmatpush1.xpose.msra.mxu0 %v1169
    %1203 = vmatprep.subr.mxu0 0.0
    %1204 = vmatpush2.xpose.msra.mxu0 0.0
    %1205 = vmatprep.subr.mxu0 0.0
    %1206 = vmatpush2.xpose.msra.mxu0 0.0
    %1207 = vmatprep.subr.mxu0 0.0
    %1208 = vmatpush2.xpose.msra.mxu0 0.0
    %1209 = vmatprep.subr.mxu0 0.0
    %1210 = vmatpush2.xpose.msra.mxu0 0.0
    %1211 = vmatprep.subr.mxu0 0.0
    %1212 = vmatpush2.xpose.msra.mxu0 0.0
    %1213 = vmatprep.subr.mxu0 0.0
    %1214 = vmatpush2.xpose.msra.mxu0 0.0
    %1215 = vmatprep.subr.mxu0 0.0
    %1216 = vmatpush2.xpose.msra.mxu0 0.0
    %1217 = vmatprep.subr.mxu0 0.0
    %1218 = vmatpush2.xpose.msra.mxu0 0.0
    %1219 = vmatprep.subr.mxu0 0.0
    %1220 = vmatpush2.xpose.msra.mxu0 0.0
    %1221 = vmatprep.subr.mxu0 0.0
    %1222 = vmatpush2.xpose.msra.mxu0 0.0
    %1223 = vmatprep.subr.mxu0 0.0
    %1224 = vmatpush2.xpose.msra.mxu0 0.0
    %1225 = vmatprep.subr.mxu0 0.0
    %1226 = vmatpush2.xpose.msra.mxu0 0.0
    %1227 = vmatprep.subr.mxu0 0.0
    %1228 = vmatpush2.xpose.msra.mxu0 0.0
    %1229 = vmatprep.subr.mxu0 0.0
    %1230 = vmatpush2.xpose.msra.mxu0 0.0
    %1231 = vmatprep.subr.mxu0 0.0
    %1232 = vmatpush2.xpose.msra.mxu0 0.0
    %1233 = vmatprep.subr.mxu0 0.0
    %1234 = vmatpush2.xpose.msra.mxu0 0.0
    %1235 = vmatprep.mubr.f32.mxu0 0.0
    %1236 = vmatmul.mubr.f32.gmra.mxu0 %v273
    %v1237 = vpop.f32.mrf.mxu0
    %v1238 = vadd.f32 %v1167, %v1237
    %v1239 = vpop.f32.mrf.mxu0
    %1240 = vmatprep.mubr.f32.mxu0 0.0
    %1241 = vmatmul.mubr.f32.gmra.mxu0 %v276
    %v1242 = vpop.f32.mrf.mxu0
    %v1243 = vadd.f32 %v1167, %v1242
    %v1244 = vpop.f32.mrf.mxu0
    %1245 = vdwg.mxu0
    %v1246 = vlaneseq
    %v1247 = vshrl.u32 %v1246, 7
    %v1248 = vsub.s32 6, %v1247
    %v1249 = vrot.slane %v266, %v1248
    %v1251 = vsel %vm143, %v260, 0
    %1253 = vmatprep.subr.mxu0 0.0
    %1254 = vmatpush1.xpose.msra.mxu0 0.0
    %1255 = vmatprep.subr.mxu0 0.0
    %1256 = vmatpush1.xpose.msra.mxu0 0.0
    %1257 = vmatprep.subr.mxu0 0.0
    %1258 = vmatpush1.xpose.msra.mxu0 0.0
    %1259 = vmatprep.subr.mxu0 0.0
    %1260 = vmatpush1.xpose.msra.mxu0 0.0
    %1261 = vmatprep.subr.mxu0 0.0
    %1262 = vmatpush1.xpose.msra.mxu0 0.0
    %1263 = vmatprep.subr.mxu0 0.0
    %1264 = vmatpush1.xpose.msra.mxu0 0.0
    %1265 = vmatprep.subr.mxu0 0.0
    %1266 = vmatpush1.xpose.msra.mxu0 0.0
    %1267 = vmatprep.subr.mxu0 0.0
    %1268 = vmatpush1.xpose.msra.mxu0 0.0
    %1269 = vmatprep.subr.mxu0 0.0
    %1270 = vmatpush1.xpose.msra.mxu0 0.0
    %1271 = vmatprep.subr.mxu0 0.0
    %1272 = vmatpush1.xpose.msra.mxu0 0.0
    %1273 = vmatprep.subr.mxu0 0.0
    %1274 = vmatpush1.xpose.msra.mxu0 0.0
    %1275 = vmatprep.subr.mxu0 0.0
    %1276 = vmatpush1.xpose.msra.mxu0 0.0
    %1277 = vmatprep.subr.mxu0 0.0
    %1278 = vmatpush1.xpose.msra.mxu0 0.0
    %1279 = vmatprep.subr.mxu0 0.0
    %1280 = vmatpush1.xpose.msra.mxu0 0.0
    %1281 = vmatprep.subr.mxu0 0.0
    %1282 = vmatpush1.xpose.msra.mxu0 0.0
    %1283 = vmatprep.subr.mxu0 0.0
    %1284 = vmatpush1.xpose.msra.mxu0 %v1251
    %1285 = vmatprep.subr.mxu0 0.0
    %1286 = vmatpush2.xpose.msra.mxu0 0.0
    %1287 = vmatprep.subr.mxu0 0.0
    %1288 = vmatpush2.xpose.msra.mxu0 0.0
    %1289 = vmatprep.subr.mxu0 0.0
    %1290 = vmatpush2.xpose.msra.mxu0 0.0
    %1291 = vmatprep.subr.mxu0 0.0
    %1292 = vmatpush2.xpose.msra.mxu0 0.0
    %1293 = vmatprep.subr.mxu0 0.0
    %1294 = vmatpush2.xpose.msra.mxu0 0.0
    %1295 = vmatprep.subr.mxu0 0.0
    %1296 = vmatpush2.xpose.msra.mxu0 0.0
    %1297 = vmatprep.subr.mxu0 0.0
    %1298 = vmatpush2.xpose.msra.mxu0 0.0
    %1299 = vmatprep.subr.mxu0 0.0
    %1300 = vmatpush2.xpose.msra.mxu0 0.0
    %1301 = vmatprep.subr.mxu0 0.0
    %1302 = vmatpush2.xpose.msra.mxu0 0.0
    %1303 = vmatprep.subr.mxu0 0.0
    %1304 = vmatpush2.xpose.msra.mxu0 0.0
    %1305 = vmatprep.subr.mxu0 0.0
    %1306 = vmatpush2.xpose.msra.mxu0 0.0
    %1307 = vmatprep.subr.mxu0 0.0
    %1308 = vmatpush2.xpose.msra.mxu0 0.0
    %1309 = vmatprep.subr.mxu0 0.0
    %1310 = vmatpush2.xpose.msra.mxu0 0.0
    %1311 = vmatprep.subr.mxu0 0.0
    %1312 = vmatpush2.xpose.msra.mxu0 0.0
    %1313 = vmatprep.subr.mxu0 0.0
    %1314 = vmatpush2.xpose.msra.mxu0 0.0
    %1315 = vmatprep.subr.mxu0 0.0
    %1316 = vmatpush2.xpose.msra.mxu0 0.0
    %1317 = vmatprep.mubr.f32.mxu0 0.0
    %1318 = vmatmul.mubr.f32.gmra.mxu0 %v273
    %v1319 = vpop.f32.mrf.mxu0
    %v1320 = vadd.f32 %v1249, %v1319
    %v1321 = vpop.f32.mrf.mxu0
    %1322 = vmatprep.mubr.f32.mxu0 0.0
    %1323 = vmatmul.mubr.f32.gmra.mxu0 %v276
    %v1324 = vpop.f32.mrf.mxu0
    %v1325 = vadd.f32 %v1249, %v1324
    %v1326 = vpop.f32.mrf.mxu0
    %1327 = vdwg.mxu0
    %v1328 = vlaneseq
    %v1329 = vshrl.u32 %v1328, 7
    %v1330 = vsub.s32 2, %v1329
    %v1331 = vrot.slane %v267, %v1330
    %v1333 = vsel %vm143, %v264, 0
    %1335 = vmatprep.subr.mxu0 0.0
    %1336 = vmatpush1.xpose.msra.mxu0 0.0
    %1337 = vmatprep.subr.mxu0 0.0
    %1338 = vmatpush1.xpose.msra.mxu0 0.0
    %1339 = vmatprep.subr.mxu0 0.0
    %1340 = vmatpush1.xpose.msra.mxu0 0.0
    %1341 = vmatprep.subr.mxu0 0.0
    %1342 = vmatpush1.xpose.msra.mxu0 0.0
    %1343 = vmatprep.subr.mxu0 0.0
    %1344 = vmatpush1.xpose.msra.mxu0 0.0
    %1345 = vmatprep.subr.mxu0 0.0
    %1346 = vmatpush1.xpose.msra.mxu0 0.0
    %1347 = vmatprep.subr.mxu0 0.0
    %1348 = vmatpush1.xpose.msra.mxu0 0.0
    %1349 = vmatprep.subr.mxu0 0.0
    %1350 = vmatpush1.xpose.msra.mxu0 0.0
    %1351 = vmatprep.subr.mxu0 0.0
    %1352 = vmatpush1.xpose.msra.mxu0 0.0
    %1353 = vmatprep.subr.mxu0 0.0
    %1354 = vmatpush1.xpose.msra.mxu0 0.0
    %1355 = vmatprep.subr.mxu0 0.0
    %1356 = vmatpush1.xpose.msra.mxu0 0.0
    %1357 = vmatprep.subr.mxu0 0.0
    %1358 = vmatpush1.xpose.msra.mxu0 0.0
    %1359 = vmatprep.subr.mxu0 0.0
    %1360 = vmatpush1.xpose.msra.mxu0 0.0
    %1361 = vmatprep.subr.mxu0 0.0
    %1362 = vmatpush1.xpose.msra.mxu0 0.0
    %1363 = vmatprep.subr.mxu0 0.0
    %1364 = vmatpush1.xpose.msra.mxu0 0.0
    %1365 = vmatprep.subr.mxu0 0.0
    %1366 = vmatpush1.xpose.msra.mxu0 %v1333
    %1367 = vmatprep.subr.mxu0 0.0
    %1368 = vmatpush2.xpose.msra.mxu0 0.0
    %1369 = vmatprep.subr.mxu0 0.0
    %1370 = vmatpush2.xpose.msra.mxu0 0.0
    %1371 = vmatprep.subr.mxu0 0.0
    %1372 = vmatpush2.xpose.msra.mxu0 0.0
    %1373 = vmatprep.subr.mxu0 0.0
    %1374 = vmatpush2.xpose.msra.mxu0 0.0
    %1375 = vmatprep.subr.mxu0 0.0
    %1376 = vmatpush2.xpose.msra.mxu0 0.0
    %1377 = vmatprep.subr.mxu0 0.0
    %1378 = vmatpush2.xpose.msra.mxu0 0.0
    %1379 = vmatprep.subr.mxu0 0.0
    %1380 = vmatpush2.xpose.msra.mxu0 0.0
    %1381 = vmatprep.subr.mxu0 0.0
    %1382 = vmatpush2.xpose.msra.mxu0 0.0
    %1383 = vmatprep.subr.mxu0 0.0
    %1384 = vmatpush2.xpose.msra.mxu0 0.0
    %1385 = vmatprep.subr.mxu0 0.0
    %1386 = vmatpush2.xpose.msra.mxu0 0.0
    %1387 = vmatprep.subr.mxu0 0.0
    %1388 = vmatpush2.xpose.msra.mxu0 0.0
    %1389 = vmatprep.subr.mxu0 0.0
    %1390 = vmatpush2.xpose.msra.mxu0 0.0
    %1391 = vmatprep.subr.mxu0 0.0
    %1392 = vmatpush2.xpose.msra.mxu0 0.0
    %1393 = vmatprep.subr.mxu0 0.0
    %1394 = vmatpush2.xpose.msra.mxu0 0.0
    %1395 = vmatprep.subr.mxu0 0.0
    %1396 = vmatpush2.xpose.msra.mxu0 0.0
    %1397 = vmatprep.subr.mxu0 0.0
    %1398 = vmatpush2.xpose.msra.mxu0 0.0
    %1399 = vmatprep.mubr.f32.mxu0 0.0
    %1400 = vmatmul.mubr.f32.gmra.mxu0 %v273
    %v1401 = vpop.f32.mrf.mxu0
    %v1402 = vadd.f32 %v1331, %v1401
    %v1403 = vpop.f32.mrf.mxu0
    %1404 = vmatprep.mubr.f32.mxu0 0.0
    %1405 = vmatmul.mubr.f32.gmra.mxu0 %v276
    %v1406 = vpop.f32.mrf.mxu0
    %v1407 = vadd.f32 %v1331, %v1406
    %v1408 = vpop.f32.mrf.mxu0
    %1409 = vdwg.mxu0
    %v1411 = vsel %vm520, %v1238, 0
    %v1414 = vsel %vm520, %v1243, 0
    %v1417 = vsel %vm520, %v1320, 0
    %v1420 = vsel %vm520, %v1325, 0
    %1422 = vmatprep.subr.mxu0 0.0
    %1423 = vmatpush1.xpose.msra.mxu0 0.0
    %1424 = vmatprep.subr.mxu0 0.0
    %1425 = vmatpush1.xpose.msra.mxu0 0.0
    %1426 = vmatprep.subr.mxu0 0.0
    %1427 = vmatpush1.xpose.msra.mxu0 0.0
    %1428 = vmatprep.subr.mxu0 0.0
    %1429 = vmatpush1.xpose.msra.mxu0 0.0
    %1430 = vmatprep.subr.mxu0 0.0
    %1431 = vmatpush1.xpose.msra.mxu0 0.0
    %1432 = vmatprep.subr.mxu0 0.0
    %1433 = vmatpush1.xpose.msra.mxu0 0.0
    %1434 = vmatprep.subr.mxu0 0.0
    %1435 = vmatpush1.xpose.msra.mxu0 0.0
    %1436 = vmatprep.subr.mxu0 0.0
    %1437 = vmatpush1.xpose.msra.mxu0 0.0
    %1438 = vmatprep.subr.mxu0 0.0
    %1439 = vmatpush1.xpose.msra.mxu0 0.0
    %1440 = vmatprep.subr.mxu0 0.0
    %1441 = vmatpush1.xpose.msra.mxu0 0.0
    %1442 = vmatprep.subr.mxu0 0.0
    %1443 = vmatpush1.xpose.msra.mxu0 0.0
    %1444 = vmatprep.subr.mxu0 0.0
    %1445 = vmatpush1.xpose.msra.mxu0 0.0
    %1446 = vmatprep.subr.mxu0 0.0
    %1447 = vmatpush1.xpose.msra.mxu0 0.0
    %1448 = vmatprep.subr.mxu0 0.0
    %1449 = vmatpush1.xpose.msra.mxu0 0.0
    %1450 = vmatprep.subr.mxu0 0.0
    %1451 = vmatpush1.xpose.msra.mxu0 %v1420
    %1452 = vmatprep.subr.mxu0 0.0
    %1453 = vmatpush1.xpose.msra.mxu0 %v1417
    %1454 = vmatprep.subr.mxu0 0.0
    %1455 = vmatpush2.xpose.msra.mxu0 0.0
    %1456 = vmatprep.subr.mxu0 0.0
    %1457 = vmatpush2.xpose.msra.mxu0 0.0
    %1458 = vmatprep.subr.mxu0 0.0
    %1459 = vmatpush2.xpose.msra.mxu0 0.0
    %1460 = vmatprep.subr.mxu0 0.0
    %1461 = vmatpush2.xpose.msra.mxu0 0.0
    %1462 = vmatprep.subr.mxu0 0.0
    %1463 = vmatpush2.xpose.msra.mxu0 0.0
    %1464 = vmatprep.subr.mxu0 0.0
    %1465 = vmatpush2.xpose.msra.mxu0 0.0
    %1466 = vmatprep.subr.mxu0 0.0
    %1467 = vmatpush2.xpose.msra.mxu0 0.0
    %1468 = vmatprep.subr.mxu0 0.0
    %1469 = vmatpush2.xpose.msra.mxu0 0.0
    %1470 = vmatprep.subr.mxu0 0.0
    %1471 = vmatpush2.xpose.msra.mxu0 0.0
    %1472 = vmatprep.subr.mxu0 0.0
    %1473 = vmatpush2.xpose.msra.mxu0 0.0
    %1474 = vmatprep.subr.mxu0 0.0
    %1475 = vmatpush2.xpose.msra.mxu0 0.0
    %1476 = vmatprep.subr.mxu0 0.0
    %1477 = vmatpush2.xpose.msra.mxu0 0.0
    %1478 = vmatprep.subr.mxu0 0.0
    %1479 = vmatpush2.xpose.msra.mxu0 0.0
    %1480 = vmatprep.subr.mxu0 0.0
    %1481 = vmatpush2.xpose.msra.mxu0 0.0
    %1482 = vmatprep.subr.mxu0 0.0
    %1483 = vmatpush2.xpose.msra.mxu0 0.0
    %1484 = vmatprep.subr.mxu0 0.0
    %1485 = vmatpush2.xpose.msra.mxu0 0.0
    %1486 = vmatprep.mubr.f32.mxu0 0.0
    %1487 = vmatmul.mubr.f32.gmra.mxu0 %v1411
    %v1488 = vpop.f32.mrf.mxu0
    %v1489 = vadd.f32 0.0, %v1488
    %v1490 = vpop.f32.mrf.mxu0
    %1491 = vmatprep.mubr.f32.mxu0 0.0
    %1492 = vmatmul.mubr.f32.gmra.mxu0 %v1414
    %v1493 = vpop.f32.mrf.mxu0
    %v1494 = vadd.f32 0.0, %v1493
    %v1495 = vpop.f32.mrf.mxu0
    %1496 = vdwg.mxu0
    %v1497 = vmul.f32 %v1489, 0.35355338
    %v1498 = vmul.f32 %v1494, 0.35355338
    %v1499 = vadd.f32 %v1497, %v213
    %v1500 = vadd.f32 %v1498, %v214
    %v1501 = vsel %vm612, %v1499, -inf
    %1502 = vmax.xlane.f32.xlu0 %v1501
    %v1503 = vpop.xlane.xlu0 %1502
    %v1504 = vsel %vm616, %v1500, -inf
    %1505 = vmax.xlane.f32.xlu0 %v1504
    %v1506 = vpop.xlane.xlu0 %1505
    %v1507 = vsub.f32 %v1499, %v1503
    %v1508 = vsub.f32 %v1500, %v1506
    %v1509 = vmul.f32 %v1507, 1.442695
    %v1510 = vpow.pop %v1509
    %v1511 = vmul.f32 %v1508, 1.442695
    %v1512 = vpow.pop %v1511
    %v1513 = vsel %vm612, %v1510, 0.0
    %1514 = vadd.xlane.f32.xlu0 %v1513
    %v1515 = vpop.xlane.xlu0 %1514
    %v1516 = vsel %vm616, %v1512, 0.0
    %1517 = vadd.xlane.f32.xlu0 %v1516
    %v1518 = vpop.xlane.xlu0 %1517
    %v1519 = vrcp.pop %v1515
    %v1520 = vrcp.pop %v1518
    %v1521 = vmul.f32 %v1510, %v1519
    %v1522 = vmul.f32 %v1512, %v1520
    %v1524 = vsel %vm612, %v1521, 0
    %v1527 = vsel %vm612, %v1522, 0
    %v1530 = vsel %vm642, %v1407, 0
    %1532 = vmatprep.subr.mxu0 0.0
    %1533 = vmatpush1.msra.mxu0 0.0
    %1534 = vmatprep.subr.mxu0 0.0
    %1535 = vmatpush1.msra.mxu0 0.0
    %1536 = vmatprep.subr.mxu0 0.0
    %1537 = vmatpush1.msra.mxu0 0.0
    %1538 = vmatprep.subr.mxu0 0.0
    %1539 = vmatpush1.msra.mxu0 0.0
    %1540 = vmatprep.subr.mxu0 0.0
    %1541 = vmatpush1.msra.mxu0 0.0
    %1542 = vmatprep.subr.mxu0 0.0
    %1543 = vmatpush1.msra.mxu0 0.0
    %1544 = vmatprep.subr.mxu0 0.0
    %1545 = vmatpush1.msra.mxu0 0.0
    %1546 = vmatprep.subr.mxu0 0.0
    %1547 = vmatpush1.msra.mxu0 0.0
    %1548 = vmatprep.subr.mxu0 0.0
    %1549 = vmatpush1.msra.mxu0 0.0
    %1550 = vmatprep.subr.mxu0 0.0
    %1551 = vmatpush1.msra.mxu0 0.0
    %1552 = vmatprep.subr.mxu0 0.0
    %1553 = vmatpush1.msra.mxu0 0.0
    %1554 = vmatprep.subr.mxu0 0.0
    %1555 = vmatpush1.msra.mxu0 0.0
    %1556 = vmatprep.subr.mxu0 0.0
    %1557 = vmatpush1.msra.mxu0 0.0
    %1558 = vmatprep.subr.mxu0 0.0
    %1559 = vmatpush1.msra.mxu0 0.0
    %1560 = vmatprep.subr.mxu0 0.0
    %1561 = vmatpush1.msra.mxu0 %v1530
    %1562 = vmatprep.subr.mxu0 0.0
    %1563 = vmatpush1.msra.mxu0 %v1402
    %1564 = vmatprep.subr.mxu0 0.0
    %1565 = vmatpush2.msra.mxu0 0.0
    %1566 = vmatprep.subr.mxu0 0.0
    %1567 = vmatpush2.msra.mxu0 0.0
    %1568 = vmatprep.subr.mxu0 0.0
    %1569 = vmatpush2.msra.mxu0 0.0
    %1570 = vmatprep.subr.mxu0 0.0
    %1571 = vmatpush2.msra.mxu0 0.0
    %1572 = vmatprep.subr.mxu0 0.0
    %1573 = vmatpush2.msra.mxu0 0.0
    %1574 = vmatprep.subr.mxu0 0.0
    %1575 = vmatpush2.msra.mxu0 0.0
    %1576 = vmatprep.subr.mxu0 0.0
    %1577 = vmatpush2.msra.mxu0 0.0
    %1578 = vmatprep.subr.mxu0 0.0
    %1579 = vmatpush2.msra.mxu0 0.0
    %1580 = vmatprep.subr.mxu0 0.0
    %1581 = vmatpush2.msra.mxu0 0.0
    %1582 = vmatprep.subr.mxu0 0.0
    %1583 = vmatpush2.msra.mxu0 0.0
    %1584 = vmatprep.subr.mxu0 0.0
    %1585 = vmatpush2.msra.mxu0 0.0
    %1586 = vmatprep.subr.mxu0 0.0
    %1587 = vmatpush2.msra.mxu0 0.0
    %1588 = vmatprep.subr.mxu0 0.0
    %1589 = vmatpush2.msra.mxu0 0.0
    %1590 = vmatprep.subr.mxu0 0.0
    %1591 = vmatpush2.msra.mxu0 0.0
    %1592 = vmatprep.subr.mxu0 0.0
    %1593 = vmatpush2.msra.mxu0 0.0
    %1594 = vmatprep.subr.mxu0 0.0
    %1595 = vmatpush2.msra.mxu0 0.0
    %1596 = vmatprep.mubr.f32.mxu0 0.0
    %1597 = vmatmul.mubr.f32.gmra.mxu0 %v1524
    %v1598 = vpop.f32.mrf.mxu0
    %v1599 = vadd.f32 0.0, %v1598
    %v1600 = vpop.f32.mrf.mxu0
    %1601 = vmatprep.mubr.f32.mxu0 0.0
    %1602 = vmatmul.mubr.f32.gmra.mxu0 %v1527
    %v1603 = vpop.f32.mrf.mxu0
    %v1604 = vadd.f32 0.0, %v1603
    %v1605 = vpop.f32.mrf.mxu0
    %1606 = vdwg.mxu0
    %v1607 = vlaneseq
    %v1608 = vshrl.u32 %v1607, 7
    %v1609 = vsub.s32 3, %v1608
    %v1610 = vrot.slane %v266, %v1609
    %v1612 = vsel %vm143, %v257, 0
    %1614 = vmatprep.subr.mxu0 0.0
    %1615 = vmatpush1.xpose.msra.mxu0 0.0
    %1616 = vmatprep.subr.mxu0 0.0
    %1617 = vmatpush1.xpose.msra.mxu0 0.0
    %1618 = vmatprep.subr.mxu0 0.0
    %1619 = vmatpush1.xpose.msra.mxu0 0.0
    %1620 = vmatprep.subr.mxu0 0.0
    %1621 = vmatpush1.xpose.msra.mxu0 0.0
    %1622 = vmatprep.subr.mxu0 0.0
    %1623 = vmatpush1.xpose.msra.mxu0 0.0
    %1624 = vmatprep.subr.mxu0 0.0
    %1625 = vmatpush1.xpose.msra.mxu0 0.0
    %1626 = vmatprep.subr.mxu0 0.0
    %1627 = vmatpush1.xpose.msra.mxu0 0.0
    %1628 = vmatprep.subr.mxu0 0.0
    %1629 = vmatpush1.xpose.msra.mxu0 0.0
    %1630 = vmatprep.subr.mxu0 0.0
    %1631 = vmatpush1.xpose.msra.mxu0 0.0
    %1632 = vmatprep.subr.mxu0 0.0
    %1633 = vmatpush1.xpose.msra.mxu0 0.0
    %1634 = vmatprep.subr.mxu0 0.0
    %1635 = vmatpush1.xpose.msra.mxu0 0.0
    %1636 = vmatprep.subr.mxu0 0.0
    %1637 = vmatpush1.xpose.msra.mxu0 0.0
    %1638 = vmatprep.subr.mxu0 0.0
    %1639 = vmatpush1.xpose.msra.mxu0 0.0
    %1640 = vmatprep.subr.mxu0 0.0
    %1641 = vmatpush1.xpose.msra.mxu0 0.0
    %1642 = vmatprep.subr.mxu0 0.0
    %1643 = vmatpush1.xpose.msra.mxu0 0.0
    %1644 = vmatprep.subr.mxu0 0.0
    %1645 = vmatpush1.xpose.msra.mxu0 %v1612
    %1646 = vmatprep.subr.mxu0 0.0
    %1647 = vmatpush2.xpose.msra.mxu0 0.0
    %1648 = vmatprep.subr.mxu0 0.0
    %1649 = vmatpush2.xpose.msra.mxu0 0.0
    %1650 = vmatprep.subr.mxu0 0.0
    %1651 = vmatpush2.xpose.msra.mxu0 0.0
    %1652 = vmatprep.subr.mxu0 0.0
    %1653 = vmatpush2.xpose.msra.mxu0 0.0
    %1654 = vmatprep.subr.mxu0 0.0
    %1655 = vmatpush2.xpose.msra.mxu0 0.0
    %1656 = vmatprep.subr.mxu0 0.0
    %1657 = vmatpush2.xpose.msra.mxu0 0.0
    %1658 = vmatprep.subr.mxu0 0.0
    %1659 = vmatpush2.xpose.msra.mxu0 0.0
    %1660 = vmatprep.subr.mxu0 0.0
    %1661 = vmatpush2.xpose.msra.mxu0 0.0
    %1662 = vmatprep.subr.mxu0 0.0
    %1663 = vmatpush2.xpose.msra.mxu0 0.0
    %1664 = vmatprep.subr.mxu0 0.0
    %1665 = vmatpush2.xpose.msra.mxu0 0.0
    %1666 = vmatprep.subr.mxu0 0.0
    %1667 = vmatpush2.xpose.msra.mxu0 0.0
    %1668 = vmatprep.subr.mxu0 0.0
    %1669 = vmatpush2.xpose.msra.mxu0 0.0
    %1670 = vmatprep.subr.mxu0 0.0
    %1671 = vmatpush2.xpose.msra.mxu0 0.0
    %1672 = vmatprep.subr.mxu0 0.0
    %1673 = vmatpush2.xpose.msra.mxu0 0.0
    %1674 = vmatprep.subr.mxu0 0.0
    %1675 = vmatpush2.xpose.msra.mxu0 0.0
    %1676 = vmatprep.subr.mxu0 0.0
    %1677 = vmatpush2.xpose.msra.mxu0 0.0
    %1678 = vmatprep.mubr.f32.mxu0 0.0
    %1679 = vmatmul.mubr.f32.gmra.mxu0 %v273
    %v1680 = vpop.f32.mrf.mxu0
    %v1681 = vadd.f32 %v1610, %v1680
    %v1682 = vpop.f32.mrf.mxu0
    %1683 = vmatprep.mubr.f32.mxu0 0.0
    %1684 = vmatmul.mubr.f32.gmra.mxu0 %v276
    %v1685 = vpop.f32.mrf.mxu0
    %v1686 = vadd.f32 %v1610, %v1685
    %v1687 = vpop.f32.mrf.mxu0
    %1688 = vdwg.mxu0
    %v1689 = vlaneseq
    %v1690 = vshrl.u32 %v1689, 7
    %v1691 = vsub.s32 7, %v1690
    %v1692 = vrot.slane %v266, %v1691
    %v1694 = vsel %vm143, %v261, 0
    %1696 = vmatprep.subr.mxu0 0.0
    %1697 = vmatpush1.xpose.msra.mxu0 0.0
    %1698 = vmatprep.subr.mxu0 0.0
    %1699 = vmatpush1.xpose.msra.mxu0 0.0
    %1700 = vmatprep.subr.mxu0 0.0
    %1701 = vmatpush1.xpose.msra.mxu0 0.0
    %1702 = vmatprep.subr.mxu0 0.0
    %1703 = vmatpush1.xpose.msra.mxu0 0.0
    %1704 = vmatprep.subr.mxu0 0.0
    %1705 = vmatpush1.xpose.msra.mxu0 0.0
    %1706 = vmatprep.subr.mxu0 0.0
    %1707 = vmatpush1.xpose.msra.mxu0 0.0
    %1708 = vmatprep.subr.mxu0 0.0
    %1709 = vmatpush1.xpose.msra.mxu0 0.0
    %1710 = vmatprep.subr.mxu0 0.0
    %1711 = vmatpush1.xpose.msra.mxu0 0.0
    %1712 = vmatprep.subr.mxu0 0.0
    %1713 = vmatpush1.xpose.msra.mxu0 0.0
    %1714 = vmatprep.subr.mxu0 0.0
    %1715 = vmatpush1.xpose.msra.mxu0 0.0
    %1716 = vmatprep.subr.mxu0 0.0
    %1717 = vmatpush1.xpose.msra.mxu0 0.0
    %1718 = vmatprep.subr.mxu0 0.0
    %1719 = vmatpush1.xpose.msra.mxu0 0.0
    %1720 = vmatprep.subr.mxu0 0.0
    %1721 = vmatpush1.xpose.msra.mxu0 0.0
    %1722 = vmatprep.subr.mxu0 0.0
    %1723 = vmatpush1.xpose.msra.mxu0 0.0
    %1724 = vmatprep.subr.mxu0 0.0
    %1725 = vmatpush1.xpose.msra.mxu0 0.0
    %1726 = vmatprep.subr.mxu0 0.0
    %1727 = vmatpush1.xpose.msra.mxu0 %v1694
    %1728 = vmatprep.subr.mxu0 0.0
    %1729 = vmatpush2.xpose.msra.mxu0 0.0
    %1730 = vmatprep.subr.mxu0 0.0
    %1731 = vmatpush2.xpose.msra.mxu0 0.0
    %1732 = vmatprep.subr.mxu0 0.0
    %1733 = vmatpush2.xpose.msra.mxu0 0.0
    %1734 = vmatprep.subr.mxu0 0.0
    %1735 = vmatpush2.xpose.msra.mxu0 0.0
    %1736 = vmatprep.subr.mxu0 0.0
    %1737 = vmatpush2.xpose.msra.mxu0 0.0
    %1738 = vmatprep.subr.mxu0 0.0
    %1739 = vmatpush2.xpose.msra.mxu0 0.0
    %1740 = vmatprep.subr.mxu0 0.0
    %1741 = vmatpush2.xpose.msra.mxu0 0.0
    %1742 = vmatprep.subr.mxu0 0.0
    %1743 = vmatpush2.xpose.msra.mxu0 0.0
    %1744 = vmatprep.subr.mxu0 0.0
    %1745 = vmatpush2.xpose.msra.mxu0 0.0
    %1746 = vmatprep.subr.mxu0 0.0
    %1747 = vmatpush2.xpose.msra.mxu0 0.0
    %1748 = vmatprep.subr.mxu0 0.0
    %1749 = vmatpush2.xpose.msra.mxu0 0.0
    %1750 = vmatprep.subr.mxu0 0.0
    %1751 = vmatpush2.xpose.msra.mxu0 0.0
    %1752 = vmatprep.subr.mxu0 0.0
    %1753 = vmatpush2.xpose.msra.mxu0 0.0
    %1754 = vmatprep.subr.mxu0 0.0
    %1755 = vmatpush2.xpose.msra.mxu0 0.0
    %1756 = vmatprep.subr.mxu0 0.0
    %1757 = vmatpush2.xpose.msra.mxu0 0.0
    %1758 = vmatprep.subr.mxu0 0.0
    %1759 = vmatpush2.xpose.msra.mxu0 0.0
    %1760 = vmatprep.mubr.f32.mxu0 0.0
    %1761 = vmatmul.mubr.f32.gmra.mxu0 %v273
    %v1762 = vpop.f32.mrf.mxu0
    %v1763 = vadd.f32 %v1692, %v1762
    %v1764 = vpop.f32.mrf.mxu0
    %1765 = vmatprep.mubr.f32.mxu0 0.0
    %1766 = vmatmul.mubr.f32.gmra.mxu0 %v276
    %v1767 = vpop.f32.mrf.mxu0
    %v1768 = vadd.f32 %v1692, %v1767
    %v1769 = vpop.f32.mrf.mxu0
    %1770 = vdwg.mxu0
    %v1771 = vlaneseq
    %v1772 = vshrl.u32 %v1771, 7
    %v1773 = vsub.s32 3, %v1772
    %v1774 = vrot.slane %v267, %v1773
    %v1776 = vsel %vm143, %v265, 0
    %1778 = vmatprep.subr.mxu0 0.0
    %1779 = vmatpush1.xpose.msra.mxu0 0.0
    %1780 = vmatprep.subr.mxu0 0.0
    %1781 = vmatpush1.xpose.msra.mxu0 0.0
    %1782 = vmatprep.subr.mxu0 0.0
    %1783 = vmatpush1.xpose.msra.mxu0 0.0
    %1784 = vmatprep.subr.mxu0 0.0
    %1785 = vmatpush1.xpose.msra.mxu0 0.0
    %1786 = vmatprep.subr.mxu0 0.0
    %1787 = vmatpush1.xpose.msra.mxu0 0.0
    %1788 = vmatprep.subr.mxu0 0.0
    %1789 = vmatpush1.xpose.msra.mxu0 0.0
    %1790 = vmatprep.subr.mxu0 0.0
    %1791 = vmatpush1.xpose.msra.mxu0 0.0
    %1792 = vmatprep.subr.mxu0 0.0
    %1793 = vmatpush1.xpose.msra.mxu0 0.0
    %1794 = vmatprep.subr.mxu0 0.0
    %1795 = vmatpush1.xpose.msra.mxu0 0.0
    %1796 = vmatprep.subr.mxu0 0.0
    %1797 = vmatpush1.xpose.msra.mxu0 0.0
    %1798 = vmatprep.subr.mxu0 0.0
    %1799 = vmatpush1.xpose.msra.mxu0 0.0
    %1800 = vmatprep.subr.mxu0 0.0
    %1801 = vmatpush1.xpose.msra.mxu0 0.0
    %1802 = vmatprep.subr.mxu0 0.0
    %1803 = vmatpush1.xpose.msra.mxu0 0.0
    %1804 = vmatprep.subr.mxu0 0.0
    %1805 = vmatpush1.xpose.msra.mxu0 0.0
    %1806 = vmatprep.subr.mxu0 0.0
    %1807 = vmatpush1.xpose.msra.mxu0 0.0
    %1808 = vmatprep.subr.mxu0 0.0
    %1809 = vmatpush1.xpose.msra.mxu0 %v1776
    %1810 = vmatprep.subr.mxu0 0.0
    %1811 = vmatpush2.xpose.msra.mxu0 0.0
    %1812 = vmatprep.subr.mxu0 0.0
    %1813 = vmatpush2.xpose.msra.mxu0 0.0
    %1814 = vmatprep.subr.mxu0 0.0
    %1815 = vmatpush2.xpose.msra.mxu0 0.0
    %1816 = vmatprep.subr.mxu0 0.0
    %1817 = vmatpush2.xpose.msra.mxu0 0.0
    %1818 = vmatprep.subr.mxu0 0.0
    %1819 = vmatpush2.xpose.msra.mxu0 0.0
    %1820 = vmatprep.subr.mxu0 0.0
    %1821 = vmatpush2.xpose.msra.mxu0 0.0
    %1822 = vmatprep.subr.mxu0 0.0
    %1823 = vmatpush2.xpose.msra.mxu0 0.0
    %1824 = vmatprep.subr.mxu0 0.0
    %1825 = vmatpush2.xpose.msra.mxu0 0.0
    %1826 = vmatprep.subr.mxu0 0.0
    %1827 = vmatpush2.xpose.msra.mxu0 0.0
    %1828 = vmatprep.subr.mxu0 0.0
    %1829 = vmatpush2.xpose.msra.mxu0 0.0
    %1830 = vmatprep.subr.mxu0 0.0
    %1831 = vmatpush2.xpose.msra.mxu0 0.0
    %1832 = vmatprep.subr.mxu0 0.0
    %1833 = vmatpush2.xpose.msra.mxu0 0.0
    %1834 = vmatprep.subr.mxu0 0.0
    %1835 = vmatpush2.xpose.msra.mxu0 0.0
    %1836 = vmatprep.subr.mxu0 0.0
    %1837 = vmatpush2.xpose.msra.mxu0 0.0
    %1838 = vmatprep.subr.mxu0 0.0
    %1839 = vmatpush2.xpose.msra.mxu0 0.0
    %1840 = vmatprep.subr.mxu0 0.0
    %1841 = vmatpush2.xpose.msra.mxu0 0.0
    %1842 = vmatprep.mubr.f32.mxu0 0.0
    %1843 = vmatmul.mubr.f32.gmra.mxu0 %v273
    %v1844 = vpop.f32.mrf.mxu0
    %v1845 = vadd.f32 %v1774, %v1844
    %v1846 = vpop.f32.mrf.mxu0
    %1847 = vmatprep.mubr.f32.mxu0 0.0
    %1848 = vmatmul.mubr.f32.gmra.mxu0 %v276
    %v1849 = vpop.f32.mrf.mxu0
    %v1850 = vadd.f32 %v1774, %v1849
    %v1851 = vpop.f32.mrf.mxu0
    %1852 = vdwg.mxu0
    %v1854 = vsel %vm520, %v1681, 0
    %v1857 = vsel %vm520, %v1686, 0
    %v1860 = vsel %vm520, %v1763, 0
    %v1863 = vsel %vm520, %v1768, 0
    %1865 = vmatprep.subr.mxu0 0.0
    %1866 = vmatpush1.xpose.msra.mxu0 0.0
    %1867 = vmatprep.subr.mxu0 0.0
    %1868 = vmatpush1.xpose.msra.mxu0 0.0
    %1869 = vmatprep.subr.mxu0 0.0
    %1870 = vmatpush1.xpose.msra.mxu0 0.0
    %1871 = vmatprep.subr.mxu0 0.0
    %1872 = vmatpush1.xpose.msra.mxu0 0.0
    %1873 = vmatprep.subr.mxu0 0.0
    %1874 = vmatpush1.xpose.msra.mxu0 0.0
    %1875 = vmatprep.subr.mxu0 0.0
    %1876 = vmatpush1.xpose.msra.mxu0 0.0
    %1877 = vmatprep.subr.mxu0 0.0
    %1878 = vmatpush1.xpose.msra.mxu0 0.0
    %1879 = vmatprep.subr.mxu0 0.0
    %1880 = vmatpush1.xpose.msra.mxu0 0.0
    %1881 = vmatprep.subr.mxu0 0.0
    %1882 = vmatpush1.xpose.msra.mxu0 0.0
    %1883 = vmatprep.subr.mxu0 0.0
    %1884 = vmatpush1.xpose.msra.mxu0 0.0
    %1885 = vmatprep.subr.mxu0 0.0
    %1886 = vmatpush1.xpose.msra.mxu0 0.0
    %1887 = vmatprep.subr.mxu0 0.0
    %1888 = vmatpush1.xpose.msra.mxu0 0.0
    %1889 = vmatprep.subr.mxu0 0.0
    %1890 = vmatpush1.xpose.msra.mxu0 0.0
    %1891 = vmatprep.subr.mxu0 0.0
    %1892 = vmatpush1.xpose.msra.mxu0 0.0
    %1893 = vmatprep.subr.mxu0 0.0
    %1894 = vmatpush1.xpose.msra.mxu0 %v1863
    %1895 = vmatprep.subr.mxu0 0.0
    %1896 = vmatpush1.xpose.msra.mxu0 %v1860
    %1897 = vmatprep.subr.mxu0 0.0
    %1898 = vmatpush2.xpose.msra.mxu0 0.0
    %1899 = vmatprep.subr.mxu0 0.0
    %1900 = vmatpush2.xpose.msra.mxu0 0.0
    %1901 = vmatprep.subr.mxu0 0.0
    %1902 = vmatpush2.xpose.msra.mxu0 0.0
    %1903 = vmatprep.subr.mxu0 0.0
    %1904 = vmatpush2.xpose.msra.mxu0 0.0
    %1905 = vmatprep.subr.mxu0 0.0
    %1906 = vmatpush2.xpose.msra.mxu0 0.0
    %1907 = vmatprep.subr.mxu0 0.0
    %1908 = vmatpush2.xpose.msra.mxu0 0.0
    %1909 = vmatprep.subr.mxu0 0.0
    %1910 = vmatpush2.xpose.msra.mxu0 0.0
    %1911 = vmatprep.subr.mxu0 0.0
    %1912 = vmatpush2.xpose.msra.mxu0 0.0
    %1913 = vmatprep.subr.mxu0 0.0
    %1914 = vmatpush2.xpose.msra.mxu0 0.0
    %1915 = vmatprep.subr.mxu0 0.0
    %1916 = vmatpush2.xpose.msra.mxu0 0.0
    %1917 = vmatprep.subr.mxu0 0.0
    %1918 = vmatpush2.xpose.msra.mxu0 0.0
    %1919 = vmatprep.subr.mxu0 0.0
    %1920 = vmatpush2.xpose.msra.mxu0 0.0
    %1921 = vmatprep.subr.mxu0 0.0
    %1922 = vmatpush2.xpose.msra.mxu0 0.0
    %1923 = vmatprep.subr.mxu0 0.0
    %1924 = vmatpush2.xpose.msra.mxu0 0.0
    %1925 = vmatprep.subr.mxu0 0.0
    %1926 = vmatpush2.xpose.msra.mxu0 0.0
    %1927 = vmatprep.subr.mxu0 0.0
    %1928 = vmatpush2.xpose.msra.mxu0 0.0
    %1929 = vmatprep.mubr.f32.mxu0 0.0
    %1930 = vmatmul.mubr.f32.gmra.mxu0 %v1854
    %v1931 = vpop.f32.mrf.mxu0
    %v1932 = vadd.f32 0.0, %v1931
    %v1933 = vpop.f32.mrf.mxu0
    %1934 = vmatprep.mubr.f32.mxu0 0.0
    %1935 = vmatmul.mubr.f32.gmra.mxu0 %v1857
    %v1936 = vpop.f32.mrf.mxu0
    %v1937 = vadd.f32 0.0, %v1936
    %v1938 = vpop.f32.mrf.mxu0
    %1939 = vdwg.mxu0
    %v1940 = vmul.f32 %v1932, 0.35355338
    %v1941 = vmul.f32 %v1937, 0.35355338
    %v1942 = vadd.f32 %v1940, %v213
    %v1943 = vadd.f32 %v1941, %v214
    %v1944 = vsel %vm612, %v1942, -inf
    %1945 = vmax.xlane.f32.xlu0 %v1944
    %v1946 = vpop.xlane.xlu0 %1945
    %v1947 = vsel %vm616, %v1943, -inf
    %1948 = vmax.xlane.f32.xlu0 %v1947
    %v1949 = vpop.xlane.xlu0 %1948
    %v1950 = vsub.f32 %v1942, %v1946
    %v1951 = vsub.f32 %v1943, %v1949
    %v1952 = vmul.f32 %v1950, 1.442695
    %v1953 = vpow.pop %v1952
    %v1954 = vmul.f32 %v1951, 1.442695
    %v1955 = vpow.pop %v1954
    %v1956 = vsel %vm612, %v1953, 0.0
    %1957 = vadd.xlane.f32.xlu0 %v1956
    %v1958 = vpop.xlane.xlu0 %1957
    %v1959 = vsel %vm616, %v1955, 0.0
    %1960 = vadd.xlane.f32.xlu0 %v1959
    %v1961 = vpop.xlane.xlu0 %1960
    %v1962 = vrcp.pop %v1958
    %v1963 = vrcp.pop %v1961
    %v1964 = vmul.f32 %v1953, %v1962
    %v1965 = vmul.f32 %v1955, %v1963
    %v1967 = vsel %vm612, %v1964, 0
    %v1970 = vsel %vm612, %v1965, 0
    %v1973 = vsel %vm642, %v1850, 0
    %1975 = vmatprep.subr.mxu0 0.0
    %1976 = vmatpush1.msra.mxu0 0.0
    %1977 = vmatprep.subr.mxu0 0.0
    %1978 = vmatpush1.msra.mxu0 0.0
    %1979 = vmatprep.subr.mxu0 0.0
    %1980 = vmatpush1.msra.mxu0 0.0
    %1981 = vmatprep.subr.mxu0 0.0
    %1982 = vmatpush1.msra.mxu0 0.0
    %1983 = vmatprep.subr.mxu0 0.0
    %1984 = vmatpush1.msra.mxu0 0.0
    %1985 = vmatprep.subr.mxu0 0.0
    %1986 = vmatpush1.msra.mxu0 0.0
    %1987 = vmatprep.subr.mxu0 0.0
    %1988 = vmatpush1.msra.mxu0 0.0
    %1989 = vmatprep.subr.mxu0 0.0
    %1990 = vmatpush1.msra.mxu0 0.0
    %1991 = vmatprep.subr.mxu0 0.0
    %1992 = vmatpush1.msra.mxu0 0.0
    %1993 = vmatprep.subr.mxu0 0.0
    %1994 = vmatpush1.msra.mxu0 0.0
    %1995 = vmatprep.subr.mxu0 0.0
    %1996 = vmatpush1.msra.mxu0 0.0
    %1997 = vmatprep.subr.mxu0 0.0
    %1998 = vmatpush1.msra.mxu0 0.0
    %1999 = vmatprep.subr.mxu0 0.0
    %2000 = vmatpush1.msra.mxu0 0.0
    %2001 = vmatprep.subr.mxu0 0.0
    %2002 = vmatpush1.msra.mxu0 0.0
    %2003 = vmatprep.subr.mxu0 0.0
    %2004 = vmatpush1.msra.mxu0 %v1973
    %2005 = vmatprep.subr.mxu0 0.0
    %2006 = vmatpush1.msra.mxu0 %v1845
    %2007 = vmatprep.subr.mxu0 0.0
    %2008 = vmatpush2.msra.mxu0 0.0
    %2009 = vmatprep.subr.mxu0 0.0
    %2010 = vmatpush2.msra.mxu0 0.0
    %2011 = vmatprep.subr.mxu0 0.0
    %2012 = vmatpush2.msra.mxu0 0.0
    %2013 = vmatprep.subr.mxu0 0.0
    %2014 = vmatpush2.msra.mxu0 0.0
    %2015 = vmatprep.subr.mxu0 0.0
    %2016 = vmatpush2.msra.mxu0 0.0
    %2017 = vmatprep.subr.mxu0 0.0
    %2018 = vmatpush2.msra.mxu0 0.0
    %2019 = vmatprep.subr.mxu0 0.0
    %2020 = vmatpush2.msra.mxu0 0.0
    %2021 = vmatprep.subr.mxu0 0.0
    %2022 = vmatpush2.msra.mxu0 0.0
    %2023 = vmatprep.subr.mxu0 0.0
    %2024 = vmatpush2.msra.mxu0 0.0
    %2025 = vmatprep.subr.mxu0 0.0
    %2026 = vmatpush2.msra.mxu0 0.0
    %2027 = vmatprep.subr.mxu0 0.0
    %2028 = vmatpush2.msra.mxu0 0.0
    %2029 = vmatprep.subr.mxu0 0.0
    %2030 = vmatpush2.msra.mxu0 0.0
    %2031 = vmatprep.subr.mxu0 0.0
    %2032 = vmatpush2.msra.mxu0 0.0
    %2033 = vmatprep.subr.mxu0 0.0
    %2034 = vmatpush2.msra.mxu0 0.0
    %2035 = vmatprep.subr.mxu0 0.0
    %2036 = vmatpush2.msra.mxu0 0.0
    %2037 = vmatprep.subr.mxu0 0.0
    %2038 = vmatpush2.msra.mxu0 0.0
    %2039 = vmatprep.mubr.f32.mxu0 0.0
    %2040 = vmatmul.mubr.f32.gmra.mxu0 %v1967
    %v2041 = vpop.f32.mrf.mxu0
    %v2042 = vadd.f32 0.0, %v2041
    %v2043 = vpop.f32.mrf.mxu0
    %2044 = vmatprep.mubr.f32.mxu0 0.0
    %2045 = vmatmul.mubr.f32.gmra.mxu0 %v1970
    %v2046 = vpop.f32.mrf.mxu0
    %v2047 = vadd.f32 0.0, %v2046
    %v2048 = vpop.f32.mrf.mxu0
    %2049 = vdwg.mxu0
    %2052 = vrot.lane.b32.xlu0 %v1156, 8
    %v2053 = vpop.permute.xlu0 %2052
    %2054 = vrot.lane.b32.xlu0 %v1161, 8
    %v2055 = vpop.permute.xlu0 %2054
    %2060 = vrot.lane.b32.xlu0 %v1599, 16
    %v2061 = vpop.permute.xlu0 %2060
    %2062 = vrot.lane.b32.xlu0 %v1604, 16
    %v2063 = vpop.permute.xlu0 %2062
    %2068 = vrot.lane.b32.xlu0 %v2042, 24
    %v2069 = vpop.permute.xlu0 %2068
    %2070 = vrot.lane.b32.xlu0 %v2047, 24
    %v2071 = vpop.permute.xlu0 %2070
    %v2074 = vsel %vm520, %v713, %v2053
    %v2075 = vsel %vm520, %v718, %v2055
    %vm2076 = vcmask 130048
    %v2077 = vsel %vm2076, %v2074, %v2061
    %v2078 = vsel %vm2076, %v2075, %v2063
    %vm2079 = vcmask 195584
    %v2080 = vsel %vm2079, %v2077, %v2069
    %v2081 = vsel %vm2079, %v2078, %v2071
    %v2082 = vld [vmem:[%s1 + $0x136] sm:$0xff]
    %v2083 = vld [vmem:[%s1 + $0x13e] sm:$0xff]
    %v2084 = vld [vmem:[%s1 + $0x146] sm:$0xff]
    %v2085 = vld [vmem:[%s1 + $0x14e] sm:$0xff]
    %v2087 = vsel %vm143, %v2080, 0
    %v2090 = vsel %vm143, %v2081, 0
    %2092 = vmatprep.subr.mxu0 0.0
    %2093 = vmatpush1.msra.mxu0 0.0
    %2094 = vmatprep.subr.mxu0 0.0
    %2095 = vmatpush1.msra.mxu0 0.0
    %2096 = vmatprep.subr.mxu0 0.0
    %2097 = vmatpush1.msra.mxu0 0.0
    %2098 = vmatprep.subr.mxu0 0.0
    %2099 = vmatpush1.msra.mxu0 0.0
    %2100 = vmatprep.subr.mxu0 0.0
    %2101 = vmatpush1.msra.mxu0 0.0
    %2102 = vmatprep.subr.mxu0 0.0
    %2103 = vmatpush1.msra.mxu0 0.0
    %2104 = vmatprep.subr.mxu0 0.0
    %2105 = vmatpush1.msra.mxu0 0.0
    %2106 = vmatprep.subr.mxu0 0.0
    %2107 = vmatpush1.msra.mxu0 0.0
    %2108 = vmatprep.subr.mxu0 0.0
    %2109 = vmatpush1.msra.mxu0 0.0
    %2110 = vmatprep.subr.mxu0 0.0
    %2111 = vmatpush1.msra.mxu0 0.0
    %2112 = vmatprep.subr.mxu0 0.0
    %2113 = vmatpush1.msra.mxu0 0.0
    %2114 = vmatprep.subr.mxu0 0.0
    %2115 = vmatpush1.msra.mxu0 0.0
    %2116 = vmatprep.subr.mxu0 0.0
    %2117 = vmatpush1.msra.mxu0 %v2085
    %2118 = vmatprep.subr.mxu0 0.0
    %2119 = vmatpush1.msra.mxu0 %v2084
    %2120 = vmatprep.subr.mxu0 0.0
    %2121 = vmatpush1.msra.mxu0 %v2083
    %2122 = vmatprep.subr.mxu0 0.0
    %2123 = vmatpush1.msra.mxu0 %v2082
    %2124 = vmatprep.subr.mxu0 0.0
    %2125 = vmatpush2.msra.mxu0 0.0
    %2126 = vmatprep.subr.mxu0 0.0
    %2127 = vmatpush2.msra.mxu0 0.0
    %2128 = vmatprep.subr.mxu0 0.0
    %2129 = vmatpush2.msra.mxu0 0.0
    %2130 = vmatprep.subr.mxu0 0.0
    %2131 = vmatpush2.msra.mxu0 0.0
    %2132 = vmatprep.subr.mxu0 0.0
    %2133 = vmatpush2.msra.mxu0 0.0
    %2134 = vmatprep.subr.mxu0 0.0
    %2135 = vmatpush2.msra.mxu0 0.0
    %2136 = vmatprep.subr.mxu0 0.0
    %2137 = vmatpush2.msra.mxu0 0.0
    %2138 = vmatprep.subr.mxu0 0.0
    %2139 = vmatpush2.msra.mxu0 0.0
    %2140 = vmatprep.subr.mxu0 0.0
    %2141 = vmatpush2.msra.mxu0 0.0
    %2142 = vmatprep.subr.mxu0 0.0
    %2143 = vmatpush2.msra.mxu0 0.0
    %2144 = vmatprep.subr.mxu0 0.0
    %2145 = vmatpush2.msra.mxu0 0.0
    %2146 = vmatprep.subr.mxu0 0.0
    %2147 = vmatpush2.msra.mxu0 0.0
    %2148 = vmatprep.subr.mxu0 0.0
    %2149 = vmatpush2.msra.mxu0 0.0
    %2150 = vmatprep.subr.mxu0 0.0
    %2151 = vmatpush2.msra.mxu0 0.0
    %2152 = vmatprep.subr.mxu0 0.0
    %2153 = vmatpush2.msra.mxu0 0.0
    %2154 = vmatprep.subr.mxu0 0.0
    %2155 = vmatpush2.msra.mxu0 0.0
    %2156 = vmatprep.mubr.f32.mxu0 0.0
    %2157 = vmatmul.mubr.f32.gmra.mxu0 %v2087
    %v2158 = vpop.f32.mrf.mxu0
    %v2159 = vadd.f32 0.0, %v2158
    %v2160 = vpop.f32.mrf.mxu0
    %2161 = vmatprep.mubr.f32.mxu0 0.0
    %2162 = vmatmul.mubr.f32.gmra.mxu0 %v2090
    %v2163 = vpop.f32.mrf.mxu0
    %v2164 = vadd.f32 0.0, %v2163
    %v2165 = vpop.f32.mrf.mxu0
    %2166 = vdwg.mxu0
    %v2167 = vadd.f32 %v182, %v2159
    %v2168 = vadd.f32 %v183, %v2164
    %v2169 = vld [vmem:[%s1 + $0x156] sm:$0x1]
    %v2170 = vlaneseq
    %v2171 = vshrl.u32 %v2170, 7
    %v2172 = vsub.s32 0, %v2171
    %v2173 = vrot.slane %v2169, %v2172
    %v2174 = vadd.f32 %v2167, %v2173
    %v2175 = vadd.f32 %v2168, %v2173
    %v2176 = vld [vmem:[%s1 + $0x157] sm:$0x3]
    %v2177 = vsel %vm143, %v2174, 0.0
    %2178 = vadd.xlane.f32.xlu0 %v2177
    %v2179 = vpop.xlane.xlu0 %2178
    %v2180 = vsel %vm147, %v2175, 0.0
    %2181 = vadd.xlane.f32.xlu0 %v2180
    %v2182 = vpop.xlane.xlu0 %2181
    %v2183 = vmul.f32 %v2179, %v151
    %v2184 = vmul.f32 %v2182, %v151
    %v2185 = vsub.f32 %v2174, %v2183
    %v2186 = vsub.f32 %v2175, %v2184
    %v2187 = vmul.f32 %v2185, %v2185
    %v2188 = vmul.f32 %v2186, %v2186
    %v2189 = vsel %vm143, %v2187, 0.0
    %2190 = vadd.xlane.f32.xlu0 %v2189
    %v2191 = vpop.xlane.xlu0 %2190
    %v2192 = vsel %vm147, %v2188, 0.0
    %2193 = vadd.xlane.f32.xlu0 %v2192
    %v2194 = vpop.xlane.xlu0 %2193
    %v2195 = vmul.f32 %v2191, %v151
    %v2196 = vmul.f32 %v2194, %v151
    %v2197 = vadd.f32 %v2195, 1e-05
    %v2198 = vadd.f32 %v2196, 1e-05
    %v2199 = vrsqrt.pop %v2197
    %v2200 = vrsqrt.pop %v2198
    %v2201 = vmul.f32 %v2185, %v2199
    %v2202 = vmul.f32 %v2186, %v2200
    %v2203 = vlaneseq
    %v2204 = vshrl.u32 %v2203, 7
    %v2205 = vsub.s32 0, %v2204
    %v2206 = vrot.slane %v2176, %v2205
    %v2207 = vmul.f32 %v2201, %v2206
    %v2208 = vmul.f32 %v2202, %v2206
    %v2209 = vlaneseq
    %v2210 = vshrl.u32 %v2209, 7
    %v2211 = vsub.s32 1, %v2210
    %v2212 = vrot.slane %v2176, %v2211
    %v2213 = vadd.f32 %v2207, %v2212
    %v2214 = vadd.f32 %v2208, %v2212
    %v2215 = vld [vmem:[%s2] sm:$0xff]
    %v2216 = vld [vmem:[%s2 + $0x8] sm:$0xff]
    %v2217 = vld [vmem:[%s2 + $0x10] sm:$0xff]
    %v2218 = vld [vmem:[%s2 + $0x18] sm:$0xff]
    %v2219 = vld [vmem:[%s2 + $0x40] sm:$0x1]
    %v2220 = vlaneseq
    %v2221 = vshrl.u32 %v2220, 7
    %v2222 = vsub.s32 0, %v2221
    %v2223 = vrot.slane %v2219, %v2222
    %v2225 = vsel %vm143, %v2213, 0
    %v2228 = vsel %vm143, %v2214, 0
    %2230 = vmatprep.subr.mxu0 0.0
    %2231 = vmatpush1.msra.mxu0 0.0
    %2232 = vmatprep.subr.mxu0 0.0
    %2233 = vmatpush1.msra.mxu0 0.0
    %2234 = vmatprep.subr.mxu0 0.0
    %2235 = vmatpush1.msra.mxu0 0.0
    %2236 = vmatprep.subr.mxu0 0.0
    %2237 = vmatpush1.msra.mxu0 0.0
    %2238 = vmatprep.subr.mxu0 0.0
    %2239 = vmatpush1.msra.mxu0 0.0
    %2240 = vmatprep.subr.mxu0 0.0
    %2241 = vmatpush1.msra.mxu0 0.0
    %2242 = vmatprep.subr.mxu0 0.0
    %2243 = vmatpush1.msra.mxu0 0.0
    %2244 = vmatprep.subr.mxu0 0.0
    %2245 = vmatpush1.msra.mxu0 0.0
    %2246 = vmatprep.subr.mxu0 0.0
    %2247 = vmatpush1.msra.mxu0 0.0
    %2248 = vmatprep.subr.mxu0 0.0
    %2249 = vmatpush1.msra.mxu0 0.0
    %2250 = vmatprep.subr.mxu0 0.0
    %2251 = vmatpush1.msra.mxu0 0.0
    %2252 = vmatprep.subr.mxu0 0.0
    %2253 = vmatpush1.msra.mxu0 0.0
    %2254 = vmatprep.subr.mxu0 0.0
    %2255 = vmatpush1.msra.mxu0 %v2218
    %2256 = vmatprep.subr.mxu0 0.0
    %2257 = vmatpush1.msra.mxu0 %v2217
    %2258 = vmatprep.subr.mxu0 0.0
    %2259 = vmatpush1.msra.mxu0 %v2216
    %2260 = vmatprep.subr.mxu0 0.0
    %2261 = vmatpush1.msra.mxu0 %v2215
    %2262 = vmatprep.subr.mxu0 0.0
    %2263 = vmatpush2.msra.mxu0 0.0
    %2264 = vmatprep.subr.mxu0 0.0
    %2265 = vmatpush2.msra.mxu0 0.0
    %2266 = vmatprep.subr.mxu0 0.0
    %2267 = vmatpush2.msra.mxu0 0.0
    %2268 = vmatprep.subr.mxu0 0.0
    %2269 = vmatpush2.msra.mxu0 0.0
    %2270 = vmatprep.subr.mxu0 0.0
    %2271 = vmatpush2.msra.mxu0 0.0
    %2272 = vmatprep.subr.mxu0 0.0
    %2273 = vmatpush2.msra.mxu0 0.0
    %2274 = vmatprep.subr.mxu0 0.0
    %2275 = vmatpush2.msra.mxu0 0.0
    %2276 = vmatprep.subr.mxu0 0.0
    %2277 = vmatpush2.msra.mxu0 0.0
    %2278 = vmatprep.subr.mxu0 0.0
    %2279 = vmatpush2.msra.mxu0 0.0
    %2280 = vmatprep.subr.mxu0 0.0
    %2281 = vmatpush2.msra.mxu0 0.0
    %2282 = vmatprep.subr.mxu0 0.0
    %2283 = vmatpush2.msra.mxu0 0.0
    %2284 = vmatprep.subr.mxu0 0.0
    %2285 = vmatpush2.msra.mxu0 0.0
    %2286 = vmatprep.subr.mxu0 0.0
    %2287 = vmatpush2.msra.mxu0 0.0
    %2288 = vmatprep.subr.mxu0 0.0
    %2289 = vmatpush2.msra.mxu0 0.0
    %2290 = vmatprep.subr.mxu0 0.0
    %2291 = vmatpush2.msra.mxu0 0.0
    %2292 = vmatprep.subr.mxu0 0.0
    %2293 = vmatpush2.msra.mxu0 0.0
    %2294 = vmatprep.mubr.f32.mxu0 0.0
    %2295 = vmatmul.mubr.f32.gmra.mxu0 %v2225
    %v2296 = vpop.f32.mrf.mxu0
    %v2297 = vadd.f32 %v2223, %v2296
    %v2298 = vpop.f32.mrf.mxu0
    %2299 = vmatprep.mubr.f32.mxu0 0.0
    %2300 = vmatmul.mubr.f32.gmra.mxu0 %v2228
    %v2301 = vpop.f32.mrf.mxu0
    %v2302 = vadd.f32 %v2223, %v2301
    %v2303 = vpop.f32.mrf.mxu0
    %2304 = vdwg.mxu0
    %v2305 = vmul.f32 %v2297, 1.702
    %v2306 = vmul.f32 %v2302, 1.702
    %v2307 = vxor.u32 %v2305, 2147483648
    %v2308 = vxor.u32 %v2306, 2147483648
    %v2309 = vmul.f32 %v2307, 1.442695
    %v2310 = vpow.pop %v2309
    %v2311 = vmul.f32 %v2308, 1.442695
    %v2312 = vpow.pop %v2311
    %v2313 = vadd.f32 %v2310, 1.0
    %v2314 = vadd.f32 %v2312, 1.0
    %v2315 = vrcp.pop %v2313
    %v2316 = vmul.f32 1.0, %v2315
    %v2317 = vrcp.pop %v2314
    %v2318 = vmul.f32 1.0, %v2317
    %v2319 = vmul.f32 %v2297, %v2316
    %v2320 = vmul.f32 %v2302, %v2318
    %v2321 = vld [vmem:[%s1 + $0x159] sm:$0xff]
    %v2322 = vld [vmem:[%s1 + $0x161] sm:$0xff]
    %v2323 = vld [vmem:[%s1 + $0x169] sm:$0xff]
    %v2324 = vld [vmem:[%s1 + $0x171] sm:$0xff]
    %v2325 = vld [vmem:[%s1 + $0x179] sm:$0xff]
    %v2326 = vld [vmem:[%s1 + $0x181] sm:$0xff]
    %v2327 = vld [vmem:[%s1 + $0x189] sm:$0xff]
    %v2328 = vld [vmem:[%s1 + $0x191] sm:$0xff]
    %v2329 = vld [vmem:[%s1 + $0x199] sm:$0xff]
    %v2330 = vld [vmem:[%s1 + $0x1a1] sm:$0xff]
    %v2331 = vld [vmem:[%s1 + $0x1a9] sm:$0xff]
    %v2332 = vld [vmem:[%s1 + $0x1b1] sm:$0xff]
    %v2333 = vld [vmem:[%s1 + $0x1b9] sm:$0xff]
    %v2334 = vld [vmem:[%s1 + $0x1c1] sm:$0xff]
    %v2335 = vld [vmem:[%s1 + $0x1c9] sm:$0xff]
    %v2336 = vld [vmem:[%s1 + $0x1d1] sm:$0xff]
    %2337 = vmatprep.subr.mxu0 0.0
    %2338 = vmatpush1.msra.mxu0 %v2336
    %2339 = vmatprep.subr.mxu0 0.0
    %2340 = vmatpush1.msra.mxu0 %v2335
    %2341 = vmatprep.subr.mxu0 0.0
    %2342 = vmatpush1.msra.mxu0 %v2334
    %2343 = vmatprep.subr.mxu0 0.0
    %2344 = vmatpush1.msra.mxu0 %v2333
    %2345 = vmatprep.subr.mxu0 0.0
    %2346 = vmatpush1.msra.mxu0 %v2332
    %2347 = vmatprep.subr.mxu0 0.0
    %2348 = vmatpush1.msra.mxu0 %v2331
    %2349 = vmatprep.subr.mxu0 0.0
    %2350 = vmatpush1.msra.mxu0 %v2330
    %2351 = vmatprep.subr.mxu0 0.0
    %2352 = vmatpush1.msra.mxu0 %v2329
    %2353 = vmatprep.subr.mxu0 0.0
    %2354 = vmatpush1.msra.mxu0 %v2328
    %2355 = vmatprep.subr.mxu0 0.0
    %2356 = vmatpush1.msra.mxu0 %v2327
    %2357 = vmatprep.subr.mxu0 0.0
    %2358 = vmatpush1.msra.mxu0 %v2326
    %2359 = vmatprep.subr.mxu0 0.0
    %2360 = vmatpush1.msra.mxu0 %v2325
    %2361 = vmatprep.subr.mxu0 0.0
    %2362 = vmatpush1.msra.mxu0 %v2324
    %2363 = vmatprep.subr.mxu0 0.0
    %2364 = vmatpush1.msra.mxu0 %v2323
    %2365 = vmatprep.subr.mxu0 0.0
    %2366 = vmatpush1.msra.mxu0 %v2322
    %2367 = vmatprep.subr.mxu0 0.0
    %2368 = vmatpush1.msra.mxu0 %v2321
    %2369 = vmatprep.subr.mxu0 0.0
    %2370 = vmatpush2.msra.mxu0 0.0
    %2371 = vmatprep.subr.mxu0 0.0
    %2372 = vmatpush2.msra.mxu0 0.0
    %2373 = vmatprep.subr.mxu0 0.0
    %2374 = vmatpush2.msra.mxu0 0.0
    %2375 = vmatprep.subr.mxu0 0.0
    %2376 = vmatpush2.msra.mxu0 0.0
    %2377 = vmatprep.subr.mxu0 0.0
    %2378 = vmatpush2.msra.mxu0 0.0
    %2379 = vmatprep.subr.mxu0 0.0
    %2380 = vmatpush2.msra.mxu0 0.0
    %2381 = vmatprep.subr.mxu0 0.0
    %2382 = vmatpush2.msra.mxu0 0.0
    %2383 = vmatprep.subr.mxu0 0.0
    %2384 = vmatpush2.msra.mxu0 0.0
    %2385 = vmatprep.subr.mxu0 0.0
    %2386 = vmatpush2.msra.mxu0 0.0
    %2387 = vmatprep.subr.mxu0 0.0
    %2388 = vmatpush2.msra.mxu0 0.0
    %2389 = vmatprep.subr.mxu0 0.0
    %2390 = vmatpush2.msra.mxu0 0.0
    %2391 = vmatprep.subr.mxu0 0.0
    %2392 = vmatpush2.msra.mxu0 0.0
    %2393 = vmatprep.subr.mxu0 0.0
    %2394 = vmatpush2.msra.mxu0 0.0
    %2395 = vmatprep.subr.mxu0 0.0
    %2396 = vmatpush2.msra.mxu0 0.0
    %2397 = vmatprep.subr.mxu0 0.0
    %2398 = vmatpush2.msra.mxu0 0.0
    %2399 = vmatprep.subr.mxu0 0.0
    %2400 = vmatpush2.msra.mxu0 0.0
    %2401 = vmatprep.mubr.f32.mxu0 0.0
    %2402 = vmatmul.mubr.f32.gmra.mxu0 %v2319
    %v2403 = vpop.f32.mrf.mxu0
    %v2404 = vadd.f32 0.0, %v2403
    %v2405 = vpop.f32.mrf.mxu0
    %2406 = vmatprep.mubr.f32.mxu0 0.0
    %2407 = vmatmul.mubr.f32.gmra.mxu0 %v2320
    %v2408 = vpop.f32.mrf.mxu0
    %v2409 = vadd.f32 0.0, %v2408
    %v2410 = vpop.f32.mrf.mxu0
    %2411 = vdwg.mxu0
    %v2412 = vadd.f32 %v2174, %v2404
    %v2413 = vadd.f32 %v2175, %v2409
    %v2414 = vld [vmem:[%s1 + $0x1d9] sm:$0x1]
    %v2415 = vlaneseq
    %v2416 = vshrl.u32 %v2415, 7
    %v2417 = vsub.s32 0, %v2416
    %v2418 = vrot.slane %v2414, %v2417
    %v2419 = vadd.f32 %v2412, %v2418
    %v2420 = vadd.f32 %v2413, %v2418
    %v2421 = vld [vmem:[%s1 + $0x1da] sm:$0x3]
    %v2422 = vsel %vm143, %v2419, 0.0
    %2423 = vadd.xlane.f32.xlu0 %v2422
    %v2424 = vpop.xlane.xlu0 %2423
    %v2425 = vsel %vm147, %v2420, 0.0
    %2426 = vadd.xlane.f32.xlu0 %v2425
    %v2427 = vpop.xlane.xlu0 %2426
    %v2428 = vmul.f32 %v2424, %v151
    %v2429 = vmul.f32 %v2427, %v151
    %v2430 = vsub.f32 %v2419, %v2428
    %v2431 = vsub.f32 %v2420, %v2429
    %v2432 = vmul.f32 %v2430, %v2430
    %v2433 = vmul.f32 %v2431, %v2431
    %v2434 = vsel %vm143, %v2432, 0.0
    %2435 = vadd.xlane.f32.xlu0 %v2434
    %v2436 = vpop.xlane.xlu0 %2435
    %v2437 = vsel %vm147, %v2433, 0.0
    %2438 = vadd.xlane.f32.xlu0 %v2437
    %v2439 = vpop.xlane.xlu0 %2438
    %v2440 = vmul.f32 %v2436, %v151
    %v2441 = vmul.f32 %v2439, %v151
    %v2442 = vadd.f32 %v2440, 1e-05
    %v2443 = vadd.f32 %v2441, 1e-05
    %v2444 = vrsqrt.pop %v2442
    %v2445 = vrsqrt.pop %v2443
    %v2446 = vmul.f32 %v2430, %v2444
    %v2447 = vmul.f32 %v2431, %v2445
    %v2448 = vlaneseq
    %v2449 = vshrl.u32 %v2448, 7
    %v2450 = vsub.s32 0, %v2449
    %v2451 = vrot.slane %v2421, %v2450
    %v2452 = vmul.f32 %v2446, %v2451
    %v2453 = vmul.f32 %v2447, %v2451
    %v2454 = vlaneseq
    %v2455 = vshrl.u32 %v2454, 7
    %v2456 = vsub.s32 1, %v2455
    %v2457 = vrot.slane %v2421, %v2456
    %v2458 = vadd.f32 %v2452, %v2457
    %v2459 = vadd.f32 %v2453, %v2457
    %v2460 = vld [vmem:[%s1 + $0x1dc] sm:$0xff]
    %v2461 = vld [vmem:[%s1 + $0x1e4] sm:$0xff]
    %v2462 = vld [vmem:[%s1 + $0x1ec] sm:$0xff]
    %v2463 = vld [vmem:[%s1 + $0x1f4] sm:$0xff]
    %v2464 = vld [vmem:[%s1 + $0x1fc] sm:$0xff]
    %v2465 = vld [vmem:[%s1 + $0x204] sm:$0xff]
    %v2466 = vld [vmem:[%s1 + $0x20c] sm:$0xff]
    %v2467 = vld [vmem:[%s1 + $0x214] sm:$0xff]
    %v2468 = vld [vmem:[%s1 + $0x21c] sm:$0xff]
    %v2469 = vld [vmem:[%s1 + $0x224] sm:$0xff]
    %v2470 = vld [vmem:[%s1 + $0x22c] sm:$0xff]
    %v2471 = vld [vmem:[%s1 + $0x234] sm:$0xff]
    %v2472 = vld [vmem:[%s1 + $0x23c] sm:$0xff]
    %v2473 = vld [vmem:[%s1 + $0x244] sm:$0xf]
    %v2474 = vlaneseq
    %v2475 = vshrl.u32 %v2474, 7
    %v2476 = vsub.s32 0, %v2475
    %v2477 = vrot.slane %v2472, %v2476
    %v2479 = vsel %vm143, %v2458, 0
    %v2482 = vsel %vm143, %v2459, 0
    %v2485 = vsel %vm143, %v2460, 0
    %2487 = vmatprep.subr.mxu0 0.0
    %2488 = vmatpush1.xpose.msra.mxu0 0.0
    %2489 = vmatprep.subr.mxu0 0.0
    %2490 = vmatpush1.xpose.msra.mxu0 0.0
    %2491 = vmatprep.subr.mxu0 0.0
    %2492 = vmatpush1.xpose.msra.mxu0 0.0
    %2493 = vmatprep.subr.mxu0 0.0
    %2494 = vmatpush1.xpose.msra.mxu0 0.0
    %2495 = vmatprep.subr.mxu0 0.0
    %2496 = vmatpush1.xpose.msra.mxu0 0.0
    %2497 = vmatprep.subr.mxu0 0.0
    %2498 = vmatpush1.xpose.msra.mxu0 0.0
    %2499 = vmatprep.subr.mxu0 0.0
    %2500 = vmatpush1.xpose.msra.mxu0 0.0
    %2501 = vmatprep.subr.mxu0 0.0
    %2502 = vmatpush1.xpose.msra.mxu0 0.0
    %2503 = vmatprep.subr.mxu0 0.0
    %2504 = vmatpush1.xpose.msra.mxu0 0.0
    %2505 = vmatprep.subr.mxu0 0.0
    %2506 = vmatpush1.xpose.msra.mxu0 0.0
    %2507 = vmatprep.subr.mxu0 0.0
    %2508 = vmatpush1.xpose.msra.mxu0 0.0
    %2509 = vmatprep.subr.mxu0 0.0
    %2510 = vmatpush1.xpose.msra.mxu0 0.0
    %2511 = vmatprep.subr.mxu0 0.0
    %2512 = vmatpush1.xpose.msra.mxu0 0.0
    %2513 = vmatprep.subr.mxu0 0.0
    %2514 = vmatpush1.xpose.msra.mxu0 0.0
    %2515 = vmatprep.subr.mxu0 0.0
    %2516 = vmatpush1.xpose.msra.mxu0 0.0
    %2517 = vmatprep.subr.mxu0 0.0
    %2518 = vmatpush1.xpose.msra.mxu0 %v2485
    %2519 = vmatprep.subr.mxu0 0.0
    %2520 = vmatpush2.xpose.msra.mxu0 0.0
    %2521 = vmatprep.subr.mxu0 0.0
    %2522 = vmatpush2.xpose.msra.mxu0 0.0
    %2523 = vmatprep.subr.mxu0 0.0
    %2524 = vmatpush2.xpose.msra.mxu0 0.0
    %2525 = vmatprep.subr.mxu0 0.0
    %2526 = vmatpush2.xpose.msra.mxu0 0.0
    %2527 = vmatprep.subr.mxu0 0.0
    %2528 = vmatpush2.xpose.msra.mxu0 0.0
    %2529 = vmatprep.subr.mxu0 0.0
    %2530 = vmatpush2.xpose.msra.mxu0 0.0
    %2531 = vmatprep.subr.mxu0 0.0
    %2532 = vmatpush2.xpose.msra.mxu0 0.0
    %2533 = vmatprep.subr.mxu0 0.0
    %2534 = vmatpush2.xpose.msra.mxu0 0.0
    %2535 = vmatprep.subr.mxu0 0.0
    %2536 = vmatpush2.xpose.msra.mxu0 0.0
    %2537 = vmatprep.subr.mxu0 0.0
    %2538 = vmatpush2.xpose.msra.mxu0 0.0
    %2539 = vmatprep.subr.mxu0 0.0
    %2540 = vmatpush2.xpose.msra.mxu0 0.0
    %2541 = vmatprep.subr.mxu0 0.0
    %2542 = vmatpush2.xpose.msra.mxu0 0.0
    %2543 = vmatprep.subr.mxu0 0.0
    %2544 = vmatpush2.xpose.msra.mxu0 0.0
    %2545 = vmatprep.subr.mxu0 0.0
    %2546 = vmatpush2.xpose.msra.mxu0 0.0
    %2547 = vmatprep.subr.mxu0 0.0
    %2548 = vmatpush2.xpose.msra.mxu0 0.0
    %2549 = vmatprep.subr.mxu0 0.0
    %2550 = vmatpush2.xpose.msra.mxu0 0.0
    %2551 = vmatprep.mubr.f32.mxu0 0.0
    %2552 = vmatmul.mubr.f32.gmra.mxu0 %v2479
    %v2553 = vpop.f32.mrf.mxu0
    %v2554 = vadd.f32 %v2477, %v2553
    %v2555 = vpop.f32.mrf.mxu0
    %2556 = vmatprep.mubr.f32.mxu0 0.0
    %2557 = vmatmul.mubr.f32.gmra.mxu0 %v2482
    %v2558 = vpop.f32.mrf.mxu0
    %v2559 = vadd.f32 %v2477, %v2558
    %v2560 = vpop.f32.mrf.mxu0
    %2561 = vdwg.mxu0
    %v2562 = vlaneseq
    %v2563 = vshrl.u32 %v2562, 7
    %v2564 = vsub.s32 4, %v2563
    %v2565 = vrot.slane %v2472, %v2564
    %v2567 = vsel %vm143, %v2464, 0
    %2569 = vmatprep.subr.mxu0 0.0
    %2570 = vmatpush1.xpose.msra.mxu0 0.0
    %2571 = vmatprep.subr.mxu0 0.0
    %2572 = vmatpush1.xpose.msra.mxu0 0.0
    %2573 = vmatprep.subr.mxu0 0.0
    %2574 = vmatpush1.xpose.msra.mxu0 0.0
    %2575 = vmatprep.subr.mxu0 0.0
    %2576 = vmatpush1.xpose.msra.mxu0 0.0
    %2577 = vmatprep.subr.mxu0 0.0
    %2578 = vmatpush1.xpose.msra.mxu0 0.0
    %2579 = vmatprep.subr.mxu0 0.0
    %2580 = vmatpush1.xpose.msra.mxu0 0.0
    %2581 = vmatprep.subr.mxu0 0.0
    %2582 = vmatpush1.xpose.msra.mxu0 0.0
    %2583 = vmatprep.subr.mxu0 0.0
    %2584 = vmatpush1.xpose.msra.mxu0 0.0
    %2585 = vmatprep.subr.mxu0 0.0
    %2586 = vmatpush1.xpose.msra.mxu0 0.0
    %2587 = vmatprep.subr.mxu0 0.0
    %2588 = vmatpush1.xpose.msra.mxu0 0.0
    %2589 = vmatprep.subr.mxu0 0.0
    %2590 = vmatpush1.xpose.msra.mxu0 0.0
    %2591 = vmatprep.subr.mxu0 0.0
    %2592 = vmatpush1.xpose.msra.mxu0 0.0
    %2593 = vmatprep.subr.mxu0 0.0
    %2594 = vmatpush1.xpose.msra.mxu0 0.0
    %2595 = vmatprep.subr.mxu0 0.0
    %2596 = vmatpush1.xpose.msra.mxu0 0.0
    %2597 = vmatprep.subr.mxu0 0.0
    %2598 = vmatpush1.xpose.msra.mxu0 0.0
    %2599 = vmatprep.subr.mxu0 0.0
    %2600 = vmatpush1.xpose.msra.mxu0 %v2567
    %2601 = vmatprep.subr.mxu0 0.0
    %2602 = vmatpush2.xpose.msra.mxu0 0.0
    %2603 = vmatprep.subr.mxu0 0.0
    %2604 = vmatpush2.xpose.msra.mxu0 0.0
    %2605 = vmatprep.subr.mxu0 0.0
    %2606 = vmatpush2.xpose.msra.mxu0 0.0
    %2607 = vmatprep.subr.mxu0 0.0
    %2608 = vmatpush2.xpose.msra.mxu0 0.0
    %2609 = vmatprep.subr.mxu0 0.0
    %2610 = vmatpush2.xpose.msra.mxu0 0.0
    %2611 = vmatprep.subr.mxu0 0.0
    %2612 = vmatpush2.xpose.msra.mxu0 0.0
    %2613 = vmatprep.subr.mxu0 0.0
    %2614 = vmatpush2.xpose.msra.mxu0 0.0
    %2615 = vmatprep.subr.mxu0 0.0
    %2616 = vmatpush2.xpose.msra.mxu0 0.0
    %2617 = vmatprep.subr.mxu0 0.0
    %2618 = vmatpush2.xpose.msra.mxu0 0.0
    %2619 = vmatprep.subr.mxu0 0.0
    %2620 = vmatpush2.xpose.msra.mxu0 0.0
    %2621 = vmatprep.subr.mxu0 0.0
    %2622 = vmatpush2.xpose.msra.mxu0 0.0
    %2623 = vmatprep.subr.mxu0 0.0
    %2624 = vmatpush2.xpose.msra.mxu0 0.0
    %2625 = vmatprep.subr.mxu0 0.0
    %2626 = vmatpush2.xpose.msra.mxu0 0.0
    %2627 = vmatprep.subr.mxu0 0.0
    %2628 = vmatpush2.xpose.msra.mxu0 0.0
    %2629 = vmatprep.subr.mxu0 0.0
    %2630 = vmatpush2.xpose.msra.mxu0 0.0
    %2631 = vmatprep.subr.mxu0 0.0
    %2632 = vmatpush2.xpose.msra.mxu0 0.0
    %2633 = vmatprep.mubr.f32.mxu0 0.0
    %2634 = vmatmul.mubr.f32.gmra.mxu0 %v2479
    %v2635 = vpop.f32.mrf.mxu0
    %v2636 = vadd.f32 %v2565, %v2635
    %v2637 = vpop.f32.mrf.mxu0
    %2638 = vmatprep.mubr.f32.mxu0 0.0
    %2639 = vmatmul.mubr.f32.gmra.mxu0 %v2482
    %v2640 = vpop.f32.mrf.mxu0
    %v2641 = vadd.f32 %v2565, %v2640
    %v2642 = vpop.f32.mrf.mxu0
    %2643 = vdwg.mxu0
    %v2644 = vlaneseq
    %v2645 = vshrl.u32 %v2644, 7
    %v2646 = vsub.s32 0, %v2645
    %v2647 = vrot.slane %v2473, %v2646
    %v2649 = vsel %vm143, %v2468, 0
    %2651 = vmatprep.subr.mxu0 0.0
    %2652 = vmatpush1.xpose.msra.mxu0 0.0
    %2653 = vmatprep.subr.mxu0 0.0
    %2654 = vmatpush1.xpose.msra.mxu0 0.0
    %2655 = vmatprep.subr.mxu0 0.0
    %2656 = vmatpush1.xpose.msra.mxu0 0.0
    %2657 = vmatprep.subr.mxu0 0.0
    %2658 = vmatpush1.xpose.msra.mxu0 0.0
    %2659 = vmatprep.subr.mxu0 0.0
    %2660 = vmatpush1.xpose.msra.mxu0 0.0
    %2661 = vmatprep.subr.mxu0 0.0
    %2662 = vmatpush1.xpose.msra.mxu0 0.0
    %2663 = vmatprep.subr.mxu0 0.0
    %2664 = vmatpush1.xpose.msra.mxu0 0.0
    %2665 = vmatprep.subr.mxu0 0.0
    %2666 = vmatpush1.xpose.msra.mxu0 0.0
    %2667 = vmatprep.subr.mxu0 0.0
    %2668 = vmatpush1.xpose.msra.mxu0 0.0
    %2669 = vmatprep.subr.mxu0 0.0
    %2670 = vmatpush1.xpose.msra.mxu0 0.0
    %2671 = vmatprep.subr.mxu0 0.0
    %2672 = vmatpush1.xpose.msra.mxu0 0.0
    %2673 = vmatprep.subr.mxu0 0.0
    %2674 = vmatpush1.xpose.msra.mxu0 0.0
    %2675 = vmatprep.subr.mxu0 0.0
    %2676 = vmatpush1.xpose.msra.mxu0 0.0
    %2677 = vmatprep.subr.mxu0 0.0
    %2678 = vmatpush1.xpose.msra.mxu0 0.0
    %2679 = vmatprep.subr.mxu0 0.0
    %2680 = vmatpush1.xpose.msra.mxu0 0.0
    %2681 = vmatprep.subr.mxu0 0.0
    %2682 = vmatpush1.xpose.msra.mxu0 %v2649
    %2683 = vmatprep.subr.mxu0 0.0
    %2684 = vmatpush2.xpose.msra.mxu0 0.0
    %2685 = vmatprep.subr.mxu0 0.0
    %2686 = vmatpush2.xpose.msra.mxu0 0.0
    %2687 = vmatprep.subr.mxu0 0.0
    %2688 = vmatpush2.xpose.msra.mxu0 0.0
    %2689 = vmatprep.subr.mxu0 0.0
    %2690 = vmatpush2.xpose.msra.mxu0 0.0
    %2691 = vmatprep.subr.mxu0 0.0
    %2692 = vmatpush2.xpose.msra.mxu0 0.0
    %2693 = vmatprep.subr.mxu0 0.0
    %2694 = vmatpush2.xpose.msra.mxu0 0.0
    %2695 = vmatprep.subr.mxu0 0.0
    %2696 = vmatpush2.xpose.msra.mxu0 0.0
    %2697 = vmatprep.subr.mxu0 0.0
    %2698 = vmatpush2.xpose.msra.mxu0 0.0
    %2699 = vmatprep.subr.mxu0 0.0
    %2700 = vmatpush2.xpose.msra.mxu0 0.0
    %2701 = vmatprep.subr.mxu0 0.0
    %2702 = vmatpush2.xpose.msra.mxu0 0.0
    %2703 = vmatprep.subr.mxu0 0.0
    %2704 = vmatpush2.xpose.msra.mxu0 0.0
    %2705 = vmatprep.subr.mxu0 0.0
    %2706 = vmatpush2.xpose.msra.mxu0 0.0
    %2707 = vmatprep.subr.mxu0 0.0
    %2708 = vmatpush2.xpose.msra.mxu0 0.0
    %2709 = vmatprep.subr.mxu0 0.0
    %2710 = vmatpush2.xpose.msra.mxu0 0.0
    %2711 = vmatprep.subr.mxu0 0.0
    %2712 = vmatpush2.xpose.msra.mxu0 0.0
    %2713 = vmatprep.subr.mxu0 0.0
    %2714 = vmatpush2.xpose.msra.mxu0 0.0
    %2715 = vmatprep.mubr.f32.mxu0 0.0
    %2716 = vmatmul.mubr.f32.gmra.mxu0 %v2479
    %v2717 = vpop.f32.mrf.mxu0
    %v2718 = vadd.f32 %v2647, %v2717
    %v2719 = vpop.f32.mrf.mxu0
    %2720 = vmatprep.mubr.f32.mxu0 0.0
    %2721 = vmatmul.mubr.f32.gmra.mxu0 %v2482
    %v2722 = vpop.f32.mrf.mxu0
    %v2723 = vadd.f32 %v2647, %v2722
    %v2724 = vpop.f32.mrf.mxu0
    %2725 = vdwg.mxu0
    %v2727 = vsel %vm520, %v2554, 0
    %v2730 = vsel %vm520, %v2559, 0
    %v2733 = vsel %vm520, %v2636, 0
    %v2736 = vsel %vm520, %v2641, 0
    %2738 = vmatprep.subr.mxu0 0.0
    %2739 = vmatpush1.xpose.msra.mxu0 0.0
    %2740 = vmatprep.subr.mxu0 0.0
    %2741 = vmatpush1.xpose.msra.mxu0 0.0
    %2742 = vmatprep.subr.mxu0 0.0
    %2743 = vmatpush1.xpose.msra.mxu0 0.0
    %2744 = vmatprep.subr.mxu0 0.0
    %2745 = vmatpush1.xpose.msra.mxu0 0.0
    %2746 = vmatprep.subr.mxu0 0.0
    %2747 = vmatpush1.xpose.msra.mxu0 0.0
    %2748 = vmatprep.subr.mxu0 0.0
    %2749 = vmatpush1.xpose.msra.mxu0 0.0
    %2750 = vmatprep.subr.mxu0 0.0
    %2751 = vmatpush1.xpose.msra.mxu0 0.0
    %2752 = vmatprep.subr.mxu0 0.0
    %2753 = vmatpush1.xpose.msra.mxu0 0.0
    %2754 = vmatprep.subr.mxu0 0.0
    %2755 = vmatpush1.xpose.msra.mxu0 0.0
    %2756 = vmatprep.subr.mxu0 0.0
    %2757 = vmatpush1.xpose.msra.mxu0 0.0
    %2758 = vmatprep.subr.mxu0 0.0
    %2759 = vmatpush1.xpose.msra.mxu0 0.0
    %2760 = vmatprep.subr.mxu0 0.0
    %2761 = vmatpush1.xpose.msra.mxu0 0.0
    %2762 = vmatprep.subr.mxu0 0.0
    %2763 = vmatpush1.xpose.msra.mxu0 0.0
    %2764 = vmatprep.subr.mxu0 0.0
    %2765 = vmatpush1.xpose.msra.mxu0 0.0
    %2766 = vmatprep.subr.mxu0 0.0
    %2767 = vmatpush1.xpose.msra.mxu0 %v2736
    %2768 = vmatprep.subr.mxu0 0.0
    %2769 = vmatpush1.xpose.msra.mxu0 %v2733
    %2770 = vmatprep.subr.mxu0 0.0
    %2771 = vmatpush2.xpose.msra.mxu0 0.0
    %2772 = vmatprep.subr.mxu0 0.0
    %2773 = vmatpush2.xpose.msra.mxu0 0.0
    %2774 = vmatprep.subr.mxu0 0.0
    %2775 = vmatpush2.xpose.msra.mxu0 0.0
    %2776 = vmatprep.subr.mxu0 0.0
    %2777 = vmatpush2.xpose.msra.mxu0 0.0
    %2778 = vmatprep.subr.mxu0 0.0
    %2779 = vmatpush2.xpose.msra.mxu0 0.0
    %2780 = vmatprep.subr.mxu0 0.0
    %2781 = vmatpush2.xpose.msra.mxu0 0.0
    %2782 = vmatprep.subr.mxu0 0.0
    %2783 = vmatpush2.xpose.msra.mxu0 0.0
    %2784 = vmatprep.subr.mxu0 0.0
    %2785 = vmatpush2.xpose.msra.mxu0 0.0
    %2786 = vmatprep.subr.mxu0 0.0
    %2787 = vmatpush2.xpose.msra.mxu0 0.0
    %2788 = vmatprep.subr.mxu0 0.0
    %2789 = vmatpush2.xpose.msra.mxu0 0.0
    %2790 = vmatprep.subr.mxu0 0.0
    %2791 = vmatpush2.xpose.msra.mxu0 0.0
    %2792 = vmatprep.subr.mxu0 0.0
    %2793 = vmatpush2.xpose.msra.mxu0 0.0
    %2794 = vmatprep.subr.mxu0 0.0
    %2795 = vmatpush2.xpose.msra.mxu0 0.0
    %2796 = vmatprep.subr.mxu0 0.0
    %2797 = vmatpush2.xpose.msra.mxu0 0.0
    %2798 = vmatprep.subr.mxu0 0.0
    %2799 = vmatpush2.xpose.msra.mxu0 0.0
    %2800 = vmatprep.subr.mxu0 0.0
    %2801 = vmatpush2.xpose.msra.mxu0 0.0
    %2802 = vmatprep.mubr.f32.mxu0 0.0
    %2803 = vmatmul.mubr.f32.gmra.mxu0 %v2727
    %v2804 = vpop.f32.mrf.mxu0
    %v2805 = vadd.f32 0.0, %v2804
    %v2806 = vpop.f32.mrf.mxu0
    %2807 = vmatprep.mubr.f32.mxu0 0.0
    %2808 = vmatmul.mubr.f32.gmra.mxu0 %v2730
    %v2809 = vpop.f32.mrf.mxu0
    %v2810 = vadd.f32 0.0, %v2809
    %v2811 = vpop.f32.mrf.mxu0
    %2812 = vdwg.mxu0
    %v2813 = vmul.f32 %v2805, 0.35355338
    %v2814 = vmul.f32 %v2810, 0.35355338
    %v2815 = vadd.f32 %v2813, %v213
    %v2816 = vadd.f32 %v2814, %v214
    %v2817 = vsel %vm612, %v2815, -inf
    %2818 = vmax.xlane.f32.xlu0 %v2817
    %v2819 = vpop.xlane.xlu0 %2818
    %v2820 = vsel %vm616, %v2816, -inf
    %2821 = vmax.xlane.f32.xlu0 %v2820
    %v2822 = vpop.xlane.xlu0 %2821
    %v2823 = vsub.f32 %v2815, %v2819
    %v2824 = vsub.f32 %v2816, %v2822
    %v2825 = vmul.f32 %v2823, 1.442695
    %v2826 = vpow.pop %v2825
    %v2827 = vmul.f32 %v2824, 1.442695
    %v2828 = vpow.pop %v2827
    %v2829 = vsel %vm612, %v2826, 0.0
    %2830 = vadd.xlane.f32.xlu0 %v2829
    %v2831 = vpop.xlane.xlu0 %2830
    %v2832 = vsel %vm616, %v2828, 0.0
    %2833 = vadd.xlane.f32.xlu0 %v2832
    %v2834 = vpop.xlane.xlu0 %2833
    %v2835 = vrcp.pop %v2831
    %v2836 = vrcp.pop %v2834
    %v2837 = vmul.f32 %v2826, %v2835
    %v2838 = vmul.f32 %v2828, %v2836
    %v2840 = vsel %vm612, %v2837, 0
    %v2843 = vsel %vm612, %v2838, 0
    %v2846 = vsel %vm642, %v2723, 0
    %2848 = vmatprep.subr.mxu0 0.0
    %2849 = vmatpush1.msra.mxu0 0.0
    %2850 = vmatprep.subr.mxu0 0.0
    %2851 = vmatpush1.msra.mxu0 0.0
    %2852 = vmatprep.subr.mxu0 0.0
    %2853 = vmatpush1.msra.mxu0 0.0
    %2854 = vmatprep.subr.mxu0 0.0
    %2855 = vmatpush1.msra.mxu0 0.0
    %2856 = vmatprep.subr.mxu0 0.0
    %2857 = vmatpush1.msra.mxu0 0.0
    %2858 = vmatprep.subr.mxu0 0.0
    %2859 = vmatpush1.msra.mxu0 0.0
    %2860 = vmatprep.subr.mxu0 0.0
    %2861 = vmatpush1.msra.mxu0 0.0
    %2862 = vmatprep.subr.mxu0 0.0
    %2863 = vmatpush1.msra.mxu0 0.0
    %2864 = vmatprep.subr.mxu0 0.0
    %2865 = vmatpush1.msra.mxu0 0.0
    %2866 = vmatprep.subr.mxu0 0.0
    %2867 = vmatpush1.msra.mxu0 0.0
    %2868 = vmatprep.subr.mxu0 0.0
    %2869 = vmatpush1.msra.mxu0 0.0
    %2870 = vmatprep.subr.mxu0 0.0
    %2871 = vmatpush1.msra.mxu0 0.0
    %2872 = vmatprep.subr.mxu0 0.0
    %2873 = vmatpush1.msra.mxu0 0.0
    %2874 = vmatprep.subr.mxu0 0.0
    %2875 = vmatpush1.msra.mxu0 0.0
    %2876 = vmatprep.subr.mxu0 0.0
    %2877 = vmatpush1.msra.mxu0 %v2846
    %2878 = vmatprep.subr.mxu0 0.0
    %2879 = vmatpush1.msra.mxu0 %v2718
    %2880 = vmatprep.subr.mxu0 0.0
    %2881 = vmatpush2.msra.mxu0 0.0
    %2882 = vmatprep.subr.mxu0 0.0
    %2883 = vmatpush2.msra.mxu0 0.0
    %2884 = vmatprep.subr.mxu0 0.0
    %2885 = vmatpush2.msra.mxu0 0.0
    %2886 = vmatprep.subr.mxu0 0.0
    %2887 = vmatpush2.msra.mxu0 0.0
    %2888 = vmatprep.subr.mxu0 0.0
    %2889 = vmatpush2.msra.mxu0 0.0
    %2890 = vmatprep.subr.mxu0 0.0
    %2891 = vmatpush2.msra.mxu0 0.0
    %2892 = vmatprep.subr.mxu0 0.0
    %2893 = vmatpush2.msra.mxu0 0.0
    %2894 = vmatprep.subr.mxu0 0.0
    %2895 = vmatpush2.msra.mxu0 0.0
    %2896 = vmatprep.subr.mxu0 0.0
    %2897 = vmatpush2.msra.mxu0 0.0
    %2898 = vmatprep.subr.mxu0 0.0
    %2899 = vmatpush2.msra.mxu0 0.0
    %2900 = vmatprep.subr.mxu0 0.0
    %2901 = vmatpush2.msra.mxu0 0.0
    %2902 = vmatprep.subr.mxu0 0.0
    %2903 = vmatpush2.msra.mxu0 0.0
    %2904 = vmatprep.subr.mxu0 0.0
    %2905 = vmatpush2.msra.mxu0 0.0
    %2906 = vmatprep.subr.mxu0 0.0
    %2907 = vmatpush2.msra.mxu0 0.0
    %2908 = vmatprep.subr.mxu0 0.0
    %2909 = vmatpush2.msra.mxu0 0.0
    %2910 = vmatprep.subr.mxu0 0.0
    %2911 = vmatpush2.msra.mxu0 0.0
    %2912 = vmatprep.mubr.f32.mxu0 0.0
    %2913 = vmatmul.mubr.f32.gmra.mxu0 %v2840
    %v2914 = vpop.f32.mrf.mxu0
    %v2915 = vadd.f32 0.0, %v2914
    %v2916 = vpop.f32.mrf.mxu0
    %2917 = vmatprep.mubr.f32.mxu0 0.0
    %2918 = vmatmul.mubr.f32.gmra.mxu0 %v2843
    %v2919 = vpop.f32.mrf.mxu0
    %v2920 = vadd.f32 0.0, %v2919
    %v2921 = vpop.f32.mrf.mxu0
    %2922 = vdwg.mxu0
    %v2923 = vlaneseq
    %v2924 = vshrl.u32 %v2923, 7
    %v2925 = vsub.s32 1, %v2924
    %v2926 = vrot.slane %v2472, %v2925
    %v2928 = vsel %vm143, %v2461, 0
    %2930 = vmatprep.subr.mxu0 0.0
    %2931 = vmatpush1.xpose.msra.mxu0 0.0
    %2932 = vmatprep.subr.mxu0 0.0
    %2933 = vmatpush1.xpose.msra.mxu0 0.0
    %2934 = vmatprep.subr.mxu0 0.0
    %2935 = vmatpush1.xpose.msra.mxu0 0.0
    %2936 = vmatprep.subr.mxu0 0.0
    %2937 = vmatpush1.xpose.msra.mxu0 0.0
    %2938 = vmatprep.subr.mxu0 0.0
    %2939 = vmatpush1.xpose.msra.mxu0 0.0
    %2940 = vmatprep.subr.mxu0 0.0
    %2941 = vmatpush1.xpose.msra.mxu0 0.0
    %2942 = vmatprep.subr.mxu0 0.0
    %2943 = vmatpush1.xpose.msra.mxu0 0.0
    %2944 = vmatprep.subr.mxu0 0.0
    %2945 = vmatpush1.xpose.msra.mxu0 0.0
    %2946 = vmatprep.subr.mxu0 0.0
    %2947 = vmatpush1.xpose.msra.mxu0 0.0
    %2948 = vmatprep.subr.mxu0 0.0
    %2949 = vmatpush1.xpose.msra.mxu0 0.0
    %2950 = vmatprep.subr.mxu0 0.0
    %2951 = vmatpush1.xpose.msra.mxu0 0.0
    %2952 = vmatprep.subr.mxu0 0.0
    %2953 = vmatpush1.xpose.msra.mxu0 0.0
    %2954 = vmatprep.subr.mxu0 0.0
    %2955 = vmatpush1.xpose.msra.mxu0 0.0
    %2956 = vmatprep.subr.mxu0 0.0
    %2957 = vmatpush1.xpose.msra.mxu0 0.0
    %2958 = vmatprep.subr.mxu0 0.0
    %2959 = vmatpush1.xpose.msra.mxu0 0.0
    %2960 = vmatprep.subr.mxu0 0.0
    %2961 = vmatpush1.xpose.msra.mxu0 %v2928
    %2962 = vmatprep.subr.mxu0 0.0
    %2963 = vmatpush2.xpose.msra.mxu0 0.0
    %2964 = vmatprep.subr.mxu0 0.0
    %2965 = vmatpush2.xpose.msra.mxu0 0.0
    %2966 = vmatprep.subr.mxu0 0.0
    %2967 = vmatpush2.xpose.msra.mxu0 0.0
    %2968 = vmatprep.subr.mxu0 0.0
    %2969 = vmatpush2.xpose.msra.mxu0 0.0
    %2970 = vmatprep.subr.mxu0 0.0
    %2971 = vmatpush2.xpose.msra.mxu0 0.0
    %2972 = vmatprep.subr.mxu0 0.0
    %2973 = vmatpush2.xpose.msra.mxu0 0.0
    %2974 = vmatprep.subr.mxu0 0.0
    %2975 = vmatpush2.xpose.msra.mxu0 0.0
    %2976 = vmatprep.subr.mxu0 0.0
    %2977 = vmatpush2.xpose.msra.mxu0 0.0
    %2978 = vmatprep.subr.mxu0 0.0
    %2979 = vmatpush2.xpose.msra.mxu0 0.0
    %2980 = vmatprep.subr.mxu0 0.0
    %2981 = vmatpush2.xpose.msra.mxu0 0.0
    %2982 = vmatprep.subr.mxu0 0.0
    %2983 = vmatpush2.xpose.msra.mxu0 0.0
    %2984 = vmatprep.subr.mxu0 0.0
    %2985 = vmatpush2.xpose.msra.mxu0 0.0
    %2986 = vmatprep.subr.mxu0 0.0
    %2987 = vmatpush2.xpose.msra.mxu0 0.0
    %2988 = vmatprep.subr.mxu0 0.0
    %2989 = vmatpush2.xpose.msra.mxu0 0.0
    %2990 = vmatprep.subr.mxu0 0.0
    %2991 = vmatpush2.xpose.msra.mxu0 0.0
    %2992 = vmatprep.subr.mxu0 0.0
    %2993 = vmatpush2.xpose.msra.mxu0 0.0
    %2994 = vmatprep.mubr.f32.mxu0 0.0
    %2995 = vmatmul.mubr.f32.gmra.mxu0 %v2479
    %v2996 = vpop.f32.mrf.mxu0
    %v2997 = vadd.f32 %v2926, %v2996
    %v2998 = vpop.f32.mrf.mxu0
    %2999 = vmatprep.mubr.f32.mxu0 0.0
    %3000 = vmatmul.mubr.f32.gmra.mxu0 %v2482
    %v3001 = vpop.f32.mrf.mxu0
    %v3002 = vadd.f32 %v2926, %v3001
    %v3003 = vpop.f32.mrf.mxu0
    %3004 = vdwg.mxu0
    %v3005 = vlaneseq
    %v3006 = vshrl.u32 %v3005, 7
    %v3007 = vsub.s32 5, %v3006
    %v3008 = vrot.slane %v2472, %v3007
    %v3010 = vsel %vm143, %v2465, 0
    %3012 = vmatprep.subr.mxu0 0.0
    %3013 = vmatpush1.xpose.msra.mxu0 0.0
    %3014 = vmatprep.subr.mxu0 0.0
    %3015 = vmatpush1.xpose.msra.mxu0 0.0
    %3016 = vmatprep.subr.mxu0 0.0
    %3017 = vmatpush1.xpose.msra.mxu0 0.0
    %3018 = vmatprep.subr.mxu0 0.0
    %3019 = vmatpush1.xpose.msra.mxu0 0.0
    %3020 = vmatprep.subr.mxu0 0.0
    %3021 = vmatpush1.xpose.msra.mxu0 0.0
    %3022 = vmatprep.subr.mxu0 0.0
    %3023 = vmatpush1.xpose.msra.mxu0 0.0
    %3024 = vmatprep.subr.mxu0 0.0
    %3025 = vmatpush1.xpose.msra.mxu0 0.0
    %3026 = vmatprep.subr.mxu0 0.0
    %3027 = vmatpush1.xpose.msra.mxu0 0.0
    %3028 = vmatprep.subr.mxu0 0.0
    %3029 = vmatpush1.xpose.msra.mxu0 0.0
    %3030 = vmatprep.subr.mxu0 0.0
    %3031 = vmatpush1.xpose.msra.mxu0 0.0
    %3032 = vmatprep.subr.mxu0 0.0
    %3033 = vmatpush1.xpose.msra.mxu0 0.0
    %3034 = vmatprep.subr.mxu0 0.0
    %3035 = vmatpush1.xpose.msra.mxu0 0.0
    %3036 = vmatprep.subr.mxu0 0.0
    %3037 = vmatpush1.xpose.msra.mxu0 0.0
    %3038 = vmatprep.subr.mxu0 0.0
    %3039 = vmatpush1.xpose.msra.mxu0 0.0
    %3040 = vmatprep.subr.mxu0 0.0
    %3041 = vmatpush1.xpose.msra.mxu0 0.0
    %3042 = vmatprep.subr.mxu0 0.0
    %3043 = vmatpush1.xpose.msra.mxu0 %v3010
    %3044 = vmatprep.subr.mxu0 0.0
    %3045 = vmatpush2.xpose.msra.mxu0 0.0
    %3046 = vmatprep.subr.mxu0 0.0
    %3047 = vmatpush2.xpose.msra.mxu0 0.0
    %3048 = vmatprep.subr.mxu0 0.0
    %3049 = vmatpush2.xpose.msra.mxu0 0.0
    %3050 = vmatprep.subr.mxu0 0.0
    %3051 = vmatpush2.xpose.msra.mxu0 0.0
    %3052 = vmatprep.subr.mxu0 0.0
    %3053 = vmatpush2.xpose.msra.mxu0 0.0
    %3054 = vmatprep.subr.mxu0 0.0
    %3055 = vmatpush2.xpose.msra.mxu0 0.0
    %3056 = vmatprep.subr.mxu0 0.0
    %3057 = vmatpush2.xpose.msra.mxu0 0.0
    %3058 = vmatprep.subr.mxu0 0.0
    %3059 = vmatpush2.xpose.msra.mxu0 0.0
    %3060 = vmatprep.subr.mxu0 0.0
    %3061 = vmatpush2.xpose.msra.mxu0 0.0
    %3062 = vmatprep.subr.mxu0 0.0
    %3063 = vmatpush2.xpose.msra.mxu0 0.0
    %3064 = vmatprep.subr.mxu0 0.0
    %3065 = vmatpush2.xpose.msra.mxu0 0.0
    %3066 = vmatprep.subr.mxu0 0.0
    %3067 = vmatpush2.xpose.msra.mxu0 0.0
    %3068 = vmatprep.subr.mxu0 0.0
    %3069 = vmatpush2.xpose.msra.mxu0 0.0
    %3070 = vmatprep.subr.mxu0 0.0
    %3071 = vmatpush2.xpose.msra.mxu0 0.0
    %3072 = vmatprep.subr.mxu0 0.0
    %3073 = vmatpush2.xpose.msra.mxu0 0.0
    %3074 = vmatprep.subr.mxu0 0.0
    %3075 = vmatpush2.xpose.msra.mxu0 0.0
    %3076 = vmatprep.mubr.f32.mxu0 0.0
    %3077 = vmatmul.mubr.f32.gmra.mxu0 %v2479
    %v3078 = vpop.f32.mrf.mxu0
    %v3079 = vadd.f32 %v3008, %v3078
    %v3080 = vpop.f32.mrf.mxu0
    %3081 = vmatprep.mubr.f32.mxu0 0.0
    %3082 = vmatmul.mubr.f32.gmra.mxu0 %v2482
    %v3083 = vpop.f32.mrf.mxu0
    %v3084 = vadd.f32 %v3008, %v3083
    %v3085 = vpop.f32.mrf.mxu0
    %3086 = vdwg.mxu0
    %v3087 = vlaneseq
    %v3088 = vshrl.u32 %v3087, 7
    %v3089 = vsub.s32 1, %v3088
    %v3090 = vrot.slane %v2473, %v3089
    %v3092 = vsel %vm143, %v2469, 0
    %3094 = vmatprep.subr.mxu0 0.0
    %3095 = vmatpush1.xpose.msra.mxu0 0.0
    %3096 = vmatprep.subr.mxu0 0.0
    %3097 = vmatpush1.xpose.msra.mxu0 0.0
    %3098 = vmatprep.subr.mxu0 0.0
    %3099 = vmatpush1.xpose.msra.mxu0 0.0
    %3100 = vmatprep.subr.mxu0 0.0
    %3101 = vmatpush1.xpose.msra.mxu0 0.0
    %3102 = vmatprep.subr.mxu0 0.0
    %3103 = vmatpush1.xpose.msra.mxu0 0.0
    %3104 = vmatprep.subr.mxu0 0.0
    %3105 = vmatpush1.xpose.msra.mxu0 0.0
    %3106 = vmatprep.subr.mxu0 0.0
    %3107 = vmatpush1.xpose.msra.mxu0 0.0
    %3108 = vmatprep.subr.mxu0 0.0
    %3109 = vmatpush1.xpose.msra.mxu0 0.0
    %3110 = vmatprep.subr.mxu0 0.0
    %3111 = vmatpush1.xpose.msra.mxu0 0.0
    %3112 = vmatprep.subr.mxu0 0.0
    %3113 = vmatpush1.xpose.msra.mxu0 0.0
    %3114 = vmatprep.subr.mxu0 0.0
    %3115 = vmatpush1.xpose.msra.mxu0 0.0
    %3116 = vmatprep.subr.mxu0 0.0
    %3117 = vmatpush1.xpose.msra.mxu0 0.0
    %3118 = vmatprep.subr.mxu0 0.0
    %3119 = vmatpush1.xpose.msra.mxu0 0.0
    %3120 = vmatprep.subr.mxu0 0.0
    %3121 = vmatpush1.xpose.msra.mxu0 0.0
    %3122 = vmatprep.subr.mxu0 0.0
    %3123 = vmatpush1.xpose.msra.mxu0 0.0
    %3124 = vmatprep.subr.mxu0 0.0
    %3125 = vmatpush1.xpose.msra.mxu0 %v3092
    %3126 = vmatprep.subr.mxu0 0.0
    %3127 = vmatpush2.xpose.msra.mxu0 0.0
    %3128 = vmatprep.subr.mxu0 0.0
    %3129 = vmatpush2.xpose.msra.mxu0 0.0
    %3130 = vmatprep.subr.mxu0 0.0
    %3131 = vmatpush2.xpose.msra.mxu0 0.0
    %3132 = vmatprep.subr.mxu0 0.0
    %3133 = vmatpush2.xpose.msra.mxu0 0.0
    %3134 = vmatprep.subr.mxu0 0.0
    %3135 = vmatpush2.xpose.msra.mxu0 0.0
    %3136 = vmatprep.subr.mxu0 0.0
    %3137 = vmatpush2.xpose.msra.mxu0 0.0
    %3138 = vmatprep.subr.mxu0 0.0
    %3139 = vmatpush2.xpose.msra.mxu0 0.0
    %3140 = vmatprep.subr.mxu0 0.0
    %3141 = vmatpush2.xpose.msra.mxu0 0.0
    %3142 = vmatprep.subr.mxu0 0.0
    %3143 = vmatpush2.xpose.msra.mxu0 0.0
    %3144 = vmatprep.subr.mxu0 0.0
    %3145 = vmatpush2.xpose.msra.mxu0 0.0
    %3146 = vmatprep.subr.mxu0 0.0
    %3147 = vmatpush2.xpose.msra.mxu0 0.0
    %3148 = vmatprep.subr.mxu0 0.0
    %3149 = vmatpush2.xpose.msra.mxu0 0.0
    %3150 = vmatprep.subr.mxu0 0.0
    %3151 = vmatpush2.xpose.msra.mxu0 0.0
    %3152 = vmatprep.subr.mxu0 0.0
    %3153 = vmatpush2.xpose.msra.mxu0 0.0
    %3154 = vmatprep.subr.mxu0 0.0
    %3155 = vmatpush2.xpose.msra.mxu0 0.0
    %3156 = vmatprep.subr.mxu0 0.0
    %3157 = vmatpush2.xpose.msra.mxu0 0.0
    %3158 = vmatprep.mubr.f32.mxu0 0.0
    %3159 = vmatmul.mubr.f32.gmra.mxu0 %v2479
    %v3160 = vpop.f32.mrf.mxu0
    %v3161 = vadd.f32 %v3090, %v3160
    %v3162 = vpop.f32.mrf.mxu0
    %3163 = vmatprep.mubr.f32.mxu0 0.0
    %3164 = vmatmul.mubr.f32.gmra.mxu0 %v2482
    %v3165 = vpop.f32.mrf.mxu0
    %v3166 = vadd.f32 %v3090, %v3165
    %v3167 = vpop.f32.mrf.mxu0
    %3168 = vdwg.mxu0
    %v3170 = vsel %vm520, %v2997, 0
    %v3173 = vsel %vm520, %v3002, 0
    %v3176 = vsel %vm520, %v3079, 0
    %v3179 = vsel %vm520, %v3084, 0
    %3181 = vmatprep.subr.mxu0 0.0
    %3182 = vmatpush1.xpose.msra.mxu0 0.0
    %3183 = vmatprep.subr.mxu0 0.0
    %3184 = vmatpush1.xpose.msra.mxu0 0.0
    %3185 = vmatprep.subr.mxu0 0.0
    %3186 = vmatpush1.xpose.msra.mxu0 0.0
    %3187 = vmatprep.subr.mxu0 0.0
    %3188 = vmatpush1.xpose.msra.mxu0 0.0
    %3189 = vmatprep.subr.mxu0 0.0
    %3190 = vmatpush1.xpose.msra.mxu0 0.0
    %3191 = vmatprep.subr.mxu0 0.0
    %3192 = vmatpush1.xpose.msra.mxu0 0.0
    %3193 = vmatprep.subr.mxu0 0.0
    %3194 = vmatpush1.xpose.msra.mxu0 0.0
    %3195 = vmatprep.subr.mxu0 0.0
    %3196 = vmatpush1.xpose.msra.mxu0 0.0
    %3197 = vmatprep.subr.mxu0 0.0
    %3198 = vmatpush1.xpose.msra.mxu0 0.0
    %3199 = vmatprep.subr.mxu0 0.0
    %3200 = vmatpush1.xpose.msra.mxu0 0.0
    %3201 = vmatprep.subr.mxu0 0.0
    %3202 = vmatpush1.xpose.msra.mxu0 0.0
    %3203 = vmatprep.subr.mxu0 0.0
    %3204 = vmatpush1.xpose.msra.mxu0 0.0
    %3205 = vmatprep.subr.mxu0 0.0
    %3206 = vmatpush1.xpose.msra.mxu0 0.0
    %3207 = vmatprep.subr.mxu0 0.0
    %3208 = vmatpush1.xpose.msra.mxu0 0.0
    %3209 = vmatprep.subr.mxu0 0.0
    %3210 = vmatpush1.xpose.msra.mxu0 %v3179
    %3211 = vmatprep.subr.mxu0 0.0
    %3212 = vmatpush1.xpose.msra.mxu0 %v3176
    %3213 = vmatprep.subr.mxu0 0.0
    %3214 = vmatpush2.xpose.msra.mxu0 0.0
    %3215 = vmatprep.subr.mxu0 0.0
    %3216 = vmatpush2.xpose.msra.mxu0 0.0
    %3217 = vmatprep.subr.mxu0 0.0
    %3218 = vmatpush2.xpose.msra.mxu0 0.0
    %3219 = vmatprep.subr.mxu0 0.0
    %3220 = vmatpush2.xpose.msra.mxu0 0.0
    %3221 = vmatprep.subr.mxu0 0.0
    %3222 = vmatpush2.xpose.msra.mxu0 0.0
    %3223 = vmatprep.subr.mxu0 0.0
    %3224 = vmatpush2.xpose.msra.mxu0 0.0
    %3225 = vmatprep.subr.mxu0 0.0
    %3226 = vmatpush2.xpose.msra.mxu0 0.0
    %3227 = vmatprep.subr.mxu0 0.0
    %3228 = vmatpush2.xpose.msra.mxu0 0.0
    %3229 = vmatprep.subr.mxu0 0.0
    %3230 = vmatpush2.xpose.msra.mxu0 0.0
    %3231 = vmatprep.subr.mxu0 0.0
    %3232 = vmatpush2.xpose.msra.mxu0 0.0
    %3233 = vmatprep.subr.mxu0 0.0
    %3234 = vmatpush2.xpose.msra.mxu0 0.0
    %3235 = vmatprep.subr.mxu0 0.0
    %3236 = vmatpush2.xpose.msra.mxu0 0.0
    %3237 = vmatprep.subr.mxu0 0.0
    %3238 = vmatpush2.xpose.msra.mxu0 0.0
    %3239 = vmatprep.subr.mxu0 0.0
    %3240 = vmatpush2.xpose.msra.mxu0 0.0
    %3241 = vmatprep.subr.mxu0 0.0
    %3242 = vmatpush2.xpose.msra.mxu0 0.0
    %3243 = vmatprep.subr.mxu0 0.0
    %3244 = vmatpush2.xpose.msra.mxu0 0.0
    %3245 = vmatprep.mubr.f32.mxu0 0.0
    %3246 = vmatmul.mubr.f32.gmra.mxu0 %v3170
    %v3247 = vpop.f32.mrf.mxu0
    %v3248 = vadd.f32 0.0, %v3247
    %v3249 = vpop.f32.mrf.mxu0
    %3250 = vmatprep.mubr.f32.mxu0 0.0
    %3251 = vmatmul.mubr.f32.gmra.mxu0 %v3173
    %v3252 = vpop.f32.mrf.mxu0
    %v3253 = vadd.f32 0.0, %v3252
    %v3254 = vpop.f32.mrf.mxu0
    %3255 = vdwg.mxu0
    %v3256 = vmul.f32 %v3248, 0.35355338
    %v3257 = vmul.f32 %v3253, 0.35355338
    %v3258 = vadd.f32 %v3256, %v213
    %v3259 = vadd.f32 %v3257, %v214
    %v3260 = vsel %vm612, %v3258, -inf
    %3261 = vmax.xlane.f32.xlu0 %v3260
    %v3262 = vpop.xlane.xlu0 %3261
    %v3263 = vsel %vm616, %v3259, -inf
    %3264 = vmax.xlane.f32.xlu0 %v3263
    %v3265 = vpop.xlane.xlu0 %3264
    %v3266 = vsub.f32 %v3258, %v3262
    %v3267 = vsub.f32 %v3259, %v3265
    %v3268 = vmul.f32 %v3266, 1.442695
    %v3269 = vpow.pop %v3268
    %v3270 = vmul.f32 %v3267, 1.442695
    %v3271 = vpow.pop %v3270
    %v3272 = vsel %vm612, %v3269, 0.0
    %3273 = vadd.xlane.f32.xlu0 %v3272
    %v3274 = vpop.xlane.xlu0 %3273
    %v3275 = vsel %vm616, %v3271, 0.0
    %3276 = vadd.xlane.f32.xlu0 %v3275
    %v3277 = vpop.xlane.xlu0 %3276
    %v3278 = vrcp.pop %v3274
    %v3279 = vrcp.pop %v3277
    %v3280 = vmul.f32 %v3269, %v3278
    %v3281 = vmul.f32 %v3271, %v3279
    %v3283 = vsel %vm612, %v3280, 0
    %v3286 = vsel %vm612, %v3281, 0
    %v3289 = vsel %vm642, %v3166, 0
    %3291 = vmatprep.subr.mxu0 0.0
    %3292 = vmatpush1.msra.mxu0 0.0
    %3293 = vmatprep.subr.mxu0 0.0
    %3294 = vmatpush1.msra.mxu0 0.0
    %3295 = vmatprep.subr.mxu0 0.0
    %3296 = vmatpush1.msra.mxu0 0.0
    %3297 = vmatprep.subr.mxu0 0.0
    %3298 = vmatpush1.msra.mxu0 0.0
    %3299 = vmatprep.subr.mxu0 0.0
    %3300 = vmatpush1.msra.mxu0 0.0
    %3301 = vmatprep.subr.mxu0 0.0
    %3302 = vmatpush1.msra.mxu0 0.0
    %3303 = vmatprep.subr.mxu0 0.0
    %3304 = vmatpush1.msra.mxu0 0.0
    %3305 = vmatprep.subr.mxu0 0.0
    %3306 = vmatpush1.msra.mxu0 0.0
    %3307 = vmatprep.subr.mxu0 0.0
    %3308 = vmatpush1.msra.mxu0 0.0
    %3309 = vmatprep.subr.mxu0 0.0
    %3310 = vmatpush1.msra.mxu0 0.0
    %3311 = vmatprep.subr.mxu0 0.0
    %3312 = vmatpush1.msra.mxu0 0.0
    %3313 = vmatprep.subr.mxu0 0.0
    %3314 = vmatpush1.msra.mxu0 0.0
    %3315 = vmatprep.subr.mxu0 0.0
    %3316 = vmatpush1.msra.mxu0 0.0
    %3317 = vmatprep.subr.mxu0 0.0
    %3318 = vmatpush1.msra.mxu0 0.0
    %3319 = vmatprep.subr.mxu0 0.0
    %3320 = vmatpush1.msra.mxu0 %v3289
    %3321 = vmatprep.subr.mxu0 0.0
    %3322 = vmatpush1.msra.mxu0 %v3161
    %3323 = vmatprep.subr.mxu0 0.0
    %3324 = vmatpush2.msra.mxu0 0.0
    %3325 = vmatprep.subr.mxu0 0.0
    %3326 = vmatpush2.msra.mxu0 0.0
    %3327 = vmatprep.subr.mxu0 0.0
    %3328 = vmatpush2.msra.mxu0 0.0
    %3329 = vmatprep.subr.mxu0 0.0
    %3330 = vmatpush2.msra.mxu0 0.0
    %3331 = vmatprep.subr.mxu0 0.0
    %3332 = vmatpush2.msra.mxu0 0.0
    %3333 = vmatprep.subr.mxu0 0.0
    %3334 = vmatpush2.msra.mxu0 0.0
    %3335 = vmatprep.subr.mxu0 0.0
    %3336 = vmatpush2.msra.mxu0 0.0
    %3337 = vmatprep.subr.mxu0 0.0
    %3338 = vmatpush2.msra.mxu0 0.0
    %3339 = vmatprep.subr.mxu0 0.0
    %3340 = vmatpush2.msra.mxu0 0.0
    %3341 = vmatprep.subr.mxu0 0.0
    %3342 = vmatpush2.msra.mxu0 0.0
    %3343 = vmatprep.subr.mxu0 0.0
    %3344 = vmatpush2.msra.mxu0 0.0
    %3345 = vmatprep.subr.mxu0 0.0
    %3346 = vmatpush2.msra.mxu0 0.0
    %3347 = vmatprep.subr.mxu0 0.0
    %3348 = vmatpush2.msra.mxu0 0.0
    %3349 = vmatprep.subr.mxu0 0.0
    %3350 = vmatpush2.msra.mxu0 0.0
    %3351 = vmatprep.subr.mxu0 0.0
    %3352 = vmatpush2.msra.mxu0 0.0
    %3353 = vmatprep.subr.mxu0 0.0
    %3354 = vmatpush2.msra.mxu0 0.0
    %3355 = vmatprep.mubr.f32.mxu0 0.0
    %3356 = vmatmul.mubr.f32.gmra.mxu0 %v3283
    %v3357 = vpop.f32.mrf.mxu0
    %v3358 = vadd.f32 0.0, %v3357
    %v3359 = vpop.f32.mrf.mxu0
    %3360 = vmatprep.mubr.f32.mxu0 0.0
    %3361 = vmatmul.mubr.f32.gmra.mxu0 %v3286
    %v3362 = vpop.f32.mrf.mxu0
    %v3363 = vadd.f32 0.0, %v3362
    %v3364 = vpop.f32.mrf.mxu0
    %3365 = vdwg.mxu0
    %v3366 = vlaneseq
    %v3367 = vshrl.u32 %v3366, 7
    %v3368 = vsub.s32 2, %v3367
    %v3369 = vrot.slane %v2472, %v3368
    %v3371 = vsel %vm143, %v2462, 0
    %3373 = vmatprep.subr.mxu0 0.0
    %3374 = vmatpush1.xpose.msra.mxu0 0.0
    %3375 = vmatprep.subr.mxu0 0.0
    %3376 = vmatpush1.xpose.msra.mxu0 0.0
    %3377 = vmatprep.subr.mxu0 0.0
    %3378 = vmatpush1.xpose.msra.mxu0 0.0
    %3379 = vmatprep.subr.mxu0 0.0
    %3380 = vmatpush1.xpose.msra.mxu0 0.0
    %3381 = vmatprep.subr.mxu0 0.0
    %3382 = vmatpush1.xpose.msra.mxu0 0.0
    %3383 = vmatprep.subr.mxu0 0.0
    %3384 = vmatpush1.xpose.msra.mxu0 0.0
    %3385 = vmatprep.subr.mxu0 0.0
    %3386 = vmatpush1.xpose.msra.mxu0 0.0
    %3387 = vmatprep.subr.mxu0 0.0
    %3388 = vmatpush1.xpose.msra.mxu0 0.0
    %3389 = vmatprep.subr.mxu0 0.0
    %3390 = vmatpush1.xpose.msra.mxu0 0.0
    %3391 = vmatprep.subr.mxu0 0.0
    %3392 = vmatpush1.xpose.msra.mxu0 0.0
    %3393 = vmatprep.subr.mxu0 0.0
    %3394 = vmatpush1.xpose.msra.mxu0 0.0
    %3395 = vmatprep.subr.mxu0 0.0
    %3396 = vmatpush1.xpose.msra.mxu0 0.0
    %3397 = vmatprep.subr.mxu0 0.0
    %3398 = vmatpush1.xpose.msra.mxu0 0.0
    %3399 = vmatprep.subr.mxu0 0.0
    %3400 = vmatpush1.xpose.msra.mxu0 0.0
    %3401 = vmatprep.subr.mxu0 0.0
    %3402 = vmatpush1.xpose.msra.mxu0 0.0
    %3403 = vmatprep.subr.mxu0 0.0
    %3404 = vmatpush1.xpose.msra.mxu0 %v3371
    %3405 = vmatprep.subr.mxu0 0.0
    %3406 = vmatpush2.xpose.msra.mxu0 0.0
    %3407 = vmatprep.subr.mxu0 0.0
    %3408 = vmatpush2.xpose.msra.mxu0 0.0
    %3409 = vmatprep.subr.mxu0 0.0
    %3410 = vmatpush2.xpose.msra.mxu0 0.0
    %3411 = vmatprep.subr.mxu0 0.0
    %3412 = vmatpush2.xpose.msra.mxu0 0.0
    %3413 = vmatprep.subr.mxu0 0.0
    %3414 = vmatpush2.xpose.msra.mxu0 0.0
    %3415 = vmatprep.subr.mxu0 0.0
    %3416 = vmatpush2.xpose.msra.mxu0 0.0
    %3417 = vmatprep.subr.mxu0 0.0
    %3418 = vmatpush2.xpose.msra.mxu0 0.0
    %3419 = vmatprep.subr.mxu0 0.0
    %3420 = vmatpush2.xpose.msra.mxu0 0.0
    %3421 = vmatprep.subr.mxu0 0.0
    %3422 = vmatpush2.xpose.msra.mxu0 0.0
    %3423 = vmatprep.subr.mxu0 0.0
    %3424 = vmatpush2.xpose.msra.mxu0 0.0
    %3425 = vmatprep.subr.mxu0 0.0
    %3426 = vmatpush2.xpose.msra.mxu0 0.0
    %3427 = vmatprep.subr.mxu0 0.0
    %3428 = vmatpush2.xpose.msra.mxu0 0.0
    %3429 = vmatprep.subr.mxu0 0.0
    %3430 = vmatpush2.xpose.msra.mxu0 0.0
    %3431 = vmatprep.subr.mxu0 0.0
    %3432 = vmatpush2.xpose.msra.mxu0 0.0
    %3433 = vmatprep.subr.mxu0 0.0
    %3434 = vmatpush2.xpose.msra.mxu0 0.0
    %3435 = vmatprep.subr.mxu0 0.0
    %3436 = vmatpush2.xpose.msra.mxu0 0.0
    %3437 = vmatprep.mubr.f32.mxu0 0.0
    %3438 = vmatmul.mubr.f32.gmra.mxu0 %v2479
    %v3439 = vpop.f32.mrf.mxu0
    %v3440 = vadd.f32 %v3369, %v3439
    %v3441 = vpop.f32.mrf.mxu0
    %3442 = vmatprep.mubr.f32.mxu0 0.0
    %3443 = vmatmul.mubr.f32.gmra.mxu0 %v2482
    %v3444 = vpop.f32.mrf.mxu0
    %v3445 = vadd.f32 %v3369, %v3444
    %v3446 = vpop.f32.mrf.mxu0
    %3447 = vdwg.mxu0
    %v3448 = vlaneseq
    %v3449 = vshrl.u32 %v3448, 7
    %v3450 = vsub.s32 6, %v3449
    %v3451 = vrot.slane %v2472, %v3450
    %v3453 = vsel %vm143, %v2466, 0
    %3455 = vmatprep.subr.mxu0 0.0
    %3456 = vmatpush1.xpose.msra.mxu0 0.0
    %3457 = vmatprep.subr.mxu0 0.0
    %3458 = vmatpush1.xpose.msra.mxu0 0.0
    %3459 = vmatprep.subr.mxu0 0.0
    %3460 = vmatpush1.xpose.msra.mxu0 0.0
    %3461 = vmatprep.subr.mxu0 0.0
    %3462 = vmatpush1.xpose.msra.mxu0 0.0
    %3463 = vmatprep.subr.mxu0 0.0
    %3464 = vmatpush1.xpose.msra.mxu0 0.0
    %3465 = vmatprep.subr.mxu0 0.0
    %3466 = vmatpush1.xpose.msra.mxu0 0.0
    %3467 = vmatprep.subr.mxu0 0.0
    %3468 = vmatpush1.xpose.msra.mxu0 0.0
    %3469 = vmatprep.subr.mxu0 0.0
    %3470 = vmatpush1.xpose.msra.mxu0 0.0
    %3471 = vmatprep.subr.mxu0 0.0
    %3472 = vmatpush1.xpose.msra.mxu0 0.0
    %3473 = vmatprep.subr.mxu0 0.0
    %3474 = vmatpush1.xpose.msra.mxu0 0.0
    %3475 = vmatprep.subr.mxu0 0.0
    %3476 = vmatpush1.xpose.msra.mxu0 0.0
    %3477 = vmatprep.subr.mxu0 0.0
    %3478 = vmatpush1.xpose.msra.mxu0 0.0
    %3479 = vmatprep.subr.mxu0 0.0
    %3480 = vmatpush1.xpose.msra.mxu0 0.0
    %3481 = vmatprep.subr.mxu0 0.0
    %3482 = vmatpush1.xpose.msra.mxu0 0.0
    %3483 = vmatprep.subr.mxu0 0.0
    %3484 = vmatpush1.xpose.msra.mxu0 0.0
    %3485 = vmatprep.subr.mxu0 0.0
    %3486 = vmatpush1.xpose.msra.mxu0 %v3453
    %3487 = vmatprep.subr.mxu0 0.0
    %3488 = vmatpush2.xpose.msra.mxu0 0.0
    %3489 = vmatprep.subr.mxu0 0.0
    %3490 = vmatpush2.xpose.msra.mxu0 0.0
    %3491 = vmatprep.subr.mxu0 0.0
    %3492 = vmatpush2.xpose.msra.mxu0 0.0
    %3493 = vmatprep.subr.mxu0 0.0
    %3494 = vmatpush2.xpose.msra.mxu0 0.0
    %3495 = vmatprep.subr.mxu0 0.0
    %3496 = vmatpush2.xpose.msra.mxu0 0.0
    %3497 = vmatprep.subr.mxu0 0.0
    %3498 = vmatpush2.xpose.msra.mxu0 0.0
    %3499 = vmatprep.subr.mxu0 0.0
    %3500 = vmatpush2.xpose.msra.mxu0 0.0
    %3501 = vmatprep.subr.mxu0 0.0
    %3502 = vmatpush2.xpose.msra.mxu0 0.0
    %3503 = vmatprep.subr.mxu0 0.0
    %3504 = vmatpush2.xpose.msra.mxu0 0.0
    %3505 = vmatprep.subr.mxu0 0.0
    %3506 = vmatpush2.xpose.msra.mxu0 0.0
    %3507 = vmatprep.subr.mxu0 0.0
    %3508 = vmatpush2.xpose.msra.mxu0 0.0
    %3509 = vmatprep.subr.mxu0 0.0
    %3510 = vmatpush2.xpose.msra.mxu0 0.0
    %3511 = vmatprep.subr.mxu0 0.0
    %3512 = vmatpush2.xpose.msra.mxu0 0.0
    %3513 = vmatprep.subr.mxu0 0.0
    %3514 = vmatpush2.xpose.msra.mxu0 0.0
    %3515 = vmatprep.subr.mxu0 0.0
    %3516 = vmatpush2.xpose.msra.mxu0 0.0
    %3517 = vmatprep.subr.mxu0 0.0
    %3518 = vmatpush2.xpose.msra.mxu0 0.0
    %3519 = vmatprep.mubr.f32.mxu0 0.0
    %3520 = vmatmul.mubr.f32.gmra.mxu0 %v2479
    %v3521 = vpop.f32.mrf.mxu0
    %v3522 = vadd.f32 %v3451, %v3521
    %v3523 = vpop.f32.mrf.mxu0
    %3524 = vmatprep.mubr.f32.mxu0 0.0
    %3525 = vmatmul.mubr.f32.gmra.mxu0 %v2482
    %v3526 = vpop.f32.mrf.mxu0
    %v3527 = vadd.f32 %v3451, %v3526
    %v3528 = vpop.f32.mrf.mxu0
    %3529 = vdwg.mxu0
    %v3530 = vlaneseq
    %v3531 = vshrl.u32 %v3530, 7
    %v3532 = vsub.s32 2, %v3531
    %v3533 = vrot.slane %v2473, %v3532
    %v3535 = vsel %vm143, %v2470, 0
    %3537 = vmatprep.subr.mxu0 0.0
    %3538 = vmatpush1.xpose.msra.mxu0 0.0
    %3539 = vmatprep.subr.mxu0 0.0
    %3540 = vmatpush1.xpose.msra.mxu0 0.0
    %3541 = vmatprep.subr.mxu0 0.0
    %3542 = vmatpush1.xpose.msra.mxu0 0.0
    %3543 = vmatprep.subr.mxu0 0.0
    %3544 = vmatpush1.xpose.msra.mxu0 0.0
    %3545 = vmatprep.subr.mxu0 0.0
    %3546 = vmatpush1.xpose.msra.mxu0 0.0
    %3547 = vmatprep.subr.mxu0 0.0
    %3548 = vmatpush1.xpose.msra.mxu0 0.0
    %3549 = vmatprep.subr.mxu0 0.0
    %3550 = vmatpush1.xpose.msra.mxu0 0.0
    %3551 = vmatprep.subr.mxu0 0.0
    %3552 = vmatpush1.xpose.msra.mxu0 0.0
    %3553 = vmatprep.subr.mxu0 0.0
    %3554 = vmatpush1.xpose.msra.mxu0 0.0
    %3555 = vmatprep.subr.mxu0 0.0
    %3556 = vmatpush1.xpose.msra.mxu0 0.0
    %3557 = vmatprep.subr.mxu0 0.0
    %3558 = vmatpush1.xpose.msra.mxu0 0.0
    %3559 = vmatprep.subr.mxu0 0.0
    %3560 = vmatpush1.xpose.msra.mxu0 0.0
    %3561 = vmatprep.subr.mxu0 0.0
    %3562 = vmatpush1.xpose.msra.mxu0 0.0
    %3563 = vmatprep.subr.mxu0 0.0
    %3564 = vmatpush1.xpose.msra.mxu0 0.0
    %3565 = vmatprep.subr.mxu0 0.0
    %3566 = vmatpush1.xpose.msra.mxu0 0.0
    %3567 = vmatprep.subr.mxu0 0.0
    %3568 = vmatpush1.xpose.msra.mxu0 %v3535
    %3569 = vmatprep.subr.mxu0 0.0
    %3570 = vmatpush2.xpose.msra.mxu0 0.0
    %3571 = vmatprep.subr.mxu0 0.0
    %3572 = vmatpush2.xpose.msra.mxu0 0.0
    %3573 = vmatprep.subr.mxu0 0.0
    %3574 = vmatpush2.xpose.msra.mxu0 0.0
    %3575 = vmatprep.subr.mxu0 0.0
    %3576 = vmatpush2.xpose.msra.mxu0 0.0
    %3577 = vmatprep.subr.mxu0 0.0
    %3578 = vmatpush2.xpose.msra.mxu0 0.0
    %3579 = vmatprep.subr.mxu0 0.0
    %3580 = vmatpush2.xpose.msra.mxu0 0.0
    %3581 = vmatprep.subr.mxu0 0.0
    %3582 = vmatpush2.xpose.msra.mxu0 0.0
    %3583 = vmatprep.subr.mxu0 0.0
    %3584 = vmatpush2.xpose.msra.mxu0 0.0
    %3585 = vmatprep.subr.mxu0 0.0
    %3586 = vmatpush2.xpose.msra.mxu0 0.0
    %3587 = vmatprep.subr.mxu0 0.0
    %3588 = vmatpush2.xpose.msra.mxu0 0.0
    %3589 = vmatprep.subr.mxu0 0.0
    %3590 = vmatpush2.xpose.msra.mxu0 0.0
    %3591 = vmatprep.subr.mxu0 0.0
    %3592 = vmatpush2.xpose.msra.mxu0 0.0
    %3593 = vmatprep.subr.mxu0 0.0
    %3594 = vmatpush2.xpose.msra.mxu0 0.0
    %3595 = vmatprep.subr.mxu0 0.0
    %3596 = vmatpush2.xpose.msra.mxu0 0.0
    %3597 = vmatprep.subr.mxu0 0.0
    %3598 = vmatpush2.xpose.msra.mxu0 0.0
    %3599 = vmatprep.subr.mxu0 0.0
    %3600 = vmatpush2.xpose.msra.mxu0 0.0
    %3601 = vmatprep.mubr.f32.mxu0 0.0
    %3602 = vmatmul.mubr.f32.gmra.mxu0 %v2479
    %v3603 = vpop.f32.mrf.mxu0
    %v3604 = vadd.f32 %v3533, %v3603
    %v3605 = vpop.f32.mrf.mxu0
    %3606 = vmatprep.mubr.f32.mxu0 0.0
    %3607 = vmatmul.mubr.f32.gmra.mxu0 %v2482
    %v3608 = vpop.f32.mrf.mxu0
    %v3609 = vadd.f32 %v3533, %v3608
    %v3610 = vpop.f32.mrf.mxu0
    %3611 = vdwg.mxu0
    %v3613 = vsel %vm520, %v3440, 0
    %v3616 = vsel %vm520, %v3445, 0
    %v3619 = vsel %vm520, %v3522, 0
    %v3622 = vsel %vm520, %v3527, 0
    %3624 = vmatprep.subr.mxu0 0.0
    %3625 = vmatpush1.xpose.msra.mxu0 0.0
    %3626 = vmatprep.subr.mxu0 0.0
    %3627 = vmatpush1.xpose.msra.mxu0 0.0
    %3628 = vmatprep.subr.mxu0 0.0
    %3629 = vmatpush1.xpose.msra.mxu0 0.0
    %3630 = vmatprep.subr.mxu0 0.0
    %3631 = vmatpush1.xpose.msra.mxu0 0.0
    %3632 = vmatprep.subr.mxu0 0.0
    %3633 = vmatpush1.xpose.msra.mxu0 0.0
    %3634 = vmatprep.subr.mxu0 0.0
    %3635 = vmatpush1.xpose.msra.mxu0 0.0
    %3636 = vmatprep.subr.mxu0 0.0
    %3637 = vmatpush1.xpose.msra.mxu0 0.0
    %3638 = vmatprep.subr.mxu0 0.0
    %3639 = vmatpush1.xpose.msra.mxu0 0.0
    %3640 = vmatprep.subr.mxu0 0.0
    %3641 = vmatpush1.xpose.msra.mxu0 0.0
    %3642 = vmatprep.subr.mxu0 0.0
    %3643 = vmatpush1.xpose.msra.mxu0 0.0
    %3644 = vmatprep.subr.mxu0 0.0
    %3645 = vmatpush1.xpose.msra.mxu0 0.0
    %3646 = vmatprep.subr.mxu0 0.0
    %3647 = vmatpush1.xpose.msra.mxu0 0.0
    %3648 = vmatprep.subr.mxu0 0.0
    %3649 = vmatpush1.xpose.msra.mxu0 0.0
    %3650 = vmatprep.subr.mxu0 0.0
    %3651 = vmatpush1.xpose.msra.mxu0 0.0
    %3652 = vmatprep.subr.mxu0 0.0
    %3653 = vmatpush1.xpose.msra.mxu0 %v3622
    %3654 = vmatprep.subr.mxu0 0.0
    %3655 = vmatpush1.xpose.msra.mxu0 %v3619
    %3656 = vmatprep.subr.mxu0 0.0
    %3657 = vmatpush2.xpose.msra.mxu0 0.0
    %3658 = vmatprep.subr.mxu0 0.0
    %3659 = vmatpush2.xpose.msra.mxu0 0.0
    %3660 = vmatprep.subr.mxu0 0.0
    %3661 = vmatpush2.xpose.msra.mxu0 0.0
    %3662 = vmatprep.subr.mxu0 0.0
    %3663 = vmatpush2.xpose.msra.mxu0 0.0
    %3664 = vmatprep.subr.mxu0 0.0
    %3665 = vmatpush2.xpose.msra.mxu0 0.0
    %3666 = vmatprep.subr.mxu0 0.0
    %3667 = vmatpush2.xpose.msra.mxu0 0.0
    %3668 = vmatprep.subr.mxu0 0.0
    %3669 = vmatpush2.xpose.msra.mxu0 0.0
    %3670 = vmatprep.subr.mxu0 0.0
    %3671 = vmatpush2.xpose.msra.mxu0 0.0
    %3672 = vmatprep.subr.mxu0 0.0
    %3673 = vmatpush2.xpose.msra.mxu0 0.0
    %3674 = vmatprep.subr.mxu0 0.0
    %3675 = vmatpush2.xpose.msra.mxu0 0.0
    %3676 = vmatprep.subr.mxu0 0.0
    %3677 = vmatpush2.xpose.msra.mxu0 0.0
    %3678 = vmatprep.subr.mxu0 0.0
    %3679 = vmatpush2.xpose.msra.mxu0 0.0
    %3680 = vmatprep.subr.mxu0 0.0
    %3681 = vmatpush2.xpose.msra.mxu0 0.0
    %3682 = vmatprep.subr.mxu0 0.0
    %3683 = vmatpush2.xpose.msra.mxu0 0.0
    %3684 = vmatprep.subr.mxu0 0.0
    %3685 = vmatpush2.xpose.msra.mxu0 0.0
    %3686 = vmatprep.subr.mxu0 0.0
    %3687 = vmatpush2.xpose.msra.mxu0 0.0
    %3688 = vmatprep.mubr.f32.mxu0 0.0
    %3689 = vmatmul.mubr.f32.gmra.mxu0 %v3613
    %v3690 = vpop.f32.mrf.mxu0
    %v3691 = vadd.f32 0.0, %v3690
    %v3692 = vpop.f32.mrf.mxu0
    %3693 = vmatprep.mubr.f32.mxu0 0.0
    %3694 = vmatmul.mubr.f32.gmra.mxu0 %v3616
    %v3695 = vpop.f32.mrf.mxu0
    %v3696 = vadd.f32 0.0, %v3695
    %v3697 = vpop.f32.mrf.mxu0
    %3698 = vdwg.mxu0
    %v3699 = vmul.f32 %v3691, 0.35355338
    %v3700 = vmul.f32 %v3696, 0.35355338
    %v3701 = vadd.f32 %v3699, %v213
    %v3702 = vadd.f32 %v3700, %v214
    %v3703 = vsel %vm612, %v3701, -inf
    %3704 = vmax.xlane.f32.xlu0 %v3703
    %v3705 = vpop.xlane.xlu0 %3704
    %v3706 = vsel %vm616, %v3702, -inf
    %3707 = vmax.xlane.f32.xlu0 %v3706
    %v3708 = vpop.xlane.xlu0 %3707
    %v3709 = vsub.f32 %v3701, %v3705
    %v3710 = vsub.f32 %v3702, %v3708
    %v3711 = vmul.f32 %v3709, 1.442695
    %v3712 = vpow.pop %v3711
    %v3713 = vmul.f32 %v3710, 1.442695
    %v3714 = vpow.pop %v3713
    %v3715 = vsel %vm612, %v3712, 0.0
    %3716 = vadd.xlane.f32.xlu0 %v3715
    %v3717 = vpop.xlane.xlu0 %3716
    %v3718 = vsel %vm616, %v3714, 0.0
    %3719 = vadd.xlane.f32.xlu0 %v3718
    %v3720 = vpop.xlane.xlu0 %3719
    %v3721 = vrcp.pop %v3717
    %v3722 = vrcp.pop %v3720
    %v3723 = vmul.f32 %v3712, %v3721
    %v3724 = vmul.f32 %v3714, %v3722
    %v3726 = vsel %vm612, %v3723, 0
    %v3729 = vsel %vm612, %v3724, 0
    %v3732 = vsel %vm642, %v3609, 0
    %3734 = vmatprep.subr.mxu0 0.0
    %3735 = vmatpush1.msra.mxu0 0.0
    %3736 = vmatprep.subr.mxu0 0.0
    %3737 = vmatpush1.msra.mxu0 0.0
    %3738 = vmatprep.subr.mxu0 0.0
    %3739 = vmatpush1.msra.mxu0 0.0
    %3740 = vmatprep.subr.mxu0 0.0
    %3741 = vmatpush1.msra.mxu0 0.0
    %3742 = vmatprep.subr.mxu0 0.0
    %3743 = vmatpush1.msra.mxu0 0.0
    %3744 = vmatprep.subr.mxu0 0.0
    %3745 = vmatpush1.msra.mxu0 0.0
    %3746 = vmatprep.subr.mxu0 0.0
    %3747 = vmatpush1.msra.mxu0 0.0
    %3748 = vmatprep.subr.mxu0 0.0
    %3749 = vmatpush1.msra.mxu0 0.0
    %3750 = vmatprep.subr.mxu0 0.0
    %3751 = vmatpush1.msra.mxu0 0.0
    %3752 = vmatprep.subr.mxu0 0.0
    %3753 = vmatpush1.msra.mxu0 0.0
    %3754 = vmatprep.subr.mxu0 0.0
    %3755 = vmatpush1.msra.mxu0 0.0
    %3756 = vmatprep.subr.mxu0 0.0
    %3757 = vmatpush1.msra.mxu0 0.0
    %3758 = vmatprep.subr.mxu0 0.0
    %3759 = vmatpush1.msra.mxu0 0.0
    %3760 = vmatprep.subr.mxu0 0.0
    %3761 = vmatpush1.msra.mxu0 0.0
    %3762 = vmatprep.subr.mxu0 0.0
    %3763 = vmatpush1.msra.mxu0 %v3732
    %3764 = vmatprep.subr.mxu0 0.0
    %3765 = vmatpush1.msra.mxu0 %v3604
    %3766 = vmatprep.subr.mxu0 0.0
    %3767 = vmatpush2.msra.mxu0 0.0
    %3768 = vmatprep.subr.mxu0 0.0
    %3769 = vmatpush2.msra.mxu0 0.0
    %3770 = vmatprep.subr.mxu0 0.0
    %3771 = vmatpush2.msra.mxu0 0.0
    %3772 = vmatprep.subr.mxu0 0.0
    %3773 = vmatpush2.msra.mxu0 0.0
    %3774 = vmatprep.subr.mxu0 0.0
    %3775 = vmatpush2.msra.mxu0 0.0
    %3776 = vmatprep.subr.mxu0 0.0
    %3777 = vmatpush2.msra.mxu0 0.0
    %3778 = vmatprep.subr.mxu0 0.0
    %3779 = vmatpush2.msra.mxu0 0.0
    %3780 = vmatprep.subr.mxu0 0.0
    %3781 = vmatpush2.msra.mxu0 0.0
    %3782 = vmatprep.subr.mxu0 0.0
    %3783 = vmatpush2.msra.mxu0 0.0
    %3784 = vmatprep.subr.mxu0 0.0
    %3785 = vmatpush2.msra.mxu0 0.0
    %3786 = vmatprep.subr.mxu0 0.0
    %3787 = vmatpush2.msra.mxu0 0.0
    %3788 = vmatprep.subr.mxu0 0.0
    %3789 = vmatpush2.msra.mxu0 0.0
    %3790 = vmatprep.subr.mxu0 0.0
    %3791 = vmatpush2.msra.mxu0 0.0
    %3792 = vmatprep.subr.mxu0 0.0
    %3793 = vmatpush2.msra.mxu0 0.0
    %3794 = vmatprep.subr.mxu0 0.0
    %3795 = vmatpush2.msra.mxu0 0.0
    %3796 = vmatprep.subr.mxu0 0.0
    %3797 = vmatpush2.msra.mxu0 0.0
    %3798 = vmatprep.mubr.f32.mxu0 0.0
    %3799 = vmatmul.mubr.f32.gmra.mxu0 %v3726
    %v3800 = vpop.f32.mrf.mxu0
    %v3801 = vadd.f32 0.0, %v3800
    %v3802 = vpop.f32.mrf.mxu0
    %3803 = vmatprep.mubr.f32.mxu0 0.0
    %3804 = vmatmul.mubr.f32.gmra.mxu0 %v3729
    %v3805 = vpop.f32.mrf.mxu0
    %v3806 = vadd.f32 0.0, %v3805
    %v3807 = vpop.f32.mrf.mxu0
    %3808 = vdwg.mxu0
    %v3809 = vlaneseq
    %v3810 = vshrl.u32 %v3809, 7
    %v3811 = vsub.s32 3, %v3810
    %v3812 = vrot.slane %v2472, %v3811
    %v3814 = vsel %vm143, %v2463, 0
    %3816 = vmatprep.subr.mxu0 0.0
    %3817 = vmatpush1.xpose.msra.mxu0 0.0
    %3818 = vmatprep.subr.mxu0 0.0
    %3819 = vmatpush1.xpose.msra.mxu0 0.0
    %3820 = vmatprep.subr.mxu0 0.0
    %3821 = vmatpush1.xpose.msra.mxu0 0.0
    %3822 = vmatprep.subr.mxu0 0.0
    %3823 = vmatpush1.xpose.msra.mxu0 0.0
    %3824 = vmatprep.subr.mxu0 0.0
    %3825 = vmatpush1.xpose.msra.mxu0 0.0
    %3826 = vmatprep.subr.mxu0 0.0
    %3827 = vmatpush1.xpose.msra.mxu0 0.0
    %3828 = vmatprep.subr.mxu0 0.0
    %3829 = vmatpush1.xpose.msra.mxu0 0.0
    %3830 = vmatprep.subr.mxu0 0.0
    %3831 = vmatpush1.xpose.msra.mxu0 0.0
    %3832 = vmatprep.subr.mxu0 0.0
    %3833 = vmatpush1.xpose.msra.mxu0 0.0
    %3834 = vmatprep.subr.mxu0 0.0
    %3835 = vmatpush1.xpose.msra.mxu0 0.0
    %3836 = vmatprep.subr.mxu0 0.0
    %3837 = vmatpush1.xpose.msra.mxu0 0.0
    %3838 = vmatprep.subr.mxu0 0.0
    %3839 = vmatpush1.xpose.msra.mxu0 0.0
    %3840 = vmatprep.subr.mxu0 0.0
    %3841 = vmatpush1.xpose.msra.mxu0 0.0
    %3842 = vmatprep.subr.mxu0 0.0
    %3843 = vmatpush1.xpose.msra.mxu0 0.0
    %3844 = vmatprep.subr.mxu0 0.0
    %3845 = vmatpush1.xpose.msra.mxu0 0.0
    %3846 = vmatprep.subr.mxu0 0.0
    %3847 = vmatpush1.xpose.msra.mxu0 %v3814
    %3848 = vmatprep.subr.mxu0 0.0
    %3849 = vmatpush2.xpose.msra.mxu0 0.0
    %3850 = vmatprep.subr.mxu0 0.0
    %3851 = vmatpush2.xpose.msra.mxu0 0.0
    %3852 = vmatprep.subr.mxu0 0.0
    %3853 = vmatpush2.xpose.msra.mxu0 0.0
    %3854 = vmatprep.subr.mxu0 0.0
    %3855 = vmatpush2.xpose.msra.mxu0 0.0
    %3856 = vmatprep.subr.mxu0 0.0
    %3857 = vmatpush2.xpose.msra.mxu0 0.0
    %3858 = vmatprep.subr.mxu0 0.0
    %3859 = vmatpush2.xpose.msra.mxu0 0.0
    %3860 = vmatprep.subr.mxu0 0.0
    %3861 = vmatpush2.xpose.msra.mxu0 0.0
    %3862 = vmatprep.subr.mxu0 0.0
    %3863 = vmatpush2.xpose.msra.mxu0 0.0
    %3864 = vmatprep.subr.mxu0 0.0
    %3865 = vmatpush2.xpose.msra.mxu0 0.0
    %3866 = vmatprep.subr.mxu0 0.0
    %3867 = vmatpush2.xpose.msra.mxu0 0.0
    %3868 = vmatprep.subr.mxu0 0.0
    %3869 = vmatpush2.xpose.msra.mxu0 0.0
    %3870 = vmatprep.subr.mxu0 0.0
    %3871 = vmatpush2.xpose.msra.mxu0 0.0
    %3872 = vmatprep.subr.mxu0 0.0
    %3873 = vmatpush2.xpose.msra.mxu0 0.0
    %3874 = vmatprep.subr.mxu0 0.0
    %3875 = vmatpush2.xpose.msra.mxu0 0.0
    %3876 = vmatprep.subr.mxu0 0.0
    %3877 = vmatpush2.xpose.msra.mxu0 0.0
    %3878 = vmatprep.subr.mxu0 0.0
    %3879 = vmatpush2.xpose.msra.mxu0 0.0
    %3880 = vmatprep.mubr.f32.mxu0 0.0
    %3881 = vmatmul.mubr.f32.gmra.mxu0 %v2479
    %v3882 = vpop.f32.mrf.mxu0
    %v3883 = vadd.f32 %v3812, %v3882
    %v3884 = vpop.f32.mrf.mxu0
    %3885 = vmatprep.mubr.f32.mxu0 0.0
    %3886 = vmatmul.mubr.f32.gmra.mxu0 %v2482
    %v3887 = vpop.f32.mrf.mxu0
    %v3888 = vadd.f32 %v3812, %v3887
    %v3889 = vpop.f32.mrf.mxu0
    %3890 = vdwg.mxu0
    %v3891 = vlaneseq
    %v3892 = vshrl.u32 %v3891, 7
    %v3893 = vsub.s32 7, %v3892
    %v3894 = vrot.slane %v2472, %v3893
    %v3896 = vsel %vm143, %v2467, 0
    %3898 = vmatprep.subr.mxu0 0.0
    %3899 = vmatpush1.xpose.msra.mxu0 0.0
    %3900 = vmatprep.subr.mxu0 0.0
    %3901 = vmatpush1.xpose.msra.mxu0 0.0
    %3902 = vmatprep.subr.mxu0 0.0
    %3903 = vmatpush1.xpose.msra.mxu0 0.0
    %3904 = vmatprep.subr.mxu0 0.0
    %3905 = vmatpush1.xpose.msra.mxu0 0.0
    %3906 = vmatprep.subr.mxu0 0.0
    %3907 = vmatpush1.xpose.msra.mxu0 0.0
    %3908 = vmatprep.subr.mxu0 0.0
    %3909 = vmatpush1.xpose.msra.mxu0 0.0
    %3910 = vmatprep.subr.mxu0 0.0
    %3911 = vmatpush1.xpose.msra.mxu0 0.0
    %3912 = vmatprep.subr.mxu0 0.0
    %3913 = vmatpush1.xpose.msra.mxu0 0.0
    %3914 = vmatprep.subr.mxu0 0.0
    %3915 = vmatpush1.xpose.msra.mxu0 0.0
    %3916 = vmatprep.subr.mxu0 0.0
    %3917 = vmatpush1.xpose.msra.mxu0 0.0
    %3918 = vmatprep.subr.mxu0 0.0
    %3919 = vmatpush1.xpose.msra.mxu0 0.0
    %3920 = vmatprep.subr.mxu0 0.0
    %3921 = vmatpush1.xpose.msra.mxu0 0.0
    %3922 = vmatprep.subr.mxu0 0.0
    %3923 = vmatpush1.xpose.msra.mxu0 0.0
    %3924 = vmatprep.subr.mxu0 0.0
    %3925 = vmatpush1.xpose.msra.mxu0 0.0
    %3926 = vmatprep.subr.mxu0 0.0
    %3927 = vmatpush1.xpose.msra.mxu0 0.0
    %3928 = vmatprep.subr.mxu0 0.0
    %3929 = vmatpush1.xpose.msra.mxu0 %v3896
    %3930 = vmatprep.subr.mxu0 0.0
    %3931 = vmatpush2.xpose.msra.mxu0 0.0
    %3932 = vmatprep.subr.mxu0 0.0
    %3933 = vmatpush2.xpose.msra.mxu0 0.0
    %3934 = vmatprep.subr.mxu0 0.0
    %3935 = vmatpush2.xpose.msra.mxu0 0.0
    %3936 = vmatprep.subr.mxu0 0.0
    %3937 = vmatpush2.xpose.msra.mxu0 0.0
    %3938 = vmatprep.subr.mxu0 0.0
    %3939 = vmatpush2.xpose.msra.mxu0 0.0
    %3940 = vmatprep.subr.mxu0 0.0
    %3941 = vmatpush2.xpose.msra.mxu0 0.0
    %3942 = vmatprep.subr.mxu0 0.0
    %3943 = vmatpush2.xpose.msra.mxu0 0.0
    %3944 = vmatprep.subr.mxu0 0.0
    %3945 = vmatpush2.xpose.msra.mxu0 0.0
    %3946 = vmatprep.subr.mxu0 0.0
    %3947 = vmatpush2.xpose.msra.mxu0 0.0
    %3948 = vmatprep.subr.mxu0 0.0
    %3949 = vmatpush2.xpose.msra.mxu0 0.0
    %3950 = vmatprep.subr.mxu0 0.0
    %3951 = vmatpush2.xpose.msra.mxu0 0.0
    %3952 = vmatprep.subr.mxu0 0.0
    %3953 = vmatpush2.xpose.msra.mxu0 0.0
    %3954 = vmatprep.subr.mxu0 0.0
    %3955 = vmatpush2.xpose.msra.mxu0 0.0
    %3956 = vmatprep.subr.mxu0 0.0
    %3957 = vmatpush2.xpose.msra.mxu0 0.0
    %3958 = vmatprep.subr.mxu0 0.0
    %3959 = vmatpush2.xpose.msra.mxu0 0.0
    %3960 = vmatprep.subr.mxu0 0.0
    %3961 = vmatpush2.xpose.msra.mxu0 0.0
    %3962 = vmatprep.mubr.f32.mxu0 0.0
    %3963 = vmatmul.mubr.f32.gmra.mxu0 %v2479
    %v3964 = vpop.f32.mrf.mxu0
    %v3965 = vadd.f32 %v3894, %v3964
    %v3966 = vpop.f32.mrf.mxu0
    %3967 = vmatprep.mubr.f32.mxu0 0.0
    %3968 = vmatmul.mubr.f32.gmra.mxu0 %v2482
    %v3969 = vpop.f32.mrf.mxu0
    %v3970 = vadd.f32 %v3894, %v3969
    %v3971 = vpop.f32.mrf.mxu0
    %3972 = vdwg.mxu0
    %v3973 = vlaneseq
    %v3974 = vshrl.u32 %v3973, 7
    %v3975 = vsub.s32 3, %v3974
    %v3976 = vrot.slane %v2473, %v3975
    %v3978 = vsel %vm143, %v2471, 0
    %3980 = vmatprep.subr.mxu0 0.0
    %3981 = vmatpush1.xpose.msra.mxu0 0.0
    %3982 = vmatprep.subr.mxu0 0.0
    %3983 = vmatpush1.xpose.msra.mxu0 0.0
    %3984 = vmatprep.subr.mxu0 0.0
    %3985 = vmatpush1.xpose.msra.mxu0 0.0
    %3986 = vmatprep.subr.mxu0 0.0
    %3987 = vmatpush1.xpose.msra.mxu0 0.0
    %3988 = vmatprep.subr.mxu0 0.0
    %3989 = vmatpush1.xpose.msra.mxu0 0.0
    %3990 = vmatprep.subr.mxu0 0.0
    %3991 = vmatpush1.xpose.msra.mxu0 0.0
    %3992 = vmatprep.subr.mxu0 0.0
    %3993 = vmatpush1.xpose.msra.mxu0 0.0
    %3994 = vmatprep.subr.mxu0 0.0
    %3995 = vmatpush1.xpose.msra.mxu0 0.0
    %3996 = vmatprep.subr.mxu0 0.0
    %3997 = vmatpush1.xpose.msra.mxu0 0.0
    %3998 = vmatprep.subr.mxu0 0.0
    %3999 = vmatpush1.xpose.msra.mxu0 0.0
    %4000 = vmatprep.subr.mxu0 0.0
    %4001 = vmatpush1.xpose.msra.mxu0 0.0
    %4002 = vmatprep.subr.mxu0 0.0
    %4003 = vmatpush1.xpose.msra.mxu0 0.0
    %4004 = vmatprep.subr.mxu0 0.0
    %4005 = vmatpush1.xpose.msra.mxu0 0.0
    %4006 = vmatprep.subr.mxu0 0.0
    %4007 = vmatpush1.xpose.msra.mxu0 0.0
    %4008 = vmatprep.subr.mxu0 0.0
    %4009 = vmatpush1.xpose.msra.mxu0 0.0
    %4010 = vmatprep.subr.mxu0 0.0
    %4011 = vmatpush1.xpose.msra.mxu0 %v3978
    %4012 = vmatprep.subr.mxu0 0.0
    %4013 = vmatpush2.xpose.msra.mxu0 0.0
    %4014 = vmatprep.subr.mxu0 0.0
    %4015 = vmatpush2.xpose.msra.mxu0 0.0
    %4016 = vmatprep.subr.mxu0 0.0
    %4017 = vmatpush2.xpose.msra.mxu0 0.0
    %4018 = vmatprep.subr.mxu0 0.0
    %4019 = vmatpush2.xpose.msra.mxu0 0.0
    %4020 = vmatprep.subr.mxu0 0.0
    %4021 = vmatpush2.xpose.msra.mxu0 0.0
    %4022 = vmatprep.subr.mxu0 0.0
    %4023 = vmatpush2.xpose.msra.mxu0 0.0
    %4024 = vmatprep.subr.mxu0 0.0
    %4025 = vmatpush2.xpose.msra.mxu0 0.0
    %4026 = vmatprep.subr.mxu0 0.0
    %4027 = vmatpush2.xpose.msra.mxu0 0.0
    %4028 = vmatprep.subr.mxu0 0.0
    %4029 = vmatpush2.xpose.msra.mxu0 0.0
    %4030 = vmatprep.subr.mxu0 0.0
    %4031 = vmatpush2.xpose.msra.mxu0 0.0
    %4032 = vmatprep.subr.mxu0 0.0
    %4033 = vmatpush2.xpose.msra.mxu0 0.0
    %4034 = vmatprep.subr.mxu0 0.0
    %4035 = vmatpush2.xpose.msra.mxu0 0.0
    %4036 = vmatprep.subr.mxu0 0.0
    %4037 = vmatpush2.xpose.msra.mxu0 0.0
    %4038 = vmatprep.subr.mxu0 0.0
    %4039 = vmatpush2.xpose.msra.mxu0 0.0
    %4040 = vmatprep.subr.mxu0 0.0
    %4041 = vmatpush2.xpose.msra.mxu0 0.0
    %4042 = vmatprep.subr.mxu0 0.0
    %4043 = vmatpush2.xpose.msra.mxu0 0.0
    %4044 = vmatprep.mubr.f32.mxu0 0.0
    %4045 = vmatmul.mubr.f32.gmra.mxu0 %v2479
    %v4046 = vpop.f32.mrf.mxu0
    %v4047 = vadd.f32 %v3976, %v4046
    %v4048 = vpop.f32.mrf.mxu0
    %4049 = vmatprep.mubr.f32.mxu0 0.0
    %4050 = vmatmul.mubr.f32.gmra.mxu0 %v2482
    %v4051 = vpop.f32.mrf.mxu0
    %v4052 = vadd.f32 %v3976, %v4051
    %v4053 = vpop.f32.mrf.mxu0
    %4054 = vdwg.mxu0
    %v4056 = vsel %vm520, %v3883, 0
    %v4059 = vsel %vm520, %v3888, 0
    %v4062 = vsel %vm520, %v3965, 0
    %v4065 = vsel %vm520, %v3970, 0
    %4067 = vmatprep.subr.mxu0 0.0
    %4068 = vmatpush1.xpose.msra.mxu0 0.0
    %4069 = vmatprep.subr.mxu0 0.0
    %4070 = vmatpush1.xpose.msra.mxu0 0.0
    %4071 = vmatprep.subr.mxu0 0.0
    %4072 = vmatpush1.xpose.msra.mxu0 0.0
    %4073 = vmatprep.subr.mxu0 0.0
    %4074 = vmatpush1.xpose.msra.mxu0 0.0
    %4075 = vmatprep.subr.mxu0 0.0
    %4076 = vmatpush1.xpose.msra.mxu0 0.0
    %4077 = vmatprep.subr.mxu0 0.0
    %4078 = vmatpush1.xpose.msra.mxu0 0.0
    %4079 = vmatprep.subr.mxu0 0.0
    %4080 = vmatpush1.xpose.msra.mxu0 0.0
    %4081 = vmatprep.subr.mxu0 0.0
    %4082 = vmatpush1.xpose.msra.mxu0 0.0
    %4083 = vmatprep.subr.mxu0 0.0
    %4084 = vmatpush1.xpose.msra.mxu0 0.0
    %4085 = vmatprep.subr.mxu0 0.0
    %4086 = vmatpush1.xpose.msra.mxu0 0.0
    %4087 = vmatprep.subr.mxu0 0.0
    %4088 = vmatpush1.xpose.msra.mxu0 0.0
    %4089 = vmatprep.subr.mxu0 0.0
    %4090 = vmatpush1.xpose.msra.mxu0 0.0
    %4091 = vmatprep.subr.mxu0 0.0
    %4092 = vmatpush1.xpose.msra.mxu0 0.0
    %4093 = vmatprep.subr.mxu0 0.0
    %4094 = vmatpush1.xpose.msra.mxu0 0.0
    %4095 = vmatprep.subr.mxu0 0.0
    %4096 = vmatpush1.xpose.msra.mxu0 %v4065
    %4097 = vmatprep.subr.mxu0 0.0
    %4098 = vmatpush1.xpose.msra.mxu0 %v4062
    %4099 = vmatprep.subr.mxu0 0.0
    %4100 = vmatpush2.xpose.msra.mxu0 0.0
    %4101 = vmatprep.subr.mxu0 0.0
    %4102 = vmatpush2.xpose.msra.mxu0 0.0
    %4103 = vmatprep.subr.mxu0 0.0
    %4104 = vmatpush2.xpose.msra.mxu0 0.0
    %4105 = vmatprep.subr.mxu0 0.0
    %4106 = vmatpush2.xpose.msra.mxu0 0.0
    %4107 = vmatprep.subr.mxu0 0.0
    %4108 = vmatpush2.xpose.msra.mxu0 0.0
    %4109 = vmatprep.subr.mxu0 0.0
    %4110 = vmatpush2.xpose.msra.mxu0 0.0
    %4111 = vmatprep.subr.mxu0 0.0
    %4112 = vmatpush2.xpose.msra.mxu0 0.0
    %4113 = vmatprep.subr.mxu0 0.0
    %4114 = vmatpush2.xpose.msra.mxu0 0.0
    %4115 = vmatprep.subr.mxu0 0.0
    %4116 = vmatpush2.xpose.msra.mxu0 0.0
    %4117 = vmatprep.subr.mxu0 0.0
    %4118 = vmatpush2.xpose.msra.mxu0 0.0
    %4119 = vmatprep.subr.mxu0 0.0
    %4120 = vmatpush2.xpose.msra.mxu0 0.0
    %4121 = vmatprep.subr.mxu0 0.0
    %4122 = vmatpush2.xpose.msra.mxu0 0.0
    %4123 = vmatprep.subr.mxu0 0.0
    %4124 = vmatpush2.xpose.msra.mxu0 0.0
    %4125 = vmatprep.subr.mxu0 0.0
    %4126 = vmatpush2.xpose.msra.mxu0 0.0
    %4127 = vmatprep.subr.mxu0 0.0
    %4128 = vmatpush2.xpose.msra.mxu0 0.0
    %4129 = vmatprep.subr.mxu0 0.0
    %4130 = vmatpush2.xpose.msra.mxu0 0.0
    %4131 = vmatprep.mubr.f32.mxu0 0.0
    %4132 = vmatmul.mubr.f32.gmra.mxu0 %v4056
    %v4133 = vpop.f32.mrf.mxu0
    %v4134 = vadd.f32 0.0, %v4133
    %v4135 = vpop.f32.mrf.mxu0
    %4136 = vmatprep.mubr.f32.mxu0 0.0
    %4137 = vmatmul.mubr.f32.gmra.mxu0 %v4059
    %v4138 = vpop.f32.mrf.mxu0
    %v4139 = vadd.f32 0.0, %v4138
    %v4140 = vpop.f32.mrf.mxu0
    %4141 = vdwg.mxu0
    %v4142 = vmul.f32 %v4134, 0.35355338
    %v4143 = vmul.f32 %v4139, 0.35355338
    %v4144 = vadd.f32 %v4142, %v213
    %v4145 = vadd.f32 %v4143, %v214
    %v4146 = vsel %vm612, %v4144, -inf
    %4147 = vmax.xlane.f32.xlu0 %v4146
    %v4148 = vpop.xlane.xlu0 %4147
    %v4149 = vsel %vm616, %v4145, -inf
    %4150 = vmax.xlane.f32.xlu0 %v4149
    %v4151 = vpop.xlane.xlu0 %4150
    %v4152 = vsub.f32 %v4144, %v4148
    %v4153 = vsub.f32 %v4145, %v4151
    %v4154 = vmul.f32 %v4152, 1.442695
    %v4155 = vpow.pop %v4154
    %v4156 = vmul.f32 %v4153, 1.442695
    %v4157 = vpow.pop %v4156
    %v4158 = vsel %vm612, %v4155, 0.0
    %4159 = vadd.xlane.f32.xlu0 %v4158
    %v4160 = vpop.xlane.xlu0 %4159
    %v4161 = vsel %vm616, %v4157, 0.0
    %4162 = vadd.xlane.f32.xlu0 %v4161
    %v4163 = vpop.xlane.xlu0 %4162
    %v4164 = vrcp.pop %v4160
    %v4165 = vrcp.pop %v4163
    %v4166 = vmul.f32 %v4155, %v4164
    %v4167 = vmul.f32 %v4157, %v4165
    %v4169 = vsel %vm612, %v4166, 0
    %v4172 = vsel %vm612, %v4167, 0
    %v4175 = vsel %vm642, %v4052, 0
    %4177 = vmatprep.subr.mxu0 0.0
    %4178 = vmatpush1.msra.mxu0 0.0
    %4179 = vmatprep.subr.mxu0 0.0
    %4180 = vmatpush1.msra.mxu0 0.0
    %4181 = vmatprep.subr.mxu0 0.0
    %4182 = vmatpush1.msra.mxu0 0.0
    %4183 = vmatprep.subr.mxu0 0.0
    %4184 = vmatpush1.msra.mxu0 0.0
    %4185 = vmatprep.subr.mxu0 0.0
    %4186 = vmatpush1.msra.mxu0 0.0
    %4187 = vmatprep.subr.mxu0 0.0
    %4188 = vmatpush1.msra.mxu0 0.0
    %4189 = vmatprep.subr.mxu0 0.0
    %4190 = vmatpush1.msra.mxu0 0.0
    %4191 = vmatprep.subr.mxu0 0.0
    %4192 = vmatpush1.msra.mxu0 0.0
    %4193 = vmatprep.subr.mxu0 0.0
    %4194 = vmatpush1.msra.mxu0 0.0
    %4195 = vmatprep.subr.mxu0 0.0
    %4196 = vmatpush1.msra.mxu0 0.0
    %4197 = vmatprep.subr.mxu0 0.0
    %4198 = vmatpush1.msra.mxu0 0.0
    %4199 = vmatprep.subr.mxu0 0.0
    %4200 = vmatpush1.msra.mxu0 0.0
    %4201 = vmatprep.subr.mxu0 0.0
    %4202 = vmatpush1.msra.mxu0 0.0
    %4203 = vmatprep.subr.mxu0 0.0
    %4204 = vmatpush1.msra.mxu0 0.0
    %4205 = vmatprep.subr.mxu0 0.0
    %4206 = vmatpush1.msra.mxu0 %v4175
    %4207 = vmatprep.subr.mxu0 0.0
    %4208 = vmatpush1.msra.mxu0 %v4047
    %4209 = vmatprep.subr.mxu0 0.0
    %4210 = vmatpush2.msra.mxu0 0.0
    %4211 = vmatprep.subr.mxu0 0.0
    %4212 = vmatpush2.msra.mxu0 0.0
    %4213 = vmatprep.subr.mxu0 0.0
    %4214 = vmatpush2.msra.mxu0 0.0
    %4215 = vmatprep.subr.mxu0 0.0
    %4216 = vmatpush2.msra.mxu0 0.0
    %4217 = vmatprep.subr.mxu0 0.0
    %4218 = vmatpush2.msra.mxu0 0.0
    %4219 = vmatprep.subr.mxu0 0.0
    %4220 = vmatpush2.msra.mxu0 0.0
    %4221 = vmatprep.subr.mxu0 0.0
    %4222 = vmatpush2.msra.mxu0 0.0
    %4223 = vmatprep.subr.mxu0 0.0
    %4224 = vmatpush2.msra.mxu0 0.0
    %4225 = vmatprep.subr.mxu0 0.0
    %4226 = vmatpush2.msra.mxu0 0.0
    %4227 = vmatprep.subr.mxu0 0.0
    %4228 = vmatpush2.msra.mxu0 0.0
    %4229 = vmatprep.subr.mxu0 0.0
    %4230 = vmatpush2.msra.mxu0 0.0
    %4231 = vmatprep.subr.mxu0 0.0
    %4232 = vmatpush2.msra.mxu0 0.0
    %4233 = vmatprep.subr.mxu0 0.0
    %4234 = vmatpush2.msra.mxu0 0.0
    %4235 = vmatprep.subr.mxu0 0.0
    %4236 = vmatpush2.msra.mxu0 0.0
    %4237 = vmatprep.subr.mxu0 0.0
    %4238 = vmatpush2.msra.mxu0 0.0
    %4239 = vmatprep.subr.mxu0 0.0
    %4240 = vmatpush2.msra.mxu0 0.0
    %4241 = vmatprep.mubr.f32.mxu0 0.0
    %4242 = vmatmul.mubr.f32.gmra.mxu0 %v4169
    %v4243 = vpop.f32.mrf.mxu0
    %v4244 = vadd.f32 0.0, %v4243
    %v4245 = vpop.f32.mrf.mxu0
    %4246 = vmatprep.mubr.f32.mxu0 0.0
    %4247 = vmatmul.mubr.f32.gmra.mxu0 %v4172
    %v4248 = vpop.f32.mrf.mxu0
    %v4249 = vadd.f32 0.0, %v4248
    %v4250 = vpop.f32.mrf.mxu0
    %4251 = vdwg.mxu0
    %4254 = vrot.lane.b32.xlu0 %v3358, 8
    %v4255 = vpop.permute.xlu0 %4254
    %4256 = vrot.lane.b32.xlu0 %v3363, 8
    %v4257 = vpop.permute.xlu0 %4256
    %4262 = vrot.lane.b32.xlu0 %v3801, 16
    %v4263 = vpop.permute.xlu0 %4262
    %4264 = vrot.lane.b32.xlu0 %v3806, 16
    %v4265 = vpop.permute.xlu0 %4264
    %4270 = vrot.lane.b32.xlu0 %v4244, 24
    %v4271 = vpop.permute.xlu0 %4270
    %4272 = vrot.lane.b32.xlu0 %v4249, 24
    %v4273 = vpop.permute.xlu0 %4272
    %v4276 = vsel %vm520, %v2915, %v4255
    %v4277 = vsel %vm520, %v2920, %v4257
    %v4278 = vsel %vm2076, %v4276, %v4263
    %v4279 = vsel %vm2076, %v4277, %v4265
    %v4280 = vsel %vm2079, %v4278, %v4271
    %v4281 = vsel %vm2079, %v4279, %v4273
    %v4282 = vld [vmem:[%s1 + $0x248] sm:$0xff]
    %v4283 = vld [vmem:[%s1 + $0x250] sm:$0xff]
    %v4284 = vld [vmem:[%s1 + $0x258] sm:$0xff]
    %v4285 = vld [vmem:[%s1 + $0x260] sm:$0xff]
    %v4287 = vsel %vm143, %v4280, 0
    %v4290 = vsel %vm143, %v4281, 0
    %4292 = vmatprep.subr.mxu0 0.0
    %4293 = vmatpush1.msra.mxu0 0.0
    %4294 = vmatprep.subr.mxu0 0.0
    %4295 = vmatpush1.msra.mxu0 0.0
    %4296 = vmatprep.subr.mxu0 0.0
    %4297 = vmatpush1.msra.mxu0 0.0
    %4298 = vmatprep.subr.mxu0 0.0
    %4299 = vmatpush1.msra.mxu0 0.0
    %4300 = vmatprep.subr.mxu0 0.0
    %4301 = vmatpush1.msra.mxu0 0.0
    %4302 = vmatprep.subr.mxu0 0.0
    %4303 = vmatpush1.msra.mxu0 0.0
    %4304 = vmatprep.subr.mxu0 0.0
    %4305 = vmatpush1.msra.mxu0 0.0
    %4306 = vmatprep.subr.mxu0 0.0
    %4307 = vmatpush1.msra.mxu0 0.0
    %4308 = vmatprep.subr.mxu0 0.0
    %4309 = vmatpush1.msra.mxu0 0.0
    %4310 = vmatprep.subr.mxu0 0.0
    %4311 = vmatpush1.msra.mxu0 0.0
    %4312 = vmatprep.subr.mxu0 0.0
    %4313 = vmatpush1.msra.mxu0 0.0
    %4314 = vmatprep.subr.mxu0 0.0
    %4315 = vmatpush1.msra.mxu0 0.0
    %4316 = vmatprep.subr.mxu0 0.0
    %4317 = vmatpush1.msra.mxu0 %v4285
    %4318 = vmatprep.subr.mxu0 0.0
    %4319 = vmatpush1.msra.mxu0 %v4284
    %4320 = vmatprep.subr.mxu0 0.0
    %4321 = vmatpush1.msra.mxu0 %v4283
    %4322 = vmatprep.subr.mxu0 0.0
    %4323 = vmatpush1.msra.mxu0 %v4282
    %4324 = vmatprep.subr.mxu0 0.0
    %4325 = vmatpush2.msra.mxu0 0.0
    %4326 = vmatprep.subr.mxu0 0.0
    %4327 = vmatpush2.msra.mxu0 0.0
    %4328 = vmatprep.subr.mxu0 0.0
    %4329 = vmatpush2.msra.mxu0 0.0
    %4330 = vmatprep.subr.mxu0 0.0
    %4331 = vmatpush2.msra.mxu0 0.0
    %4332 = vmatprep.subr.mxu0 0.0
    %4333 = vmatpush2.msra.mxu0 0.0
    %4334 = vmatprep.subr.mxu0 0.0
    %4335 = vmatpush2.msra.mxu0 0.0
    %4336 = vmatprep.subr.mxu0 0.0
    %4337 = vmatpush2.msra.mxu0 0.0
    %4338 = vmatprep.subr.mxu0 0.0
    %4339 = vmatpush2.msra.mxu0 0.0
    %4340 = vmatprep.subr.mxu0 0.0
    %4341 = vmatpush2.msra.mxu0 0.0
    %4342 = vmatprep.subr.mxu0 0.0
    %4343 = vmatpush2.msra.mxu0 0.0
    %4344 = vmatprep.subr.mxu0 0.0
    %4345 = vmatpush2.msra.mxu0 0.0
    %4346 = vmatprep.subr.mxu0 0.0
    %4347 = vmatpush2.msra.mxu0 0.0
    %4348 = vmatprep.subr.mxu0 0.0
    %4349 = vmatpush2.msra.mxu0 0.0
    %4350 = vmatprep.subr.mxu0 0.0
    %4351 = vmatpush2.msra.mxu0 0.0
    %4352 = vmatprep.subr.mxu0 0.0
    %4353 = vmatpush2.msra.mxu0 0.0
    %4354 = vmatprep.subr.mxu0 0.0
    %4355 = vmatpush2.msra.mxu0 0.0
    %4356 = vmatprep.mubr.f32.mxu0 0.0
    %4357 = vmatmul.mubr.f32.gmra.mxu0 %v4287
    %v4358 = vpop.f32.mrf.mxu0
    %v4359 = vadd.f32 0.0, %v4358
    %v4360 = vpop.f32.mrf.mxu0
    %4361 = vmatprep.mubr.f32.mxu0 0.0
    %4362 = vmatmul.mubr.f32.gmra.mxu0 %v4290
    %v4363 = vpop.f32.mrf.mxu0
    %v4364 = vadd.f32 0.0, %v4363
    %v4365 = vpop.f32.mrf.mxu0
    %4366 = vdwg.mxu0
    %v4367 = vadd.f32 %v2419, %v4359
    %v4368 = vadd.f32 %v2420, %v4364
    %v4369 = vld [vmem:[%s1 + $0x268] sm:$0x1]
    %v4370 = vlaneseq
    %v4371 = vshrl.u32 %v4370, 7
    %v4372 = vsub.s32 0, %v4371
    %v4373 = vrot.slane %v4369, %v4372
    %v4374 = vadd.f32 %v4367, %v4373
    %v4375 = vadd.f32 %v4368, %v4373
    %v4376 = vld [vmem:[%s1 + $0x269] sm:$0x3]
    %v4377 = vsel %vm143, %v4374, 0.0
    %4378 = vadd.xlane.f32.xlu0 %v4377
    %v4379 = vpop.xlane.xlu0 %4378
    %v4380 = vsel %vm147, %v4375, 0.0
    %4381 = vadd.xlane.f32.xlu0 %v4380
    %v4382 = vpop.xlane.xlu0 %4381
    %v4383 = vmul.f32 %v4379, %v151
    %v4384 = vmul.f32 %v4382, %v151
    %v4385 = vsub.f32 %v4374, %v4383
    %v4386 = vsub.f32 %v4375, %v4384
    %v4387 = vmul.f32 %v4385, %v4385
    %v4388 = vmul.f32 %v4386, %v4386
    %v4389 = vsel %vm143, %v4387, 0.0
    %4390 = vadd.xlane.f32.xlu0 %v4389
    %v4391 = vpop.xlane.xlu0 %4390
    %v4392 = vsel %vm147, %v4388, 0.0
    %4393 = vadd.xlane.f32.xlu0 %v4392
    %v4394 = vpop.xlane.xlu0 %4393
    %v4395 = vmul.f32 %v4391, %v151
    %v4396 = vmul.f32 %v4394, %v151
    %v4397 = vadd.f32 %v4395, 1e-05
    %v4398 = vadd.f32 %v4396, 1e-05
    %v4399 = vrsqrt.pop %v4397
    %v4400 = vrsqrt.pop %v4398
    %v4401 = vmul.f32 %v4385, %v4399
    %v4402 = vmul.f32 %v4386, %v4400
    %v4403 = vlaneseq
    %v4404 = vshrl.u32 %v4403, 7
    %v4405 = vsub.s32 0, %v4404
    %v4406 = vrot.slane %v4376, %v4405
    %v4407 = vmul.f32 %v4401, %v4406
    %v4408 = vmul.f32 %v4402, %v4406
    %v4409 = vlaneseq
    %v4410 = vshrl.u32 %v4409, 7
    %v4411 = vsub.s32 1, %v4410
    %v4412 = vrot.slane %v4376, %v4411
    %v4413 = vadd.f32 %v4407, %v4412
    %v4414 = vadd.f32 %v4408, %v4412
    %v4415 = vld [vmem:[%s2 + $0x20] sm:$0xff]
    %v4416 = vld [vmem:[%s2 + $0x28] sm:$0xff]
    %v4417 = vld [vmem:[%s2 + $0x30] sm:$0xff]
    %v4418 = vld [vmem:[%s2 + $0x38] sm:$0xff]
    %v4419 = vld [vmem:[%s2 + $0x41] sm:$0x1]
    %v4420 = vlaneseq
    %v4421 = vshrl.u32 %v4420, 7
    %v4422 = vsub.s32 0, %v4421
    %v4423 = vrot.slane %v4419, %v4422
    %v4425 = vsel %vm143, %v4413, 0
    %v4428 = vsel %vm143, %v4414, 0
    %4430 = vmatprep.subr.mxu0 0.0
    %4431 = vmatpush1.msra.mxu0 0.0
    %4432 = vmatprep.subr.mxu0 0.0
    %4433 = vmatpush1.msra.mxu0 0.0
    %4434 = vmatprep.subr.mxu0 0.0
    %4435 = vmatpush1.msra.mxu0 0.0
    %4436 = vmatprep.subr.mxu0 0.0
    %4437 = vmatpush1.msra.mxu0 0.0
    %4438 = vmatprep.subr.mxu0 0.0
    %4439 = vmatpush1.msra.mxu0 0.0
    %4440 = vmatprep.subr.mxu0 0.0
    %4441 = vmatpush1.msra.mxu0 0.0
    %4442 = vmatprep.subr.mxu0 0.0
    %4443 = vmatpush1.msra.mxu0 0.0
    %4444 = vmatprep.subr.mxu0 0.0
    %4445 = vmatpush1.msra.mxu0 0.0
    %4446 = vmatprep.subr.mxu0 0.0
    %4447 = vmatpush1.msra.mxu0 0.0
    %4448 = vmatprep.subr.mxu0 0.0
    %4449 = vmatpush1.msra.mxu0 0.0
    %4450 = vmatprep.subr.mxu0 0.0
    %4451 = vmatpush1.msra.mxu0 0.0
    %4452 = vmatprep.subr.mxu0 0.0
    %4453 = vmatpush1.msra.mxu0 0.0
    %4454 = vmatprep.subr.mxu0 0.0
    %4455 = vmatpush1.msra.mxu0 %v4418
    %4456 = vmatprep.subr.mxu0 0.0
    %4457 = vmatpush1.msra.mxu0 %v4417
    %4458 = vmatprep.subr.mxu0 0.0
    %4459 = vmatpush1.msra.mxu0 %v4416
    %4460 = vmatprep.subr.mxu0 0.0
    %4461 = vmatpush1.msra.mxu0 %v4415
    %4462 = vmatprep.subr.mxu0 0.0
    %4463 = vmatpush2.msra.mxu0 0.0
    %4464 = vmatprep.subr.mxu0 0.0
    %4465 = vmatpush2.msra.mxu0 0.0
    %4466 = vmatprep.subr.mxu0 0.0
    %4467 = vmatpush2.msra.mxu0 0.0
    %4468 = vmatprep.subr.mxu0 0.0
    %4469 = vmatpush2.msra.mxu0 0.0
    %4470 = vmatprep.subr.mxu0 0.0
    %4471 = vmatpush2.msra.mxu0 0.0
    %4472 = vmatprep.subr.mxu0 0.0
    %4473 = vmatpush2.msra.mxu0 0.0
    %4474 = vmatprep.subr.mxu0 0.0
    %4475 = vmatpush2.msra.mxu0 0.0
    %4476 = vmatprep.subr.mxu0 0.0
    %4477 = vmatpush2.msra.mxu0 0.0
    %4478 = vmatprep.subr.mxu0 0.0
    %4479 = vmatpush2.msra.mxu0 0.0
    %4480 = vmatprep.subr.mxu0 0.0
    %4481 = vmatpush2.msra.mxu0 0.0
    %4482 = vmatprep.subr.mxu0 0.0
    %4483 = vmatpush2.msra.mxu0 0.0
    %4484 = vmatprep.subr.mxu0 0.0
    %4485 = vmatpush2.msra.mxu0 0.0
    %4486 = vmatprep.subr.mxu0 0.0
    %4487 = vmatpush2.msra.mxu0 0.0
    %4488 = vmatprep.subr.mxu0 0.0
    %4489 = vmatpush2.msra.mxu0 0.0
    %4490 = vmatprep.subr.mxu0 0.0
    %4491 = vmatpush2.msra.mxu0 0.0
    %4492 = vmatprep.subr.mxu0 0.0
    %4493 = vmatpush2.msra.mxu0 0.0
    %4494 = vmatprep.mubr.f32.mxu0 0.0
    %4495 = vmatmul.mubr.f32.gmra.mxu0 %v4425
    %v4496 = vpop.f32.mrf.mxu0
    %v4497 = vadd.f32 %v4423, %v4496
    %v4498 = vpop.f32.mrf.mxu0
    %4499 = vmatprep.mubr.f32.mxu0 0.0
    %4500 = vmatmul.mubr.f32.gmra.mxu0 %v4428
    %v4501 = vpop.f32.mrf.mxu0
    %v4502 = vadd.f32 %v4423, %v4501
    %v4503 = vpop.f32.mrf.mxu0
    %4504 = vdwg.mxu0
    %v4505 = vmul.f32 %v4497, 1.702
    %v4506 = vmul.f32 %v4502, 1.702
    %v4507 = vxor.u32 %v4505, 2147483648
    %v4508 = vxor.u32 %v4506, 2147483648
    %v4509 = vmul.f32 %v4507, 1.442695
    %v4510 = vpow.pop %v4509
    %v4511 = vmul.f32 %v4508, 1.442695
    %v4512 = vpow.pop %v4511
    %v4513 = vadd.f32 %v4510, 1.0
    %v4514 = vadd.f32 %v4512, 1.0
    %v4515 = vrcp.pop %v4513
    %v4516 = vmul.f32 1.0, %v4515
    %v4517 = vrcp.pop %v4514
    %v4518 = vmul.f32 1.0, %v4517
    %v4519 = vmul.f32 %v4497, %v4516
    %v4520 = vmul.f32 %v4502, %v4518
    %v4521 = vld [vmem:[%s1 + $0x26b] sm:$0xff]
    %v4522 = vld [vmem:[%s1 + $0x273] sm:$0xff]
    %v4523 = vld [vmem:[%s1 + $0x27b] sm:$0xff]
    %v4524 = vld [vmem:[%s1 + $0x283] sm:$0xff]
    %v4525 = vld [vmem:[%s1 + $0x28b] sm:$0xff]
    %v4526 = vld [vmem:[%s1 + $0x293] sm:$0xff]
    %v4527 = vld [vmem:[%s1 + $0x29b] sm:$0xff]
    %v4528 = vld [vmem:[%s1 + $0x2a3] sm:$0xff]
    %v4529 = vld [vmem:[%s1 + $0x2ab] sm:$0xff]
    %v4530 = vld [vmem:[%s1 + $0x2b3] sm:$0xff]
    %v4531 = vld [vmem:[%s1 + $0x2bb] sm:$0xff]
    %v4532 = vld [vmem:[%s1 + $0x2c3] sm:$0xff]
    %v4533 = vld [vmem:[%s1 + $0x2cb] sm:$0xff]
    %v4534 = vld [vmem:[%s1 + $0x2d3] sm:$0xff]
    %v4535 = vld [vmem:[%s1 + $0x2db] sm:$0xff]
    %v4536 = vld [vmem:[%s1 + $0x2e3] sm:$0xff]
    %4537 = vmatprep.subr.mxu0 0.0
    %4538 = vmatpush1.msra.mxu0 %v4536
    %4539 = vmatprep.subr.mxu0 0.0
    %4540 = vmatpush1.msra.mxu0 %v4535
    %4541 = vmatprep.subr.mxu0 0.0
    %4542 = vmatpush1.msra.mxu0 %v4534
    %4543 = vmatprep.subr.mxu0 0.0
    %4544 = vmatpush1.msra.mxu0 %v4533
    %4545 = vmatprep.subr.mxu0 0.0
    %4546 = vmatpush1.msra.mxu0 %v4532
    %4547 = vmatprep.subr.mxu0 0.0
    %4548 = vmatpush1.msra.mxu0 %v4531
    %4549 = vmatprep.subr.mxu0 0.0
    %4550 = vmatpush1.msra.mxu0 %v4530
    %4551 = vmatprep.subr.mxu0 0.0
    %4552 = vmatpush1.msra.mxu0 %v4529
    %4553 = vmatprep.subr.mxu0 0.0
    %4554 = vmatpush1.msra.mxu0 %v4528
    %4555 = vmatprep.subr.mxu0 0.0
    %4556 = vmatpush1.msra.mxu0 %v4527
    %4557 = vmatprep.subr.mxu0 0.0
    %4558 = vmatpush1.msra.mxu0 %v4526
    %4559 = vmatprep.subr.mxu0 0.0
    %4560 = vmatpush1.msra.mxu0 %v4525
    %4561 = vmatprep.subr.mxu0 0.0
    %4562 = vmatpush1.msra.mxu0 %v4524
    %4563 = vmatprep.subr.mxu0 0.0
    %4564 = vmatpush1.msra.mxu0 %v4523
    %4565 = vmatprep.subr.mxu0 0.0
    %4566 = vmatpush1.msra.mxu0 %v4522
    %4567 = vmatprep.subr.mxu0 0.0
    %4568 = vmatpush1.msra.mxu0 %v4521
    %4569 = vmatprep.subr.mxu0 0.0
    %4570 = vmatpush2.msra.mxu0 0.0
    %4571 = vmatprep.subr.mxu0 0.0
    %4572 = vmatpush2.msra.mxu0 0.0
    %4573 = vmatprep.subr.mxu0 0.0
    %4574 = vmatpush2.msra.mxu0 0.0
    %4575 = vmatprep.subr.mxu0 0.0
    %4576 = vmatpush2.msra.mxu0 0.0
    %4577 = vmatprep.subr.mxu0 0.0
    %4578 = vmatpush2.msra.mxu0 0.0
    %4579 = vmatprep.subr.mxu0 0.0
    %4580 = vmatpush2.msra.mxu0 0.0
    %4581 = vmatprep.subr.mxu0 0.0
    %4582 = vmatpush2.msra.mxu0 0.0
    %4583 = vmatprep.subr.mxu0 0.0
    %4584 = vmatpush2.msra.mxu0 0.0
    %4585 = vmatprep.subr.mxu0 0.0
    %4586 = vmatpush2.msra.mxu0 0.0
    %4587 = vmatprep.subr.mxu0 0.0
    %4588 = vmatpush2.msra.mxu0 0.0
    %4589 = vmatprep.subr.mxu0 0.0
    %4590 = vmatpush2.msra.mxu0 0.0
    %4591 = vmatprep.subr.mxu0 0.0
    %4592 = vmatpush2.msra.mxu0 0.0
    %4593 = vmatprep.subr.mxu0 0.0
    %4594 = vmatpush2.msra.mxu0 0.0
    %4595 = vmatprep.subr.mxu0 0.0
    %4596 = vmatpush2.msra.mxu0 0.0
    %4597 = vmatprep.subr.mxu0 0.0
    %4598 = vmatpush2.msra.mxu0 0.0
    %4599 = vmatprep.subr.mxu0 0.0
    %4600 = vmatpush2.msra.mxu0 0.0
    %4601 = vmatprep.mubr.f32.mxu0 0.0
    %4602 = vmatmul.mubr.f32.gmra.mxu0 %v4519
    %v4603 = vpop.f32.mrf.mxu0
    %v4604 = vadd.f32 0.0, %v4603
    %v4605 = vpop.f32.mrf.mxu0
    %4606 = vmatprep.mubr.f32.mxu0 0.0
    %4607 = vmatmul.mubr.f32.gmra.mxu0 %v4520
    %v4608 = vpop.f32.mrf.mxu0
    %v4609 = vpop.f32.mrf.mxu0
    %4610 = vdwg.mxu0
    %v4611 = vadd.f32 %v4374, %v4604
    %v4612 = vld [vmem:[%s1 + $0x2eb] sm:$0x1]
    %v4613 = vlaneseq
    %v4614 = vshrl.u32 %v4613, 7
    %v4615 = vsub.s32 0, %v4614
    %v4616 = vrot.slane %v4612, %v4615
    %v4617 = vadd.f32 %v4611, %v4616
    %v4619 = vrot.slane %v4617, 4
    %v4621 = vsel %vm136, %v4617, %v4619
    %v4622 = vld [vmem:[%s1 + $0x2ec] sm:$0x3]
    %v4623 = vsel %vm147, %v4621, 0.0
    %4624 = vadd.xlane.f32.xlu0 %v4623
    %v4625 = vpop.xlane.xlu0 %4624
    %v4626 = vmul.f32 %v4625, %v151
    %v4627 = vsub.f32 %v4621, %v4626
    %v4628 = vmul.f32 %v4627, %v4627
    %v4629 = vsel %vm147, %v4628, 0.0
    %4630 = vadd.xlane.f32.xlu0 %v4629
    %v4631 = vpop.xlane.xlu0 %4630
    %v4632 = vmul.f32 %v4631, %v151
    %v4633 = vadd.f32 %v4632, 1e-05
    %v4634 = vrsqrt.pop %v4633
    %v4635 = vmul.f32 %v4627, %v4634
    %v4636 = vlaneseq
    %v4637 = vshrl.u32 %v4636, 7
    %v4638 = vsub.s32 0, %v4637
    %v4639 = vrot.slane %v4622, %v4638
    %v4640 = vmul.f32 %v4635, %v4639
    %v4641 = vlaneseq
    %v4642 = vshrl.u32 %v4641, 7
    %v4643 = vsub.s32 1, %v4642
    %v4644 = vrot.slane %v4622, %v4643
    %v4645 = vadd.f32 %v4640, %v4644
    %v4646 = vld [vmem:[%s1 + $0x2ee] sm:$0xff]
    %v4647 = vld [vmem:[%s1 + $0x2f6] sm:$0xff]
    %v4649 = vsel %vm143, %v4645, 0
    %v4652 = vsel %vm143, %v4646, 0
    %v4655 = vsel %vm143, %v4647, 0
    %4657 = vmatprep.subr.mxu0 0.0
    %4658 = vmatpush1.xpose.msra.mxu0 0.0
    %4659 = vmatprep.subr.mxu0 0.0
    %4660 = vmatpush1.xpose.msra.mxu0 0.0
    %4661 = vmatprep.subr.mxu0 0.0
    %4662 = vmatpush1.xpose.msra.mxu0 0.0
    %4663 = vmatprep.subr.mxu0 0.0
    %4664 = vmatpush1.xpose.msra.mxu0 0.0
    %4665 = vmatprep.subr.mxu0 0.0
    %4666 = vmatpush1.xpose.msra.mxu0 0.0
    %4667 = vmatprep.subr.mxu0 0.0
    %4668 = vmatpush1.xpose.msra.mxu0 0.0
    %4669 = vmatprep.subr.mxu0 0.0
    %4670 = vmatpush1.xpose.msra.mxu0 0.0
    %4671 = vmatprep.subr.mxu0 0.0
    %4672 = vmatpush1.xpose.msra.mxu0 0.0
    %4673 = vmatprep.subr.mxu0 0.0
    %4674 = vmatpush1.xpose.msra.mxu0 0.0
    %4675 = vmatprep.subr.mxu0 0.0
    %4676 = vmatpush1.xpose.msra.mxu0 0.0
    %4677 = vmatprep.subr.mxu0 0.0
    %4678 = vmatpush1.xpose.msra.mxu0 0.0
    %4679 = vmatprep.subr.mxu0 0.0
    %4680 = vmatpush1.xpose.msra.mxu0 0.0
    %4681 = vmatprep.subr.mxu0 0.0
    %4682 = vmatpush1.xpose.msra.mxu0 0.0
    %4683 = vmatprep.subr.mxu0 0.0
    %4684 = vmatpush1.xpose.msra.mxu0 0.0
    %4685 = vmatprep.subr.mxu0 0.0
    %4686 = vmatpush1.xpose.msra.mxu0 %v4655
    %4687 = vmatprep.subr.mxu0 0.0
    %4688 = vmatpush1.xpose.msra.mxu0 %v4652
    %4689 = vmatprep.subr.mxu0 0.0
    %4690 = vmatpush2.xpose.msra.mxu0 0.0
    %4691 = vmatprep.subr.mxu0 0.0
    %4692 = vmatpush2.xpose.msra.mxu0 0.0
    %4693 = vmatprep.subr.mxu0 0.0
    %4694 = vmatpush2.xpose.msra.mxu0 0.0
    %4695 = vmatprep.subr.mxu0 0.0
    %4696 = vmatpush2.xpose.msra.mxu0 0.0
    %4697 = vmatprep.subr.mxu0 0.0
    %4698 = vmatpush2.xpose.msra.mxu0 0.0
    %4699 = vmatprep.subr.mxu0 0.0
    %4700 = vmatpush2.xpose.msra.mxu0 0.0
    %4701 = vmatprep.subr.mxu0 0.0
    %4702 = vmatpush2.xpose.msra.mxu0 0.0
    %4703 = vmatprep.subr.mxu0 0.0
    %4704 = vmatpush2.xpose.msra.mxu0 0.0
    %4705 = vmatprep.subr.mxu0 0.0
    %4706 = vmatpush2.xpose.msra.mxu0 0.0
    %4707 = vmatprep.subr.mxu0 0.0
    %4708 = vmatpush2.xpose.msra.mxu0 0.0
    %4709 = vmatprep.subr.mxu0 0.0
    %4710 = vmatpush2.xpose.msra.mxu0 0.0
    %4711 = vmatprep.subr.mxu0 0.0
    %4712 = vmatpush2.xpose.msra.mxu0 0.0
    %4713 = vmatprep.subr.mxu0 0.0
    %4714 = vmatpush2.xpose.msra.mxu0 0.0
    %4715 = vmatprep.subr.mxu0 0.0
    %4716 = vmatpush2.xpose.msra.mxu0 0.0
    %4717 = vmatprep.subr.mxu0 0.0
    %4718 = vmatpush2.xpose.msra.mxu0 0.0
    %4719 = vmatprep.subr.mxu0 0.0
    %4720 = vmatpush2.xpose.msra.mxu0 0.0
    %4721 = vmatprep.mubr.f32.mxu0 0.0
    %4722 = vmatmul.mubr.f32.gmra.mxu0 %v4649
    %v4723 = vpop.f32.mrf.mxu0
    %v4724 = vadd.f32 0.0, %v4723
    %v4725 = vpop.f32.mrf.mxu0
    %4726 = vdwg.mxu0
    %vm4727 = vcmask 123904
    %4728 = vst.msk [vmem:[#allocation2] sm:$0x3] %vm4727, %v4724
    // Predicated region
    $region14: #{clip_img_wrap_forward.1} parent=1 // pred_check
      _
    $region15: #{clip_img_wrap_forward.1} parent=1 // pred_check_branch
      %4730 = sbr.rel (0) target = $region17
    $region16: #{clip_img_wrap_forward.1} parent=1 // pred_region
      %s4732 = ssub.s32 32, 32
      %4733 = vsyncadd [#allocation3], %s4732
      %s4735 = sshll.u32 [#allocation2], 4
      %s4736 = int_to_ptr.vmem [resolvable:$true] %s4735
      %4738 = dma.vmem_to_hbm [thread:$0]  %s4736, 32, %s3, [#allocation3]
    $region17: #{clip_img_wrap_forward.1} parent=1 // pred_fallthru
      _
    // Predicated region
    $region18: #{clip_img_wrap_forward.1} parent=1 // pred_check
      _
    $region19: #{clip_img_wrap_forward.1} parent=1 // pred_check_branch
      %4740 = sbr.rel (0) target = $region21
    $region20: #{clip_img_wrap_forward.1} parent=1 // pred_region
      %4741 = dma.done [#allocation3], 32
    $region21: #{clip_img_wrap_forward.1} parent=1 // pred_fallthru
      _
    %4742 = vsyncpa [#allocation3], 1

</llo_original>
